<compile_context>
chip_gen: v5e
topology: v5e:2x2
jax: 0.10.0
libtpu: 0.0.40
codegen_flags: <defaults>
</compile_context>

<pallas_src>
import jax
import jax.numpy as jnp
import numpy as np
from jax.experimental import pallas as pl
from jax.experimental.pallas import tpu as pltpu


def conv_module_kernel(x_ref, w1_ref, b1_ref, wdw_ref, bdw_ref, w2_ref, b2_ref,
                       out_ref, zpad_ref):
    M, D = x_ref.shape                       # M = Bb * T rows in this block
    K = wdw_ref.shape[0]
    pad = K // 2
    Bb = zpad_ref.shape[0]
    T = M // Bb
    L = zpad_ref.shape[1]
    zdtype = zpad_ref.dtype
    # sublane granule of the scratch dtype: 8 rows for f32, 16 for bf16.
    granule = 32 // zpad_ref.dtype.itemsize
    pad_lo = ((pad + granule - 1) // granule) * granule   # aligned low halo
    shift = pad_lo - pad

    x = x_ref[...]                           # (M, D) fp32

    # --- LayerNorm over D (two-pass stats; affine folded into w1/b1) --------
    mean = jnp.mean(x, axis=-1, keepdims=True)
    xc = x - mean
    var = jnp.mean(xc * xc, axis=-1, keepdims=True)
    xn = xc * jax.lax.rsqrt(var + 1e-5)

    # --- pointwise_conv1 (1x1 conv == matmul, bf16 MXU, fp32 acc) + GLU -----
    y = jnp.dot(xn.astype(jnp.bfloat16), w1_ref[...],
                preferred_element_type=jnp.float32) + b1_ref[...]
    z = y[:, :D] * jax.nn.sigmoid(y[:, D:])                 # (M, D) fp32

    # --- depthwise conv over T ('same' zero padding; eval-BN folded in) -----
    wdw = wdw_ref[...]                                      # (K, D), one load
    if pad == 0:
        zc = z.reshape(Bb, T, D) * wdw[0:1, :].astype(jnp.float32)
    else:
        # Zero the padding halo EVERY step: under megacore "parallel" sharding
        # the scratch is per-TensorCore, so a program_id==0-only init would
        # leave the other core's halo uninitialized.  Only ~2*pad_lo rows.
        zpad_ref[:, :pad_lo, :] = jnp.zeros((Bb, pad_lo, D), zdtype)
        zpad_ref[:, pad_lo + T:, :] = jnp.zeros((Bb, L - pad_lo - T, D), zdtype)
        # interior store starts at a sublane-aligned offset -> unmasked vst.
        zpad_ref[:, pad_lo:pad_lo + T, :] = z.reshape(Bb, T, D).astype(zdtype)

        win = T + granule
        zc = None                       # single fp32 accumulator (Bb, T, D)
        for j in range(granule):
            # taps whose padded offset is congruent to j (mod granule); each
            # reads a granule-ALIGNED window of the scratch.
            taps = [k for k in range(K) if (k + shift) % granule == j]
            if not taps:
                continue
            acc_j = None
            for k in taps:
                base = (k + shift) - j                  # multiple of granule
                contrib = zpad_ref[:, base:base + win, :] * wdw[k:k + 1, :]
                acc_j = contrib if acc_j is None else acc_j + contrib
            # one re-alignment (sublane shift) per residue group, then fp32 add
            part = acc_j[:, j:j + T, :].astype(jnp.float32)
            zc = part if zc is None else zc + part
    zc = zc + bdw_ref[...]

    # --- SiLU ----------------------------------------------------------------
    zc = zc * jax.nn.sigmoid(zc)

    # --- pointwise_conv2 (1x1 conv == matmul, bf16 MXU, fp32 acc) ------------
    out = jnp.dot(zc.reshape(M, D).astype(jnp.bfloat16), w2_ref[...],
                  preferred_element_type=jnp.float32) + b2_ref[...]

    # --- Dropout (eval mode => identity) + residual (re-read x_ref) ----------
    out_ref[...] = (out + x_ref[...]).astype(out_ref.dtype)


def _vmem_capacity_bytes():
    try:
        return int(pltpu.get_tpu_info().vmem_capacity_bytes)
    except Exception:
        return 64 << 20            # conservative default (v7x per-core VMEM)


def _default_dw_dtype():
    # bf16 depthwise math on bf16-native VPUs (v6e / v7x); fp32 elsewhere
    # (v5e and older have no bf16 VALU and would regress).
    try:
        kind = jax.devices()[0].device_kind.lower()
    except Exception:
        return jnp.float32
    if ("v6" in kind) or ("v7" in kind) or ("7x" in kind):
        return jnp.bfloat16
    return jnp.float32


def _pick_batch_block(B, T, D, *, target_rows=512, vmem_bytes=None):
    """Largest divisor Bb of B whose Bb*T rows fit the VMEM budget / target."""
    if vmem_bytes is None:
        vmem_bytes = _vmem_capacity_bytes()
    # Per-step working set is roughly 14 * rows * D * 4 bytes (double-buffered
    # x/out blocks, padded depthwise scratch, the (rows, 2D) GLU intermediate,
    # fp32 accumulators and temporaries).
    rows_vmem = int(0.6 * vmem_bytes) // (14 * D * 4)
    max_rows = max(8, min(target_rows, rows_vmem))
    want = max(1, max_rows // T)
    divisors = [d for d in range(1, B + 1) if B % d == 0 and d <= want]
    bb = max(divisors) if divisors else 1
    # Keep >= 2 grid steps when that costs at most a 2x smaller block, so
    # dimension_semantics=("parallel",) can shard across v7x's 2 TensorCores.
    if B // bb < 2:
        alt = [d for d in range(1, bb) if B % d == 0 and 2 * d >= bb]
        if alt:
            bb = max(alt)
    return bb


def conv_module_forward(x, params, *, block_b=None, dw_dtype=None,
                        target_rows=512):
    """x: (B, T, D) fp32 -> (B, T, D) fp32.  Eval-mode BatchNorm / Dropout."""
    B, T, D = x.shape
    K = params["w_dw"].shape[0]
    assert K % 2 == 1, "depthwise kernel_size must be odd for 'same' padding"
    assert T % 8 == 0 and D % 128 == 0, "T must be a multiple of 8, D of 128"
    pad = K // 2

    if dw_dtype is None:
        dw_dtype = _default_dw_dtype()
    dw_dtype = np.dtype(dw_dtype)
    granule = 32 // dw_dtype.itemsize
    if pad > 0:
        pad_lo = -(-pad // granule) * granule
        max_base = granule * ((pad_lo + pad) // granule)
        pad_hi = max_base + granule - pad_lo     # room for the aligned windows
    else:
        pad_lo = pad_hi = 0
    L = T + pad_lo + pad_hi

    # ---- fold LayerNorm affine into pointwise_conv1, eval-BN into depthwise -
    ln_g, ln_b = params["ln_g"], params["ln_b"]
    w1 = (ln_g[0][:, None] * params["w1t"]).astype(jnp.bfloat16)       # (D, 2D)
    b1 = (ln_b @ params["w1t"] + params["b1"]).astype(jnp.float32)     # (1, 2D)
    w_dw = (params["w_dw"] * params["bn_scale"]).astype(dw_dtype)      # (K, D)
    b_dw = (params["b_dw"] * params["bn_scale"]
            + params["bn_shift"]).astype(jnp.float32)                  # (1, D)
    w2 = params["w2t"].astype(jnp.bfloat16)                            # (D, D)
    b2 = params["b2"].astype(jnp.float32)                              # (1, D)

    vmem_cap = _vmem_capacity_bytes()
    Bb = (_pick_batch_block(B, T, D, target_rows=target_rows,
                            vmem_bytes=vmem_cap)
          if block_b is None else block_b)
    assert B % Bb == 0
    M = Bb * T
    grid = (B // Bb,)
    vmem_limit = int(min(100 << 20, max(32 << 20, int(0.75 * vmem_cap))))

    # lane-dense 2-D slabs in/out; the (B*T, D) reshape is free in XLA.
    x2 = x.reshape(B * T, D)

    def _const_spec(shape, pm):
        nd = len(shape)
        if pm is None:
            return pl.BlockSpec(shape, lambda b, _n=nd: (0,) * _n)
        return pl.BlockSpec(shape, lambda b, _n=nd: (0,) * _n, pipeline_mode=pm)

    def _call(use_buffered):
        # Constant operands never change block index; Buffered(1) avoids a
        # second (double-buffer) VMEM copy of each weight.
        pm = pl.Buffered(1) if use_buffered else None
        grid_spec = pltpu.PrefetchScalarGridSpec(
            num_scalar_prefetch=0,
            grid=grid,
            in_specs=[
                pl.BlockSpec((M, D), lambda b: (b, 0)),   # x rows of this block
                _const_spec(w1.shape, pm), _const_spec(b1.shape, pm),
                _const_spec(w_dw.shape, pm), _const_spec(b_dw.shape, pm),
                _const_spec(w2.shape, pm), _const_spec(b2.shape, pm),
            ],
            out_specs=pl.BlockSpec((M, D), lambda b: (b, 0)),
            scratch_shapes=[pltpu.VMEM((Bb, L, D), dw_dtype)],
        )
        return pl.pallas_call(
            conv_module_kernel,
            out_shape=jax.ShapeDtypeStruct((B * T, D), x.dtype),
            grid_spec=grid_spec,
            compiler_params=pltpu.CompilerParams(
                dimension_semantics=("parallel",),
                vmem_limit_bytes=vmem_limit),
        )(x2, w1, b1, w_dw, b_dw, w2, b2)

    try:
        out2 = _call(True)
    except Exception:
        # pipeline_mode=pl.Buffered(1) unsupported on this version -> plain specs
        out2 = _call(False)
    return out2.reshape(B, T, D)


def reference_forward(x, params):
    """Pure-JAX fp32 reference matching the PyTorch module (eval mode)."""
    B, T, D = x.shape
    K = params["w_dw"].shape[0]
    pad = K // 2
    x_res = x
    mean = x.mean(-1, keepdims=True)
    var = ((x - mean) ** 2).mean(-1, keepdims=True)
    xn = (x - mean) / jnp.sqrt(var + 1e-5) * params["ln_g"][0] + params["ln_b"][0]
    y = xn @ params["w1t"] + params["b1"][0]
    z = y[..., :D] * jax.nn.sigmoid(y[..., D:])
    zp = jnp.pad(z, ((0, 0), (pad, pad), (0, 0)))
    acc = jnp.zeros_like(z)
    for k in range(K):
        acc = acc + zp[:, k:k + T, :] * params["w_dw"][k]
    z = acc + params["b_dw"][0]
    z = z * params["bn_scale"][0] + params["bn_shift"][0]
    z = z * jax.nn.sigmoid(z)
    out = z @ params["w2t"] + params["b2"][0]
    return out + x_res


def init_params(key, D, K):
    """Deterministic synthetic parameters matching the PyTorch module shapes."""
    ks = jax.random.split(key, 12)
    s = 0.05
    # LayerNorm(D)
    ln_g = 1.0 + s * jax.random.normal(ks[0], (1, D), jnp.float32)
    ln_b = s * jax.random.normal(ks[1], (1, D), jnp.float32)
    # pointwise_conv1: Conv1d(D, 2D, 1) -> weight (2D, D, 1); we pass W.T (D, 2D)
    w1t = s * jax.random.normal(ks[2], (D, 2 * D), jnp.float32)
    b1 = s * jax.random.normal(ks[3], (1, 2 * D), jnp.float32)
    # depthwise_conv: Conv1d(D, D, K, groups=D) -> weight (D, 1, K); pass (K, D)
    w_dw = s * jax.random.normal(ks[4], (K, D), jnp.float32)
    b_dw = s * jax.random.normal(ks[5], (1, D), jnp.float32)
    # BatchNorm1d(D) eval-mode: fold (gamma, beta, running_mean, running_var)
    bn_gamma = 1.0 + s * jax.random.normal(ks[6], (1, D), jnp.float32)
    bn_beta = s * jax.random.normal(ks[7], (1, D), jnp.float32)
    bn_mean = s * jax.random.normal(ks[8], (1, D), jnp.float32)
    bn_var = 1.0 + 0.1 * jax.nn.softplus(jax.random.normal(ks[9], (1, D), jnp.float32))
    bn_eps = 1e-5
    bn_scale = bn_gamma / jnp.sqrt(bn_var + bn_eps)
    bn_shift = bn_beta - bn_mean * bn_scale
    # pointwise_conv2: Conv1d(D, D, 1) -> weight (D, D, 1); we pass W.T (D, D)
    w2t = s * jax.random.normal(ks[10], (D, D), jnp.float32)
    b2 = s * jax.random.normal(ks[11], (1, D), jnp.float32)
    return dict(ln_g=ln_g, ln_b=ln_b, w1t=w1t, b1=b1, w_dw=w_dw, b_dw=b_dw,
                bn_scale=bn_scale, bn_shift=bn_shift, w2t=w2t, b2=b2)


if __name__ == "__main__":
    # Small shapes consistent with the module's forward: x is (batch, seq, embed_dim).
    B, T, D = 2, 64, 128
    K = 31  # module default kernel_size

    key = jax.random.PRNGKey(0)
    k_x, k_p = jax.random.split(key)
    x = jax.random.normal(k_x, (B, T, D), jnp.float32)
    params = init_params(k_p, D, K)

    out = jax.block_until_ready(conv_module_forward(x, params))
    ref = jax.block_until_ready(reference_forward(x, params))
    # bf16 MXU operands (and bf16 depthwise on v6e/v7x) -> loose-ish tolerance.
    np.testing.assert_allclose(np.asarray(out), np.asarray(ref), rtol=2e-2, atol=2e-2)

    print("KERNEL_OK")
</pallas_src>

<mosaic_0001>
module attributes {stable_mosaic.version = 11 : i64} {
  func.func @conv_module_kernel(%arg0: i32, %arg1: memref<64x128xf32, #tpu.memory_space<vmem>>, %arg2: memref<128x256xbf16, #tpu.memory_space<vmem>>, %arg3: memref<1x256xf32, #tpu.memory_space<vmem>>, %arg4: memref<31x128xf32, #tpu.memory_space<vmem>>, %arg5: memref<1x128xf32, #tpu.memory_space<vmem>>, %arg6: memref<128x128xbf16, #tpu.memory_space<vmem>>, %arg7: memref<1x128xf32, #tpu.memory_space<vmem>>, %arg8: memref<64x128xf32, #tpu.memory_space<vmem>>, %arg9: memref<1x96x128xf32, #tpu.memory_space<vmem>>) attributes {dimension_semantics = [#tpu.dimension_semantics<parallel>], iteration_bounds = array<i64: 2>, scalar_prefetch = 0 : i64, scratch_operands = 1 : i64, tpu.core_type = #tpu.core_type<tc>, window_params = [{transform_indices = @transform_0, window_bounds = array<i64: 64, 128>}, {pipeline_mode = #tpu.pipeline_mode<synchronous>, transform_indices = @transform_1, window_bounds = array<i64: 128, 256>}, {pipeline_mode = #tpu.pipeline_mode<synchronous>, transform_indices = @transform_2, window_bounds = array<i64: 1, 256>}, {pipeline_mode = #tpu.pipeline_mode<synchronous>, transform_indices = @transform_3, window_bounds = array<i64: 31, 128>}, {pipeline_mode = #tpu.pipeline_mode<synchronous>, transform_indices = @transform_4, window_bounds = array<i64: 1, 128>}, {pipeline_mode = #tpu.pipeline_mode<synchronous>, transform_indices = @transform_5, window_bounds = array<i64: 128, 128>}, {pipeline_mode = #tpu.pipeline_mode<synchronous>, transform_indices = @transform_6, window_bounds = array<i64: 1, 128>}, {transform_indices = @transform_7, window_bounds = array<i64: 64, 128>}]} {
    %c0 = arith.constant 0 : index
    %c0_0 = arith.constant 0 : index
    %0 = vector.load %arg1[%c0, %c0_0] : memref<64x128xf32, #tpu.memory_space<vmem>>, vector<64x128xf32>
    %cst = arith.constant dense<0.000000e+00> : vector<64xf32>
    %1 = vector.multi_reduction <add>, %0, %cst [1] : vector<64x128xf32> to vector<64xf32>
    %2 = vector.shape_cast %1 : vector<64xf32> to vector<64x1xf32>
    %cst_1 = arith.constant 1.280000e+02 : f32
    %3 = vector.broadcast %cst_1 : f32 to vector<64x1xf32>
    %4 = arith.divf %2, %3 : vector<64x1xf32>
    %5 = vector.broadcast %4 : vector<64x1xf32> to vector<64x128xf32>
    %6 = arith.subf %0, %5 : vector<64x128xf32>
    %7 = arith.mulf %6, %6 : vector<64x128xf32>
    %cst_2 = arith.constant dense<0.000000e+00> : vector<64xf32>
    %8 = vector.multi_reduction <add>, %7, %cst_2 [1] : vector<64x128xf32> to vector<64xf32>
    %9 = vector.shape_cast %8 : vector<64xf32> to vector<64x1xf32>
    %cst_3 = arith.constant 1.280000e+02 : f32
    %10 = vector.broadcast %cst_3 : f32 to vector<64x1xf32>
    %11 = arith.divf %9, %10 : vector<64x1xf32>
    %cst_4 = arith.constant 9.99999974E-6 : f32
    %12 = vector.broadcast %cst_4 : f32 to vector<64x1xf32>
    %13 = arith.addf %11, %12 : vector<64x1xf32>
    %14 = math.rsqrt %13 : vector<64x1xf32>
    %15 = vector.broadcast %14 : vector<64x1xf32> to vector<64x128xf32>
    %16 = arith.mulf %6, %15 : vector<64x128xf32>
    %17 = arith.truncf %16 : vector<64x128xf32> to vector<64x128xbf16>
    %c0_5 = arith.constant 0 : index
    %c0_6 = arith.constant 0 : index
    %18 = vector.load %arg2[%c0_5, %c0_6] : memref<128x256xbf16, #tpu.memory_space<vmem>>, vector<128x256xbf16>
    %cst_7 = arith.constant dense<0.000000e+00> : vector<64x256xf32>
    %19 = tpu.matmul %17, %18, %cst_7 {dimension_numbers = #tpu.dot_dimension_numbers<[1], [0], [0], [1], [0, 0, 1, 1], [], []>} : vector<64x128xbf16>, vector<128x256xbf16>, vector<64x256xf32> -> vector<64x256xf32>
    %c0_8 = arith.constant 0 : index
    %c0_9 = arith.constant 0 : index
    %20 = vector.load %arg3[%c0_8, %c0_9] : memref<1x256xf32, #tpu.memory_space<vmem>>, vector<1x256xf32>
    %21 = vector.broadcast %20 : vector<1x256xf32> to vector<64x256xf32>
    %22 = arith.addf %19, %21 : vector<64x256xf32>
    %23 = vector.extract_strided_slice %22 {offsets = [0, 0], sizes = [64, 128], strides = [1, 1]} : vector<64x256xf32> to vector<64x128xf32>
    %24 = vector.extract_strided_slice %22 {offsets = [0, 128], sizes = [64, 128], strides = [1, 1]} : vector<64x256xf32> to vector<64x128xf32>
    %25 = arith.negf %24 : vector<64x128xf32>
    %26 = math.exp %25 : vector<64x128xf32>
    %cst_10 = arith.constant 1.000000e+00 : f32
    %27 = vector.broadcast %cst_10 : f32 to vector<64x128xf32>
    %28 = arith.addf %27, %26 : vector<64x128xf32>
    %29 = arith.divf %27, %28 : vector<64x128xf32>
    %30 = arith.mulf %23, %29 : vector<64x128xf32>
    %c0_11 = arith.constant 0 : index
    %c0_12 = arith.constant 0 : index
    %31 = vector.load %arg4[%c0_11, %c0_12] : memref<31x128xf32, #tpu.memory_space<vmem>>, vector<31x128xf32>
    %cst_13 = arith.constant 0.000000e+00 : f32
    %32 = vector.broadcast %cst_13 : f32 to vector<1x16x128xf32>
    %c0_14 = arith.constant 0 : index
    %c0_15 = arith.constant 0 : index
    %c0_16 = arith.constant 0 : index
    %33 = vector.load %arg9[%c0_14, %c0_15, %c0_16] : memref<1x96x128xf32, #tpu.memory_space<vmem>>, vector<1x16x128xf32>
    tpu.vector_store %arg9[%c0_14, %c0_15, %c0_16], %32 {strides = array<i32>} : memref<1x96x128xf32, #tpu.memory_space<vmem>>, vector<1x16x128xf32>,
    %cst_17 = arith.constant 0.000000e+00 : f32
    %34 = vector.broadcast %cst_17 : f32 to vector<1x16x128xf32>
    %c0_18 = arith.constant 0 : index
    %c80 = arith.constant 80 : index
    %c0_19 = arith.constant 0 : index
    %35 = vector.load %arg9[%c0_18, %c80, %c0_19] : memref<1x96x128xf32, #tpu.memory_space<vmem>>, vector<1x16x128xf32>
    tpu.vector_store %arg9[%c0_18, %c80, %c0_19], %34 {strides = array<i32>} : memref<1x96x128xf32, #tpu.memory_space<vmem>>, vector<1x16x128xf32>,
    %36 = vector.shape_cast %30 : vector<64x128xf32> to vector<1x64x128xf32>
    %c0_20 = arith.constant 0 : index
    %c16 = arith.constant 16 : index
    %c0_21 = arith.constant 0 : index
    %37 = vector.load %arg9[%c0_20, %c16, %c0_21] : memref<1x96x128xf32, #tpu.memory_space<vmem>>, vector<1x64x128xf32>
    tpu.vector_store %arg9[%c0_20, %c16, %c0_21], %36 {strides = array<i32>} : memref<1x96x128xf32, #tpu.memory_space<vmem>>, vector<1x64x128xf32>,
    %c0_22 = arith.constant 0 : index
    %c8 = arith.constant 8 : index
    %c0_23 = arith.constant 0 : index
    %38 = vector.load %arg9[%c0_22, %c8, %c0_23] : memref<1x96x128xf32, #tpu.memory_space<vmem>>, vector<1x72x128xf32>
    %39 = vector.extract_strided_slice %31 {offsets = [7, 0], sizes = [1, 128], strides = [1, 1]} : vector<31x128xf32> to vector<1x128xf32>
    %40 = vector.shape_cast %39 : vector<1x128xf32> to vector<1x1x128xf32>
    %41 = vector.broadcast %40 : vector<1x1x128xf32> to vector<1x72x128xf32>
    %42 = arith.mulf %38, %41 : vector<1x72x128xf32>
    %c0_24 = arith.constant 0 : index
    %c16_25 = arith.constant 16 : index
    %c0_26 = arith.constant 0 : index
    %43 = vector.load %arg9[%c0_24, %c16_25, %c0_26] : memref<1x96x128xf32, #tpu.memory_space<vmem>>, vector<1x72x128xf32>
    %44 = vector.extract_strided_slice %31 {offsets = [15, 0], sizes = [1, 128], strides = [1, 1]} : vector<31x128xf32> to vector<1x128xf32>
    %45 = vector.shape_cast %44 : vector<1x128xf32> to vector<1x1x128xf32>
    %46 = vector.broadcast %45 : vector<1x1x128xf32> to vector<1x72x128xf32>
    %47 = arith.mulf %43, %46 : vector<1x72x128xf32>
    %48 = arith.addf %42, %47 : vector<1x72x128xf32>
    %c0_27 = arith.constant 0 : index
    %c24 = arith.constant 24 : index
    %c0_28 = arith.constant 0 : index
    %49 = vector.load %arg9[%c0_27, %c24, %c0_28] : memref<1x96x128xf32, #tpu.memory_space<vmem>>, vector<1x72x128xf32>
    %50 = vector.extract_strided_slice %31 {offsets = [23, 0], sizes = [1, 128], strides = [1, 1]} : vector<31x128xf32> to vector<1x128xf32>
    %51 = vector.shape_cast %50 : vector<1x128xf32> to vector<1x1x128xf32>
    %52 = vector.broadcast %51 : vector<1x1x128xf32> to vector<1x72x128xf32>
    %53 = arith.mulf %49, %52 : vector<1x72x128xf32>
    %54 = arith.addf %48, %53 : vector<1x72x128xf32>
    %55 = vector.extract_strided_slice %54 {offsets = [0, 0, 0], sizes = [1, 64, 128], strides = [1, 1, 1]} : vector<1x72x128xf32> to vector<1x64x128xf32>
    %c0_29 = arith.constant 0 : index
    %c0_30 = arith.constant 0 : index
    %c0_31 = arith.constant 0 : index
    %56 = vector.load %arg9[%c0_29, %c0_30, %c0_31] : memref<1x96x128xf32, #tpu.memory_space<vmem>>, vector<1x72x128xf32>
    %57 = vector.extract_strided_slice %31 {offsets = [0, 0], sizes = [1, 128], strides = [1, 1]} : vector<31x128xf32> to vector<1x128xf32>
    %58 = vector.shape_cast %57 : vector<1x128xf32> to vector<1x1x128xf32>
    %59 = vector.broadcast %58 : vector<1x1x128xf32> to vector<1x72x128xf32>
    %60 = arith.mulf %56, %59 : vector<1x72x128xf32>
    %c0_32 = arith.constant 0 : index
    %c8_33 = arith.constant 8 : index
    %c0_34 = arith.constant 0 : index
    %61 = vector.load %arg9[%c0_32, %c8_33, %c0_34] : memref<1x96x128xf32, #tpu.memory_space<vmem>>, vector<1x72x128xf32>
    %62 = vector.extract_strided_slice %31 {offsets = [8, 0], sizes = [1, 128], strides = [1, 1]} : vector<31x128xf32> to vector<1x128xf32>
    %63 = vector.shape_cast %62 : vector<1x128xf32> to vector<1x1x128xf32>
    %64 = vector.broadcast %63 : vector<1x1x128xf32> to vector<1x72x128xf32>
    %65 = arith.mulf %61, %64 : vector<1x72x128xf32>
    %66 = arith.addf %60, %65 : vector<1x72x128xf32>
    %c0_35 = arith.constant 0 : index
    %c16_36 = arith.constant 16 : index
    %c0_37 = arith.constant 0 : index
    %67 = vector.load %arg9[%c0_35, %c16_36, %c0_37] : memref<1x96x128xf32, #tpu.memory_space<vmem>>, vector<1x72x128xf32>
    %68 = vector.extract_strided_slice %31 {offsets = [16, 0], sizes = [1, 128], strides = [1, 1]} : vector<31x128xf32> to vector<1x128xf32>
    %69 = vector.shape_cast %68 : vector<1x128xf32> to vector<1x1x128xf32>
    %70 = vector.broadcast %69 : vector<1x1x128xf32> to vector<1x72x128xf32>
    %71 = arith.mulf %67, %70 : vector<1x72x128xf32>
    %72 = arith.addf %66, %71 : vector<1x72x128xf32>
    %c0_38 = arith.constant 0 : index
    %c24_39 = arith.constant 24 : index
    %c0_40 = arith.constant 0 : index
    %73 = vector.load %arg9[%c0_38, %c24_39, %c0_40] : memref<1x96x128xf32, #tpu.memory_space<vmem>>, vector<1x72x128xf32>
    %74 = vector.extract_strided_slice %31 {offsets = [24, 0], sizes = [1, 128], strides = [1, 1]} : vector<31x128xf32> to vector<1x128xf32>
    %75 = vector.shape_cast %74 : vector<1x128xf32> to vector<1x1x128xf32>
    %76 = vector.broadcast %75 : vector<1x1x128xf32> to vector<1x72x128xf32>
    %77 = arith.mulf %73, %76 : vector<1x72x128xf32>
    %78 = arith.addf %72, %77 : vector<1x72x128xf32>
    %79 = vector.extract_strided_slice %78 {offsets = [0, 1, 0], sizes = [1, 64, 128], strides = [1, 1, 1]} : vector<1x72x128xf32> to vector<1x64x128xf32>
    %80 = arith.addf %55, %79 : vector<1x64x128xf32>
    %c0_41 = arith.constant 0 : index
    %c0_42 = arith.constant 0 : index
    %c0_43 = arith.constant 0 : index
    %81 = vector.load %arg9[%c0_41, %c0_42, %c0_43] : memref<1x96x128xf32, #tpu.memory_space<vmem>>, vector<1x72x128xf32>
    %82 = vector.extract_strided_slice %31 {offsets = [1, 0], sizes = [1, 128], strides = [1, 1]} : vector<31x128xf32> to vector<1x128xf32>
    %83 = vector.shape_cast %82 : vector<1x128xf32> to vector<1x1x128xf32>
    %84 = vector.broadcast %83 : vector<1x1x128xf32> to vector<1x72x128xf32>
    %85 = arith.mulf %81, %84 : vector<1x72x128xf32>
    %c0_44 = arith.constant 0 : index
    %c8_45 = arith.constant 8 : index
    %c0_46 = arith.constant 0 : index
    %86 = vector.load %arg9[%c0_44, %c8_45, %c0_46] : memref<1x96x128xf32, #tpu.memory_space<vmem>>, vector<1x72x128xf32>
    %87 = vector.extract_strided_slice %31 {offsets = [9, 0], sizes = [1, 128], strides = [1, 1]} : vector<31x128xf32> to vector<1x128xf32>
    %88 = vector.shape_cast %87 : vector<1x128xf32> to vector<1x1x128xf32>
    %89 = vector.broadcast %88 : vector<1x1x128xf32> to vector<1x72x128xf32>
    %90 = arith.mulf %86, %89 : vector<1x72x128xf32>
    %91 = arith.addf %85, %90 : vector<1x72x128xf32>
    %c0_47 = arith.constant 0 : index
    %c16_48 = arith.constant 16 : index
    %c0_49 = arith.constant 0 : index
    %92 = vector.load %arg9[%c0_47, %c16_48, %c0_49] : memref<1x96x128xf32, #tpu.memory_space<vmem>>, vector<1x72x128xf32>
    %93 = vector.extract_strided_slice %31 {offsets = [17, 0], sizes = [1, 128], strides = [1, 1]} : vector<31x128xf32> to vector<1x128xf32>
    %94 = vector.shape_cast %93 : vector<1x128xf32> to vector<1x1x128xf32>
    %95 = vector.broadcast %94 : vector<1x1x128xf32> to vector<1x72x128xf32>
    %96 = arith.mulf %92, %95 : vector<1x72x128xf32>
    %97 = arith.addf %91, %96 : vector<1x72x128xf32>
    %c0_50 = arith.constant 0 : index
    %c24_51 = arith.constant 24 : index
    %c0_52 = arith.constant 0 : index
    %98 = vector.load %arg9[%c0_50, %c24_51, %c0_52] : memref<1x96x128xf32, #tpu.memory_space<vmem>>, vector<1x72x128xf32>
    %99 = vector.extract_strided_slice %31 {offsets = [25, 0], sizes = [1, 128], strides = [1, 1]} : vector<31x128xf32> to vector<1x128xf32>
    %100 = vector.shape_cast %99 : vector<1x128xf32> to vector<1x1x128xf32>
    %101 = vector.broadcast %100 : vector<1x1x128xf32> to vector<1x72x128xf32>
    %102 = arith.mulf %98, %101 : vector<1x72x128xf32>
    %103 = arith.addf %97, %102 : vector<1x72x128xf32>
    %104 = vector.extract_strided_slice %103 {offsets = [0, 2, 0], sizes = [1, 64, 128], strides = [1, 1, 1]} : vector<1x72x128xf32> to vector<1x64x128xf32>
    %105 = arith.addf %80, %104 : vector<1x64x128xf32>
    %c0_53 = arith.constant 0 : index
    %c0_54 = arith.constant 0 : index
    %c0_55 = arith.constant 0 : index
    %106 = vector.load %arg9[%c0_53, %c0_54, %c0_55] : memref<1x96x128xf32, #tpu.memory_space<vmem>>, vector<1x72x128xf32>
    %107 = vector.extract_strided_slice %31 {offsets = [2, 0], sizes = [1, 128], strides = [1, 1]} : vector<31x128xf32> to vector<1x128xf32>
    %108 = vector.shape_cast %107 : vector<1x128xf32> to vector<1x1x128xf32>
    %109 = vector.broadcast %108 : vector<1x1x128xf32> to vector<1x72x128xf32>
    %110 = arith.mulf %106, %109 : vector<1x72x128xf32>
    %c0_56 = arith.constant 0 : index
    %c8_57 = arith.constant 8 : index
    %c0_58 = arith.constant 0 : index
    %111 = vector.load %arg9[%c0_56, %c8_57, %c0_58] : memref<1x96x128xf32, #tpu.memory_space<vmem>>, vector<1x72x128xf32>
    %112 = vector.extract_strided_slice %31 {offsets = [10, 0], sizes = [1, 128], strides = [1, 1]} : vector<31x128xf32> to vector<1x128xf32>
    %113 = vector.shape_cast %112 : vector<1x128xf32> to vector<1x1x128xf32>
    %114 = vector.broadcast %113 : vector<1x1x128xf32> to vector<1x72x128xf32>
    %115 = arith.mulf %111, %114 : vector<1x72x128xf32>
    %116 = arith.addf %110, %115 : vector<1x72x128xf32>
    %c0_59 = arith.constant 0 : index
    %c16_60 = arith.constant 16 : index
    %c0_61 = arith.constant 0 : index
    %117 = vector.load %arg9[%c0_59, %c16_60, %c0_61] : memref<1x96x128xf32, #tpu.memory_space<vmem>>, vector<1x72x128xf32>
    %118 = vector.extract_strided_slice %31 {offsets = [18, 0], sizes = [1, 128], strides = [1, 1]} : vector<31x128xf32> to vector<1x128xf32>
    %119 = vector.shape_cast %118 : vector<1x128xf32> to vector<1x1x128xf32>
    %120 = vector.broadcast %119 : vector<1x1x128xf32> to vector<1x72x128xf32>
    %121 = arith.mulf %117, %120 : vector<1x72x128xf32>
    %122 = arith.addf %116, %121 : vector<1x72x128xf32>
    %c0_62 = arith.constant 0 : index
    %c24_63 = arith.constant 24 : index
    %c0_64 = arith.constant 0 : index
    %123 = vector.load %arg9[%c0_62, %c24_63, %c0_64] : memref<1x96x128xf32, #tpu.memory_space<vmem>>, vector<1x72x128xf32>
    %124 = vector.extract_strided_slice %31 {offsets = [26, 0], sizes = [1, 128], strides = [1, 1]} : vector<31x128xf32> to vector<1x128xf32>
    %125 = vector.shape_cast %124 : vector<1x128xf32> to vector<1x1x128xf32>
    %126 = vector.broadcast %125 : vector<1x1x128xf32> to vector<1x72x128xf32>
    %127 = arith.mulf %123, %126 : vector<1x72x128xf32>
    %128 = arith.addf %122, %127 : vector<1x72x128xf32>
    %129 = vector.extract_strided_slice %128 {offsets = [0, 3, 0], sizes = [1, 64, 128], strides = [1, 1, 1]} : vector<1x72x128xf32> to vector<1x64x128xf32>
    %130 = arith.addf %105, %129 : vector<1x64x128xf32>
    %c0_65 = arith.constant 0 : index
    %c0_66 = arith.constant 0 : index
    %c0_67 = arith.constant 0 : index
    %131 = vector.load %arg9[%c0_65, %c0_66, %c0_67] : memref<1x96x128xf32, #tpu.memory_space<vmem>>, vector<1x72x128xf32>
    %132 = vector.extract_strided_slice %31 {offsets = [3, 0], sizes = [1, 128], strides = [1, 1]} : vector<31x128xf32> to vector<1x128xf32>
    %133 = vector.shape_cast %132 : vector<1x128xf32> to vector<1x1x128xf32>
    %134 = vector.broadcast %133 : vector<1x1x128xf32> to vector<1x72x128xf32>
    %135 = arith.mulf %131, %134 : vector<1x72x128xf32>
    %c0_68 = arith.constant 0 : index
    %c8_69 = arith.constant 8 : index
    %c0_70 = arith.constant 0 : index
    %136 = vector.load %arg9[%c0_68, %c8_69, %c0_70] : memref<1x96x128xf32, #tpu.memory_space<vmem>>, vector<1x72x128xf32>
    %137 = vector.extract_strided_slice %31 {offsets = [11, 0], sizes = [1, 128], strides = [1, 1]} : vector<31x128xf32> to vector<1x128xf32>
    %138 = vector.shape_cast %137 : vector<1x128xf32> to vector<1x1x128xf32>
    %139 = vector.broadcast %138 : vector<1x1x128xf32> to vector<1x72x128xf32>
    %140 = arith.mulf %136, %139 : vector<1x72x128xf32>
    %141 = arith.addf %135, %140 : vector<1x72x128xf32>
    %c0_71 = arith.constant 0 : index
    %c16_72 = arith.constant 16 : index
    %c0_73 = arith.constant 0 : index
    %142 = vector.load %arg9[%c0_71, %c16_72, %c0_73] : memref<1x96x128xf32, #tpu.memory_space<vmem>>, vector<1x72x128xf32>
    %143 = vector.extract_strided_slice %31 {offsets = [19, 0], sizes = [1, 128], strides = [1, 1]} : vector<31x128xf32> to vector<1x128xf32>
    %144 = vector.shape_cast %143 : vector<1x128xf32> to vector<1x1x128xf32>
    %145 = vector.broadcast %144 : vector<1x1x128xf32> to vector<1x72x128xf32>
    %146 = arith.mulf %142, %145 : vector<1x72x128xf32>
    %147 = arith.addf %141, %146 : vector<1x72x128xf32>
    %c0_74 = arith.constant 0 : index
    %c24_75 = arith.constant 24 : index
    %c0_76 = arith.constant 0 : index
    %148 = vector.load %arg9[%c0_74, %c24_75, %c0_76] : memref<1x96x128xf32, #tpu.memory_space<vmem>>, vector<1x72x128xf32>
    %149 = vector.extract_strided_slice %31 {offsets = [27, 0], sizes = [1, 128], strides = [1, 1]} : vector<31x128xf32> to vector<1x128xf32>
    %150 = vector.shape_cast %149 : vector<1x128xf32> to vector<1x1x128xf32>
    %151 = vector.broadcast %150 : vector<1x1x128xf32> to vector<1x72x128xf32>
    %152 = arith.mulf %148, %151 : vector<1x72x128xf32>
    %153 = arith.addf %147, %152 : vector<1x72x128xf32>
    %154 = vector.extract_strided_slice %153 {offsets = [0, 4, 0], sizes = [1, 64, 128], strides = [1, 1, 1]} : vector<1x72x128xf32> to vector<1x64x128xf32>
    %155 = arith.addf %130, %154 : vector<1x64x128xf32>
    %c0_77 = arith.constant 0 : index
    %c0_78 = arith.constant 0 : index
    %c0_79 = arith.constant 0 : index
    %156 = vector.load %arg9[%c0_77, %c0_78, %c0_79] : memref<1x96x128xf32, #tpu.memory_space<vmem>>, vector<1x72x128xf32>
    %157 = vector.extract_strided_slice %31 {offsets = [4, 0], sizes = [1, 128], strides = [1, 1]} : vector<31x128xf32> to vector<1x128xf32>
    %158 = vector.shape_cast %157 : vector<1x128xf32> to vector<1x1x128xf32>
    %159 = vector.broadcast %158 : vector<1x1x128xf32> to vector<1x72x128xf32>
    %160 = arith.mulf %156, %159 : vector<1x72x128xf32>
    %c0_80 = arith.constant 0 : index
    %c8_81 = arith.constant 8 : index
    %c0_82 = arith.constant 0 : index
    %161 = vector.load %arg9[%c0_80, %c8_81, %c0_82] : memref<1x96x128xf32, #tpu.memory_space<vmem>>, vector<1x72x128xf32>
    %162 = vector.extract_strided_slice %31 {offsets = [12, 0], sizes = [1, 128], strides = [1, 1]} : vector<31x128xf32> to vector<1x128xf32>
    %163 = vector.shape_cast %162 : vector<1x128xf32> to vector<1x1x128xf32>
    %164 = vector.broadcast %163 : vector<1x1x128xf32> to vector<1x72x128xf32>
    %165 = arith.mulf %161, %164 : vector<1x72x128xf32>
    %166 = arith.addf %160, %165 : vector<1x72x128xf32>
    %c0_83 = arith.constant 0 : index
    %c16_84 = arith.constant 16 : index
    %c0_85 = arith.constant 0 : index
    %167 = vector.load %arg9[%c0_83, %c16_84, %c0_85] : memref<1x96x128xf32, #tpu.memory_space<vmem>>, vector<1x72x128xf32>
    %168 = vector.extract_strided_slice %31 {offsets = [20, 0], sizes = [1, 128], strides = [1, 1]} : vector<31x128xf32> to vector<1x128xf32>
    %169 = vector.shape_cast %168 : vector<1x128xf32> to vector<1x1x128xf32>
    %170 = vector.broadcast %169 : vector<1x1x128xf32> to vector<1x72x128xf32>
    %171 = arith.mulf %167, %170 : vector<1x72x128xf32>
    %172 = arith.addf %166, %171 : vector<1x72x128xf32>
    %c0_86 = arith.constant 0 : index
    %c24_87 = arith.constant 24 : index
    %c0_88 = arith.constant 0 : index
    %173 = vector.load %arg9[%c0_86, %c24_87, %c0_88] : memref<1x96x128xf32, #tpu.memory_space<vmem>>, vector<1x72x128xf32>
    %174 = vector.extract_strided_slice %31 {offsets = [28, 0], sizes = [1, 128], strides = [1, 1]} : vector<31x128xf32> to vector<1x128xf32>
    %175 = vector.shape_cast %174 : vector<1x128xf32> to vector<1x1x128xf32>
    %176 = vector.broadcast %175 : vector<1x1x128xf32> to vector<1x72x128xf32>
    %177 = arith.mulf %173, %176 : vector<1x72x128xf32>
    %178 = arith.addf %172, %177 : vector<1x72x128xf32>
    %179 = vector.extract_strided_slice %178 {offsets = [0, 5, 0], sizes = [1, 64, 128], strides = [1, 1, 1]} : vector<1x72x128xf32> to vector<1x64x128xf32>
    %180 = arith.addf %155, %179 : vector<1x64x128xf32>
    %c0_89 = arith.constant 0 : index
    %c0_90 = arith.constant 0 : index
    %c0_91 = arith.constant 0 : index
    %181 = vector.load %arg9[%c0_89, %c0_90, %c0_91] : memref<1x96x128xf32, #tpu.memory_space<vmem>>, vector<1x72x128xf32>
    %182 = vector.extract_strided_slice %31 {offsets = [5, 0], sizes = [1, 128], strides = [1, 1]} : vector<31x128xf32> to vector<1x128xf32>
    %183 = vector.shape_cast %182 : vector<1x128xf32> to vector<1x1x128xf32>
    %184 = vector.broadcast %183 : vector<1x1x128xf32> to vector<1x72x128xf32>
    %185 = arith.mulf %181, %184 : vector<1x72x128xf32>
    %c0_92 = arith.constant 0 : index
    %c8_93 = arith.constant 8 : index
    %c0_94 = arith.constant 0 : index
    %186 = vector.load %arg9[%c0_92, %c8_93, %c0_94] : memref<1x96x128xf32, #tpu.memory_space<vmem>>, vector<1x72x128xf32>
    %187 = vector.extract_strided_slice %31 {offsets = [13, 0], sizes = [1, 128], strides = [1, 1]} : vector<31x128xf32> to vector<1x128xf32>
    %188 = vector.shape_cast %187 : vector<1x128xf32> to vector<1x1x128xf32>
    %189 = vector.broadcast %188 : vector<1x1x128xf32> to vector<1x72x128xf32>
    %190 = arith.mulf %186, %189 : vector<1x72x128xf32>
    %191 = arith.addf %185, %190 : vector<1x72x128xf32>
    %c0_95 = arith.constant 0 : index
    %c16_96 = arith.constant 16 : index
    %c0_97 = arith.constant 0 : index
    %192 = vector.load %arg9[%c0_95, %c16_96, %c0_97] : memref<1x96x128xf32, #tpu.memory_space<vmem>>, vector<1x72x128xf32>
    %193 = vector.extract_strided_slice %31 {offsets = [21, 0], sizes = [1, 128], strides = [1, 1]} : vector<31x128xf32> to vector<1x128xf32>
    %194 = vector.shape_cast %193 : vector<1x128xf32> to vector<1x1x128xf32>
    %195 = vector.broadcast %194 : vector<1x1x128xf32> to vector<1x72x128xf32>
    %196 = arith.mulf %192, %195 : vector<1x72x128xf32>
    %197 = arith.addf %191, %196 : vector<1x72x128xf32>
    %c0_98 = arith.constant 0 : index
    %c24_99 = arith.constant 24 : index
    %c0_100 = arith.constant 0 : index
    %198 = vector.load %arg9[%c0_98, %c24_99, %c0_100] : memref<1x96x128xf32, #tpu.memory_space<vmem>>, vector<1x72x128xf32>
    %199 = vector.extract_strided_slice %31 {offsets = [29, 0], sizes = [1, 128], strides = [1, 1]} : vector<31x128xf32> to vector<1x128xf32>
    %200 = vector.shape_cast %199 : vector<1x128xf32> to vector<1x1x128xf32>
    %201 = vector.broadcast %200 : vector<1x1x128xf32> to vector<1x72x128xf32>
    %202 = arith.mulf %198, %201 : vector<1x72x128xf32>
    %203 = arith.addf %197, %202 : vector<1x72x128xf32>
    %204 = vector.extract_strided_slice %203 {offsets = [0, 6, 0], sizes = [1, 64, 128], strides = [1, 1, 1]} : vector<1x72x128xf32> to vector<1x64x128xf32>
    %205 = arith.addf %180, %204 : vector<1x64x128xf32>
    %c0_101 = arith.constant 0 : index
    %c0_102 = arith.constant 0 : index
    %c0_103 = arith.constant 0 : index
    %206 = vector.load %arg9[%c0_101, %c0_102, %c0_103] : memref<1x96x128xf32, #tpu.memory_space<vmem>>, vector<1x72x128xf32>
    %207 = vector.extract_strided_slice %31 {offsets = [6, 0], sizes = [1, 128], strides = [1, 1]} : vector<31x128xf32> to vector<1x128xf32>
    %208 = vector.shape_cast %207 : vector<1x128xf32> to vector<1x1x128xf32>
    %209 = vector.broadcast %208 : vector<1x1x128xf32> to vector<1x72x128xf32>
    %210 = arith.mulf %206, %209 : vector<1x72x128xf32>
    %c0_104 = arith.constant 0 : index
    %c8_105 = arith.constant 8 : index
    %c0_106 = arith.constant 0 : index
    %211 = vector.load %arg9[%c0_104, %c8_105, %c0_106] : memref<1x96x128xf32, #tpu.memory_space<vmem>>, vector<1x72x128xf32>
    %212 = vector.extract_strided_slice %31 {offsets = [14, 0], sizes = [1, 128], strides = [1, 1]} : vector<31x128xf32> to vector<1x128xf32>
    %213 = vector.shape_cast %212 : vector<1x128xf32> to vector<1x1x128xf32>
    %214 = vector.broadcast %213 : vector<1x1x128xf32> to vector<1x72x128xf32>
    %215 = arith.mulf %211, %214 : vector<1x72x128xf32>
    %216 = arith.addf %210, %215 : vector<1x72x128xf32>
    %c0_107 = arith.constant 0 : index
    %c16_108 = arith.constant 16 : index
    %c0_109 = arith.constant 0 : index
    %217 = vector.load %arg9[%c0_107, %c16_108, %c0_109] : memref<1x96x128xf32, #tpu.memory_space<vmem>>, vector<1x72x128xf32>
    %218 = vector.extract_strided_slice %31 {offsets = [22, 0], sizes = [1, 128], strides = [1, 1]} : vector<31x128xf32> to vector<1x128xf32>
    %219 = vector.shape_cast %218 : vector<1x128xf32> to vector<1x1x128xf32>
    %220 = vector.broadcast %219 : vector<1x1x128xf32> to vector<1x72x128xf32>
    %221 = arith.mulf %217, %220 : vector<1x72x128xf32>
    %222 = arith.addf %216, %221 : vector<1x72x128xf32>
    %c0_110 = arith.constant 0 : index
    %c24_111 = arith.constant 24 : index
    %c0_112 = arith.constant 0 : index
    %223 = vector.load %arg9[%c0_110, %c24_111, %c0_112] : memref<1x96x128xf32, #tpu.memory_space<vmem>>, vector<1x72x128xf32>
    %224 = vector.extract_strided_slice %31 {offsets = [30, 0], sizes = [1, 128], strides = [1, 1]} : vector<31x128xf32> to vector<1x128xf32>
    %225 = vector.shape_cast %224 : vector<1x128xf32> to vector<1x1x128xf32>
    %226 = vector.broadcast %225 : vector<1x1x128xf32> to vector<1x72x128xf32>
    %227 = arith.mulf %223, %226 : vector<1x72x128xf32>
    %228 = arith.addf %222, %227 : vector<1x72x128xf32>
    %229 = vector.extract_strided_slice %228 {offsets = [0, 7, 0], sizes = [1, 64, 128], strides = [1, 1, 1]} : vector<1x72x128xf32> to vector<1x64x128xf32>
    %230 = arith.addf %205, %229 : vector<1x64x128xf32>
    %c0_113 = arith.constant 0 : index
    %c0_114 = arith.constant 0 : index
    %231 = vector.load %arg5[%c0_113, %c0_114] : memref<1x128xf32, #tpu.memory_space<vmem>>, vector<1x128xf32>
    %232 = vector.shape_cast %231 : vector<1x128xf32> to vector<1x1x128xf32>
    %233 = vector.broadcast %232 : vector<1x1x128xf32> to vector<1x64x128xf32>
    %234 = arith.addf %230, %233 : vector<1x64x128xf32>
    %235 = arith.negf %234 : vector<1x64x128xf32>
    %236 = math.exp %235 : vector<1x64x128xf32>
    %cst_115 = arith.constant 1.000000e+00 : f32
    %237 = vector.broadcast %cst_115 : f32 to vector<1x64x128xf32>
    %238 = arith.addf %237, %236 : vector<1x64x128xf32>
    %239 = arith.divf %237, %238 : vector<1x64x128xf32>
    %240 = arith.mulf %234, %239 : vector<1x64x128xf32>
    %241 = vector.shape_cast %240 : vector<1x64x128xf32> to vector<64x128xf32>
    %242 = arith.truncf %241 : vector<64x128xf32> to vector<64x128xbf16>
    %c0_116 = arith.constant 0 : index
    %c0_117 = arith.constant 0 : index
    %243 = vector.load %arg6[%c0_116, %c0_117] : memref<128x128xbf16, #tpu.memory_space<vmem>>, vector<128x128xbf16>
    %cst_118 = arith.constant dense<0.000000e+00> : vector<64x128xf32>
    %244 = tpu.matmul %242, %243, %cst_118 {dimension_numbers = #tpu.dot_dimension_numbers<[1], [0], [0], [1], [0, 0, 1, 1], [], []>} : vector<64x128xbf16>, vector<128x128xbf16>, vector<64x128xf32> -> vector<64x128xf32>
    %c0_119 = arith.constant 0 : index
    %c0_120 = arith.constant 0 : index
    %245 = vector.load %arg7[%c0_119, %c0_120] : memref<1x128xf32, #tpu.memory_space<vmem>>, vector<1x128xf32>
    %246 = vector.broadcast %245 : vector<1x128xf32> to vector<64x128xf32>
    %247 = arith.addf %244, %246 : vector<64x128xf32>
    %c0_121 = arith.constant 0 : index
    %c0_122 = arith.constant 0 : index
    %248 = vector.load %arg1[%c0_121, %c0_122] : memref<64x128xf32, #tpu.memory_space<vmem>>, vector<64x128xf32>
    %249 = arith.addf %247, %248 : vector<64x128xf32>
    %c0_123 = arith.constant 0 : index
    %c0_124 = arith.constant 0 : index
    %250 = vector.load %arg8[%c0_123, %c0_124] : memref<64x128xf32, #tpu.memory_space<vmem>>, vector<64x128xf32>
    tpu.vector_store %arg8[%c0_123, %c0_124], %249 {strides = array<i32>} : memref<64x128xf32, #tpu.memory_space<vmem>>, vector<64x128xf32>,
    return
  }
  func.func @transform_0(%arg0: i32) -> (i32, i32) {
    %c0_i32 = arith.constant 0 : i32
    %c0_i32_0 = arith.constant 0 : i32
    return %arg0, %c0_i32 : i32, i32
  }
  func.func @transform_1(%arg0: i32) -> (i32, i32) {
    %c0_i32 = arith.constant 0 : i32
    %c0_i32_0 = arith.constant 0 : i32
    %c0_i32_1 = arith.constant 0 : i32
    return %c0_i32, %c0_i32_0 : i32, i32
  }
  func.func @transform_2(%arg0: i32) -> (i32, i32) {
    %c0_i32 = arith.constant 0 : i32
    %c0_i32_0 = arith.constant 0 : i32
    %c0_i32_1 = arith.constant 0 : i32
    return %c0_i32, %c0_i32_0 : i32, i32
  }
  func.func @transform_3(%arg0: i32) -> (i32, i32) {
    %c0_i32 = arith.constant 0 : i32
    %c0_i32_0 = arith.constant 0 : i32
    %c0_i32_1 = arith.constant 0 : i32
    return %c0_i32, %c0_i32_0 : i32, i32
  }
  func.func @transform_4(%arg0: i32) -> (i32, i32) {
    %c0_i32 = arith.constant 0 : i32
    %c0_i32_0 = arith.constant 0 : i32
    %c0_i32_1 = arith.constant 0 : i32
    return %c0_i32, %c0_i32_0 : i32, i32
  }
  func.func @transform_5(%arg0: i32) -> (i32, i32) {
    %c0_i32 = arith.constant 0 : i32
    %c0_i32_0 = arith.constant 0 : i32
    %c0_i32_1 = arith.constant 0 : i32
    return %c0_i32, %c0_i32_0 : i32, i32
  }
  func.func @transform_6(%arg0: i32) -> (i32, i32) {
    %c0_i32 = arith.constant 0 : i32
    %c0_i32_0 = arith.constant 0 : i32
    %c0_i32_1 = arith.constant 0 : i32
    return %c0_i32, %c0_i32_0 : i32, i32
  }
  func.func @transform_7(%arg0: i32) -> (i32, i32) {
    %c0_i32 = arith.constant 0 : i32
    %c0_i32_0 = arith.constant 0 : i32
    return %arg0, %c0_i32 : i32, i32
  }
}

module attributes {stable_mosaic.version = 11 : i64} {
  func.func @conv_module_kernel(%arg0: i32, %arg1: memref<64x128xf32, #tpu.memory_space<vmem>>, %arg2: memref<128x256xbf16, #tpu.memory_space<vmem>>, %arg3: memref<1x256xf32, #tpu.memory_space<vmem>>, %arg4: memref<31x128xf32, #tpu.memory_space<vmem>>, %arg5: memref<1x128xf32, #tpu.memory_space<vmem>>, %arg6: memref<128x128xbf16, #tpu.memory_space<vmem>>, %arg7: memref<1x128xf32, #tpu.memory_space<vmem>>, %arg8: memref<64x128xf32, #tpu.memory_space<vmem>>, %arg9: memref<1x96x128xf32, #tpu.memory_space<vmem>>) attributes {dimension_semantics = [#tpu.dimension_semantics<parallel>], iteration_bounds = array<i64: 2>, scalar_prefetch = 0 : i64, scratch_operands = 1 : i64, tpu.core_type = #tpu.core_type<tc>, window_params = [{transform_indices = @transform_0, window_bounds = array<i64: 64, 128>}, {pipeline_mode = #tpu.pipeline_mode<synchronous>, transform_indices = @transform_1, window_bounds = array<i64: 128, 256>}, {pipeline_mode = #tpu.pipeline_mode<synchronous>, transform_indices = @transform_2, window_bounds = array<i64: 1, 256>}, {pipeline_mode = #tpu.pipeline_mode<synchronous>, transform_indices = @transform_3, window_bounds = array<i64: 31, 128>}, {pipeline_mode = #tpu.pipeline_mode<synchronous>, transform_indices = @transform_4, window_bounds = array<i64: 1, 128>}, {pipeline_mode = #tpu.pipeline_mode<synchronous>, transform_indices = @transform_5, window_bounds = array<i64: 128, 128>}, {pipeline_mode = #tpu.pipeline_mode<synchronous>, transform_indices = @transform_6, window_bounds = array<i64: 1, 128>}, {transform_indices = @transform_7, window_bounds = array<i64: 64, 128>}]} {
    %c0 = arith.constant 0 : index
    %c0_0 = arith.constant 0 : index
    %0 = vector.load %arg1[%c0, %c0_0] : memref<64x128xf32, #tpu.memory_space<vmem>>, vector<64x128xf32>
    %cst = arith.constant dense<0.000000e+00> : vector<64xf32>
    %1 = vector.multi_reduction <add>, %0, %cst [1] : vector<64x128xf32> to vector<64xf32>
    %2 = vector.shape_cast %1 : vector<64xf32> to vector<64x1xf32>
    %cst_1 = arith.constant 1.280000e+02 : f32
    %3 = vector.broadcast %cst_1 : f32 to vector<64x1xf32>
    %4 = arith.divf %2, %3 : vector<64x1xf32>
    %5 = vector.broadcast %4 : vector<64x1xf32> to vector<64x128xf32>
    %6 = arith.subf %0, %5 : vector<64x128xf32>
    %7 = arith.mulf %6, %6 : vector<64x128xf32>
    %cst_2 = arith.constant dense<0.000000e+00> : vector<64xf32>
    %8 = vector.multi_reduction <add>, %7, %cst_2 [1] : vector<64x128xf32> to vector<64xf32>
    %9 = vector.shape_cast %8 : vector<64xf32> to vector<64x1xf32>
    %cst_3 = arith.constant 1.280000e+02 : f32
    %10 = vector.broadcast %cst_3 : f32 to vector<64x1xf32>
    %11 = arith.divf %9, %10 : vector<64x1xf32>
    %cst_4 = arith.constant 9.99999974E-6 : f32
    %12 = vector.broadcast %cst_4 : f32 to vector<64x1xf32>
    %13 = arith.addf %11, %12 : vector<64x1xf32>
    %14 = math.rsqrt %13 : vector<64x1xf32>
    %15 = vector.broadcast %14 : vector<64x1xf32> to vector<64x128xf32>
    %16 = arith.mulf %6, %15 : vector<64x128xf32>
    %17 = arith.truncf %16 : vector<64x128xf32> to vector<64x128xbf16>
    %c0_5 = arith.constant 0 : index
    %c0_6 = arith.constant 0 : index
    %18 = vector.load %arg2[%c0_5, %c0_6] : memref<128x256xbf16, #tpu.memory_space<vmem>>, vector<128x256xbf16>
    %cst_7 = arith.constant dense<0.000000e+00> : vector<64x256xf32>
    %19 = tpu.matmul %17, %18, %cst_7 {dimension_numbers = #tpu.dot_dimension_numbers<[1], [0], [0], [1], [0, 0, 1, 1], [], []>} : vector<64x128xbf16>, vector<128x256xbf16>, vector<64x256xf32> -> vector<64x256xf32>
    %c0_8 = arith.constant 0 : index
    %c0_9 = arith.constant 0 : index
    %20 = vector.load %arg3[%c0_8, %c0_9] : memref<1x256xf32, #tpu.memory_space<vmem>>, vector<1x256xf32>
    %21 = vector.broadcast %20 : vector<1x256xf32> to vector<64x256xf32>
    %22 = arith.addf %19, %21 : vector<64x256xf32>
    %23 = vector.extract_strided_slice %22 {offsets = [0, 0], sizes = [64, 128], strides = [1, 1]} : vector<64x256xf32> to vector<64x128xf32>
    %24 = vector.extract_strided_slice %22 {offsets = [0, 128], sizes = [64, 128], strides = [1, 1]} : vector<64x256xf32> to vector<64x128xf32>
    %25 = arith.negf %24 : vector<64x128xf32>
    %26 = math.exp %25 : vector<64x128xf32>
    %cst_10 = arith.constant 1.000000e+00 : f32
    %27 = vector.broadcast %cst_10 : f32 to vector<64x128xf32>
    %28 = arith.addf %27, %26 : vector<64x128xf32>
    %29 = arith.divf %27, %28 : vector<64x128xf32>
    %30 = arith.mulf %23, %29 : vector<64x128xf32>
    %c0_11 = arith.constant 0 : index
    %c0_12 = arith.constant 0 : index
    %31 = vector.load %arg4[%c0_11, %c0_12] : memref<31x128xf32, #tpu.memory_space<vmem>>, vector<31x128xf32>
    %cst_13 = arith.constant 0.000000e+00 : f32
    %32 = vector.broadcast %cst_13 : f32 to vector<1x16x128xf32>
    %c0_14 = arith.constant 0 : index
    %c0_15 = arith.constant 0 : index
    %c0_16 = arith.constant 0 : index
    %33 = vector.load %arg9[%c0_14, %c0_15, %c0_16] : memref<1x96x128xf32, #tpu.memory_space<vmem>>, vector<1x16x128xf32>
    tpu.vector_store %arg9[%c0_14, %c0_15, %c0_16], %32 {strides = array<i32>} : memref<1x96x128xf32, #tpu.memory_space<vmem>>, vector<1x16x128xf32>,
    %cst_17 = arith.constant 0.000000e+00 : f32
    %34 = vector.broadcast %cst_17 : f32 to vector<1x16x128xf32>
    %c0_18 = arith.constant 0 : index
    %c80 = arith.constant 80 : index
    %c0_19 = arith.constant 0 : index
    %35 = vector.load %arg9[%c0_18, %c80, %c0_19] : memref<1x96x128xf32, #tpu.memory_space<vmem>>, vector<1x16x128xf32>
    tpu.vector_store %arg9[%c0_18, %c80, %c0_19], %34 {strides = array<i32>} : memref<1x96x128xf32, #tpu.memory_space<vmem>>, vector<1x16x128xf32>,
    %36 = vector.shape_cast %30 : vector<64x128xf32> to vector<1x64x128xf32>
    %c0_20 = arith.constant 0 : index
    %c16 = arith.constant 16 : index
    %c0_21 = arith.constant 0 : index
    %37 = vector.load %arg9[%c0_20, %c16, %c0_21] : memref<1x96x128xf32, #tpu.memory_space<vmem>>, vector<1x64x128xf32>
    tpu.vector_store %arg9[%c0_20, %c16, %c0_21], %36 {strides = array<i32>} : memref<1x96x128xf32, #tpu.memory_space<vmem>>, vector<1x64x128xf32>,
    %c0_22 = arith.constant 0 : index
    %c8 = arith.constant 8 : index
    %c0_23 = arith.constant 0 : index
    %38 = vector.load %arg9[%c0_22, %c8, %c0_23] : memref<1x96x128xf32, #tpu.memory_space<vmem>>, vector<1x72x128xf32>
    %39 = vector.extract_strided_slice %31 {offsets = [7, 0], sizes = [1, 128], strides = [1, 1]} : vector<31x128xf32> to vector<1x128xf32>
    %40 = vector.shape_cast %39 : vector<1x128xf32> to vector<1x1x128xf32>
    %41 = vector.broadcast %40 : vector<1x1x128xf32> to vector<1x72x128xf32>
    %42 = arith.mulf %38, %41 : vector<1x72x128xf32>
    %c0_24 = arith.constant 0 : index
    %c16_25 = arith.constant 16 : index
    %c0_26 = arith.constant 0 : index
    %43 = vector.load %arg9[%c0_24, %c16_25, %c0_26] : memref<1x96x128xf32, #tpu.memory_space<vmem>>, vector<1x72x128xf32>
    %44 = vector.extract_strided_slice %31 {offsets = [15, 0], sizes = [1, 128], strides = [1, 1]} : vector<31x128xf32> to vector<1x128xf32>
    %45 = vector.shape_cast %44 : vector<1x128xf32> to vector<1x1x128xf32>
    %46 = vector.broadcast %45 : vector<1x1x128xf32> to vector<1x72x128xf32>
    %47 = arith.mulf %43, %46 : vector<1x72x128xf32>
    %48 = arith.addf %42, %47 : vector<1x72x128xf32>
    %c0_27 = arith.constant 0 : index
    %c24 = arith.constant 24 : index
    %c0_28 = arith.constant 0 : index
    %49 = vector.load %arg9[%c0_27, %c24, %c0_28] : memref<1x96x128xf32, #tpu.memory_space<vmem>>, vector<1x72x128xf32>
    %50 = vector.extract_strided_slice %31 {offsets = [23, 0], sizes = [1, 128], strides = [1, 1]} : vector<31x128xf32> to vector<1x128xf32>
    %51 = vector.shape_cast %50 : vector<1x128xf32> to vector<1x1x128xf32>
    %52 = vector.broadcast %51 : vector<1x1x128xf32> to vector<1x72x128xf32>
    %53 = arith.mulf %49, %52 : vector<1x72x128xf32>
    %54 = arith.addf %48, %53 : vector<1x72x128xf32>
    %55 = vector.extract_strided_slice %54 {offsets = [0, 0, 0], sizes = [1, 64, 128], strides = [1, 1, 1]} : vector<1x72x128xf32> to vector<1x64x128xf32>
    %c0_29 = arith.constant 0 : index
    %c0_30 = arith.constant 0 : index
    %c0_31 = arith.constant 0 : index
    %56 = vector.load %arg9[%c0_29, %c0_30, %c0_31] : memref<1x96x128xf32, #tpu.memory_space<vmem>>, vector<1x72x128xf32>
    %57 = vector.extract_strided_slice %31 {offsets = [0, 0], sizes = [1, 128], strides = [1, 1]} : vector<31x128xf32> to vector<1x128xf32>
    %58 = vector.shape_cast %57 : vector<1x128xf32> to vector<1x1x128xf32>
    %59 = vector.broadcast %58 : vector<1x1x128xf32> to vector<1x72x128xf32>
    %60 = arith.mulf %56, %59 : vector<1x72x128xf32>
    %c0_32 = arith.constant 0 : index
    %c8_33 = arith.constant 8 : index
    %c0_34 = arith.constant 0 : index
    %61 = vector.load %arg9[%c0_32, %c8_33, %c0_34] : memref<1x96x128xf32, #tpu.memory_space<vmem>>, vector<1x72x128xf32>
    %62 = vector.extract_strided_slice %31 {offsets = [8, 0], sizes = [1, 128], strides = [1, 1]} : vector<31x128xf32> to vector<1x128xf32>
    %63 = vector.shape_cast %62 : vector<1x128xf32> to vector<1x1x128xf32>
    %64 = vector.broadcast %63 : vector<1x1x128xf32> to vector<1x72x128xf32>
    %65 = arith.mulf %61, %64 : vector<1x72x128xf32>
    %66 = arith.addf %60, %65 : vector<1x72x128xf32>
    %c0_35 = arith.constant 0 : index
    %c16_36 = arith.constant 16 : index
    %c0_37 = arith.constant 0 : index
    %67 = vector.load %arg9[%c0_35, %c16_36, %c0_37] : memref<1x96x128xf32, #tpu.memory_space<vmem>>, vector<1x72x128xf32>
    %68 = vector.extract_strided_slice %31 {offsets = [16, 0], sizes = [1, 128], strides = [1, 1]} : vector<31x128xf32> to vector<1x128xf32>
    %69 = vector.shape_cast %68 : vector<1x128xf32> to vector<1x1x128xf32>
    %70 = vector.broadcast %69 : vector<1x1x128xf32> to vector<1x72x128xf32>
    %71 = arith.mulf %67, %70 : vector<1x72x128xf32>
    %72 = arith.addf %66, %71 : vector<1x72x128xf32>
    %c0_38 = arith.constant 0 : index
    %c24_39 = arith.constant 24 : index
    %c0_40 = arith.constant 0 : index
    %73 = vector.load %arg9[%c0_38, %c24_39, %c0_40] : memref<1x96x128xf32, #tpu.memory_space<vmem>>, vector<1x72x128xf32>
    %74 = vector.extract_strided_slice %31 {offsets = [24, 0], sizes = [1, 128], strides = [1, 1]} : vector<31x128xf32> to vector<1x128xf32>
    %75 = vector.shape_cast %74 : vector<1x128xf32> to vector<1x1x128xf32>
    %76 = vector.broadcast %75 : vector<1x1x128xf32> to vector<1x72x128xf32>
    %77 = arith.mulf %73, %76 : vector<1x72x128xf32>
    %78 = arith.addf %72, %77 : vector<1x72x128xf32>
    %79 = vector.extract_strided_slice %78 {offsets = [0, 1, 0], sizes = [1, 64, 128], strides = [1, 1, 1]} : vector<1x72x128xf32> to vector<1x64x128xf32>
    %80 = arith.addf %55, %79 : vector<1x64x128xf32>
    %c0_41 = arith.constant 0 : index
    %c0_42 = arith.constant 0 : index
    %c0_43 = arith.constant 0 : index
    %81 = vector.load %arg9[%c0_41, %c0_42, %c0_43] : memref<1x96x128xf32, #tpu.memory_space<vmem>>, vector<1x72x128xf32>
    %82 = vector.extract_strided_slice %31 {offsets = [1, 0], sizes = [1, 128], strides = [1, 1]} : vector<31x128xf32> to vector<1x128xf32>
    %83 = vector.shape_cast %82 : vector<1x128xf32> to vector<1x1x128xf32>
    %84 = vector.broadcast %83 : vector<1x1x128xf32> to vector<1x72x128xf32>
    %85 = arith.mulf %81, %84 : vector<1x72x128xf32>
    %c0_44 = arith.constant 0 : index
    %c8_45 = arith.constant 8 : index
    %c0_46 = arith.constant 0 : index
    %86 = vector.load %arg9[%c0_44, %c8_45, %c0_46] : memref<1x96x128xf32, #tpu.memory_space<vmem>>, vector<1x72x128xf32>
    %87 = vector.extract_strided_slice %31 {offsets = [9, 0], sizes = [1, 128], strides = [1, 1]} : vector<31x128xf32> to vector<1x128xf32>
    %88 = vector.shape_cast %87 : vector<1x128xf32> to vector<1x1x128xf32>
    %89 = vector.broadcast %88 : vector<1x1x128xf32> to vector<1x72x128xf32>
    %90 = arith.mulf %86, %89 : vector<1x72x128xf32>
    %91 = arith.addf %85, %90 : vector<1x72x128xf32>
    %c0_47 = arith.constant 0 : index
    %c16_48 = arith.constant 16 : index
    %c0_49 = arith.constant 0 : index
    %92 = vector.load %arg9[%c0_47, %c16_48, %c0_49] : memref<1x96x128xf32, #tpu.memory_space<vmem>>, vector<1x72x128xf32>
    %93 = vector.extract_strided_slice %31 {offsets = [17, 0], sizes = [1, 128], strides = [1, 1]} : vector<31x128xf32> to vector<1x128xf32>
    %94 = vector.shape_cast %93 : vector<1x128xf32> to vector<1x1x128xf32>
    %95 = vector.broadcast %94 : vector<1x1x128xf32> to vector<1x72x128xf32>
    %96 = arith.mulf %92, %95 : vector<1x72x128xf32>
    %97 = arith.addf %91, %96 : vector<1x72x128xf32>
    %c0_50 = arith.constant 0 : index
    %c24_51 = arith.constant 24 : index
    %c0_52 = arith.constant 0 : index
    %98 = vector.load %arg9[%c0_50, %c24_51, %c0_52] : memref<1x96x128xf32, #tpu.memory_space<vmem>>, vector<1x72x128xf32>
    %99 = vector.extract_strided_slice %31 {offsets = [25, 0], sizes = [1, 128], strides = [1, 1]} : vector<31x128xf32> to vector<1x128xf32>
    %100 = vector.shape_cast %99 : vector<1x128xf32> to vector<1x1x128xf32>
    %101 = vector.broadcast %100 : vector<1x1x128xf32> to vector<1x72x128xf32>
    %102 = arith.mulf %98, %101 : vector<1x72x128xf32>
    %103 = arith.addf %97, %102 : vector<1x72x128xf32>
    %104 = vector.extract_strided_slice %103 {offsets = [0, 2, 0], sizes = [1, 64, 128], strides = [1, 1, 1]} : vector<1x72x128xf32> to vector<1x64x128xf32>
    %105 = arith.addf %80, %104 : vector<1x64x128xf32>
    %c0_53 = arith.constant 0 : index
    %c0_54 = arith.constant 0 : index
    %c0_55 = arith.constant 0 : index
    %106 = vector.load %arg9[%c0_53, %c0_54, %c0_55] : memref<1x96x128xf32, #tpu.memory_space<vmem>>, vector<1x72x128xf32>
    %107 = vector.extract_strided_slice %31 {offsets = [2, 0], sizes = [1, 128], strides = [1, 1]} : vector<31x128xf32> to vector<1x128xf32>
    %108 = vector.shape_cast %107 : vector<1x128xf32> to vector<1x1x128xf32>
    %109 = vector.broadcast %108 : vector<1x1x128xf32> to vector<1x72x128xf32>
    %110 = arith.mulf %106, %109 : vector<1x72x128xf32>
    %c0_56 = arith.constant 0 : index
    %c8_57 = arith.constant 8 : index
    %c0_58 = arith.constant 0 : index
    %111 = vector.load %arg9[%c0_56, %c8_57, %c0_58] : memref<1x96x128xf32, #tpu.memory_space<vmem>>, vector<1x72x128xf32>
    %112 = vector.extract_strided_slice %31 {offsets = [10, 0], sizes = [1, 128], strides = [1, 1]} : vector<31x128xf32> to vector<1x128xf32>
    %113 = vector.shape_cast %112 : vector<1x128xf32> to vector<1x1x128xf32>
    %114 = vector.broadcast %113 : vector<1x1x128xf32> to vector<1x72x128xf32>
    %115 = arith.mulf %111, %114 : vector<1x72x128xf32>
    %116 = arith.addf %110, %115 : vector<1x72x128xf32>
    %c0_59 = arith.constant 0 : index
    %c16_60 = arith.constant 16 : index
    %c0_61 = arith.constant 0 : index
    %117 = vector.load %arg9[%c0_59, %c16_60, %c0_61] : memref<1x96x128xf32, #tpu.memory_space<vmem>>, vector<1x72x128xf32>
    %118 = vector.extract_strided_slice %31 {offsets = [18, 0], sizes = [1, 128], strides = [1, 1]} : vector<31x128xf32> to vector<1x128xf32>
    %119 = vector.shape_cast %118 : vector<1x128xf32> to vector<1x1x128xf32>
    %120 = vector.broadcast %119 : vector<1x1x128xf32> to vector<1x72x128xf32>
    %121 = arith.mulf %117, %120 : vector<1x72x128xf32>
    %122 = arith.addf %116, %121 : vector<1x72x128xf32>
    %c0_62 = arith.constant 0 : index
    %c24_63 = arith.constant 24 : index
    %c0_64 = arith.constant 0 : index
    %123 = vector.load %arg9[%c0_62, %c24_63, %c0_64] : memref<1x96x128xf32, #tpu.memory_space<vmem>>, vector<1x72x128xf32>
    %124 = vector.extract_strided_slice %31 {offsets = [26, 0], sizes = [1, 128], strides = [1, 1]} : vector<31x128xf32> to vector<1x128xf32>
    %125 = vector.shape_cast %124 : vector<1x128xf32> to vector<1x1x128xf32>
    %126 = vector.broadcast %125 : vector<1x1x128xf32> to vector<1x72x128xf32>
    %127 = arith.mulf %123, %126 : vector<1x72x128xf32>
    %128 = arith.addf %122, %127 : vector<1x72x128xf32>
    %129 = vector.extract_strided_slice %128 {offsets = [0, 3, 0], sizes = [1, 64, 128], strides = [1, 1, 1]} : vector<1x72x128xf32> to vector<1x64x128xf32>
    %130 = arith.addf %105, %129 : vector<1x64x128xf32>
    %c0_65 = arith.constant 0 : index
    %c0_66 = arith.constant 0 : index
    %c0_67 = arith.constant 0 : index
    %131 = vector.load %arg9[%c0_65, %c0_66, %c0_67] : memref<1x96x128xf32, #tpu.memory_space<vmem>>, vector<1x72x128xf32>
    %132 = vector.extract_strided_slice %31 {offsets = [3, 0], sizes = [1, 128], strides = [1, 1]} : vector<31x128xf32> to vector<1x128xf32>
    %133 = vector.shape_cast %132 : vector<1x128xf32> to vector<1x1x128xf32>
    %134 = vector.broadcast %133 : vector<1x1x128xf32> to vector<1x72x128xf32>
    %135 = arith.mulf %131, %134 : vector<1x72x128xf32>
    %c0_68 = arith.constant 0 : index
    %c8_69 = arith.constant 8 : index
    %c0_70 = arith.constant 0 : index
    %136 = vector.load %arg9[%c0_68, %c8_69, %c0_70] : memref<1x96x128xf32, #tpu.memory_space<vmem>>, vector<1x72x128xf32>
    %137 = vector.extract_strided_slice %31 {offsets = [11, 0], sizes = [1, 128], strides = [1, 1]} : vector<31x128xf32> to vector<1x128xf32>
    %138 = vector.shape_cast %137 : vector<1x128xf32> to vector<1x1x128xf32>
    %139 = vector.broadcast %138 : vector<1x1x128xf32> to vector<1x72x128xf32>
    %140 = arith.mulf %136, %139 : vector<1x72x128xf32>
    %141 = arith.addf %135, %140 : vector<1x72x128xf32>
    %c0_71 = arith.constant 0 : index
    %c16_72 = arith.constant 16 : index
    %c0_73 = arith.constant 0 : index
    %142 = vector.load %arg9[%c0_71, %c16_72, %c0_73] : memref<1x96x128xf32, #tpu.memory_space<vmem>>, vector<1x72x128xf32>
    %143 = vector.extract_strided_slice %31 {offsets = [19, 0], sizes = [1, 128], strides = [1, 1]} : vector<31x128xf32> to vector<1x128xf32>
    %144 = vector.shape_cast %143 : vector<1x128xf32> to vector<1x1x128xf32>
    %145 = vector.broadcast %144 : vector<1x1x128xf32> to vector<1x72x128xf32>
    %146 = arith.mulf %142, %145 : vector<1x72x128xf32>
    %147 = arith.addf %141, %146 : vector<1x72x128xf32>
    %c0_74 = arith.constant 0 : index
    %c24_75 = arith.constant 24 : index
    %c0_76 = arith.constant 0 : index
    %148 = vector.load %arg9[%c0_74, %c24_75, %c0_76] : memref<1x96x128xf32, #tpu.memory_space<vmem>>, vector<1x72x128xf32>
    %149 = vector.extract_strided_slice %31 {offsets = [27, 0], sizes = [1, 128], strides = [1, 1]} : vector<31x128xf32> to vector<1x128xf32>
    %150 = vector.shape_cast %149 : vector<1x128xf32> to vector<1x1x128xf32>
    %151 = vector.broadcast %150 : vector<1x1x128xf32> to vector<1x72x128xf32>
    %152 = arith.mulf %148, %151 : vector<1x72x128xf32>
    %153 = arith.addf %147, %152 : vector<1x72x128xf32>
    %154 = vector.extract_strided_slice %153 {offsets = [0, 4, 0], sizes = [1, 64, 128], strides = [1, 1, 1]} : vector<1x72x128xf32> to vector<1x64x128xf32>
    %155 = arith.addf %130, %154 : vector<1x64x128xf32>
    %c0_77 = arith.constant 0 : index
    %c0_78 = arith.constant 0 : index
    %c0_79 = arith.constant 0 : index
    %156 = vector.load %arg9[%c0_77, %c0_78, %c0_79] : memref<1x96x128xf32, #tpu.memory_space<vmem>>, vector<1x72x128xf32>
    %157 = vector.extract_strided_slice %31 {offsets = [4, 0], sizes = [1, 128], strides = [1, 1]} : vector<31x128xf32> to vector<1x128xf32>
    %158 = vector.shape_cast %157 : vector<1x128xf32> to vector<1x1x128xf32>
    %159 = vector.broadcast %158 : vector<1x1x128xf32> to vector<1x72x128xf32>
    %160 = arith.mulf %156, %159 : vector<1x72x128xf32>
    %c0_80 = arith.constant 0 : index
    %c8_81 = arith.constant 8 : index
    %c0_82 = arith.constant 0 : index
    %161 = vector.load %arg9[%c0_80, %c8_81, %c0_82] : memref<1x96x128xf32, #tpu.memory_space<vmem>>, vector<1x72x128xf32>
    %162 = vector.extract_strided_slice %31 {offsets = [12, 0], sizes = [1, 128], strides = [1, 1]} : vector<31x128xf32> to vector<1x128xf32>
    %163 = vector.shape_cast %162 : vector<1x128xf32> to vector<1x1x128xf32>
    %164 = vector.broadcast %163 : vector<1x1x128xf32> to vector<1x72x128xf32>
    %165 = arith.mulf %161, %164 : vector<1x72x128xf32>
    %166 = arith.addf %160, %165 : vector<1x72x128xf32>
    %c0_83 = arith.constant 0 : index
    %c16_84 = arith.constant 16 : index
    %c0_85 = arith.constant 0 : index
    %167 = vector.load %arg9[%c0_83, %c16_84, %c0_85] : memref<1x96x128xf32, #tpu.memory_space<vmem>>, vector<1x72x128xf32>
    %168 = vector.extract_strided_slice %31 {offsets = [20, 0], sizes = [1, 128], strides = [1, 1]} : vector<31x128xf32> to vector<1x128xf32>
    %169 = vector.shape_cast %168 : vector<1x128xf32> to vector<1x1x128xf32>
    %170 = vector.broadcast %169 : vector<1x1x128xf32> to vector<1x72x128xf32>
    %171 = arith.mulf %167, %170 : vector<1x72x128xf32>
    %172 = arith.addf %166, %171 : vector<1x72x128xf32>
    %c0_86 = arith.constant 0 : index
    %c24_87 = arith.constant 24 : index
    %c0_88 = arith.constant 0 : index
    %173 = vector.load %arg9[%c0_86, %c24_87, %c0_88] : memref<1x96x128xf32, #tpu.memory_space<vmem>>, vector<1x72x128xf32>
    %174 = vector.extract_strided_slice %31 {offsets = [28, 0], sizes = [1, 128], strides = [1, 1]} : vector<31x128xf32> to vector<1x128xf32>
    %175 = vector.shape_cast %174 : vector<1x128xf32> to vector<1x1x128xf32>
    %176 = vector.broadcast %175 : vector<1x1x128xf32> to vector<1x72x128xf32>
    %177 = arith.mulf %173, %176 : vector<1x72x128xf32>
    %178 = arith.addf %172, %177 : vector<1x72x128xf32>
    %179 = vector.extract_strided_slice %178 {offsets = [0, 5, 0], sizes = [1, 64, 128], strides = [1, 1, 1]} : vector<1x72x128xf32> to vector<1x64x128xf32>
    %180 = arith.addf %155, %179 : vector<1x64x128xf32>
    %c0_89 = arith.constant 0 : index
    %c0_90 = arith.constant 0 : index
    %c0_91 = arith.constant 0 : index
    %181 = vector.load %arg9[%c0_89, %c0_90, %c0_91] : memref<1x96x128xf32, #tpu.memory_space<vmem>>, vector<1x72x128xf32>
    %182 = vector.extract_strided_slice %31 {offsets = [5, 0], sizes = [1, 128], strides = [1, 1]} : vector<31x128xf32> to vector<1x128xf32>
    %183 = vector.shape_cast %182 : vector<1x128xf32> to vector<1x1x128xf32>
    %184 = vector.broadcast %183 : vector<1x1x128xf32> to vector<1x72x128xf32>
    %185 = arith.mulf %181, %184 : vector<1x72x128xf32>
    %c0_92 = arith.constant 0 : index
    %c8_93 = arith.constant 8 : index
    %c0_94 = arith.constant 0 : index
    %186 = vector.load %arg9[%c0_92, %c8_93, %c0_94] : memref<1x96x128xf32, #tpu.memory_space<vmem>>, vector<1x72x128xf32>
    %187 = vector.extract_strided_slice %31 {offsets = [13, 0], sizes = [1, 128], strides = [1, 1]} : vector<31x128xf32> to vector<1x128xf32>
    %188 = vector.shape_cast %187 : vector<1x128xf32> to vector<1x1x128xf32>
    %189 = vector.broadcast %188 : vector<1x1x128xf32> to vector<1x72x128xf32>
    %190 = arith.mulf %186, %189 : vector<1x72x128xf32>
    %191 = arith.addf %185, %190 : vector<1x72x128xf32>
    %c0_95 = arith.constant 0 : index
    %c16_96 = arith.constant 16 : index
    %c0_97 = arith.constant 0 : index
    %192 = vector.load %arg9[%c0_95, %c16_96, %c0_97] : memref<1x96x128xf32, #tpu.memory_space<vmem>>, vector<1x72x128xf32>
    %193 = vector.extract_strided_slice %31 {offsets = [21, 0], sizes = [1, 128], strides = [1, 1]} : vector<31x128xf32> to vector<1x128xf32>
    %194 = vector.shape_cast %193 : vector<1x128xf32> to vector<1x1x128xf32>
    %195 = vector.broadcast %194 : vector<1x1x128xf32> to vector<1x72x128xf32>
    %196 = arith.mulf %192, %195 : vector<1x72x128xf32>
    %197 = arith.addf %191, %196 : vector<1x72x128xf32>
    %c0_98 = arith.constant 0 : index
    %c24_99 = arith.constant 24 : index
    %c0_100 = arith.constant 0 : index
    %198 = vector.load %arg9[%c0_98, %c24_99, %c0_100] : memref<1x96x128xf32, #tpu.memory_space<vmem>>, vector<1x72x128xf32>
    %199 = vector.extract_strided_slice %31 {offsets = [29, 0], sizes = [1, 128], strides = [1, 1]} : vector<31x128xf32> to vector<1x128xf32>
    %200 = vector.shape_cast %199 : vector<1x128xf32> to vector<1x1x128xf32>
    %201 = vector.broadcast %200 : vector<1x1x128xf32> to vector<1x72x128xf32>
    %202 = arith.mulf %198, %201 : vector<1x72x128xf32>
    %203 = arith.addf %197, %202 : vector<1x72x128xf32>
    %204 = vector.extract_strided_slice %203 {offsets = [0, 6, 0], sizes = [1, 64, 128], strides = [1, 1, 1]} : vector<1x72x128xf32> to vector<1x64x128xf32>
    %205 = arith.addf %180, %204 : vector<1x64x128xf32>
    %c0_101 = arith.constant 0 : index
    %c0_102 = arith.constant 0 : index
    %c0_103 = arith.constant 0 : index
    %206 = vector.load %arg9[%c0_101, %c0_102, %c0_103] : memref<1x96x128xf32, #tpu.memory_space<vmem>>, vector<1x72x128xf32>
    %207 = vector.extract_strided_slice %31 {offsets = [6, 0], sizes = [1, 128], strides = [1, 1]} : vector<31x128xf32> to vector<1x128xf32>
    %208 = vector.shape_cast %207 : vector<1x128xf32> to vector<1x1x128xf32>
    %209 = vector.broadcast %208 : vector<1x1x128xf32> to vector<1x72x128xf32>
    %210 = arith.mulf %206, %209 : vector<1x72x128xf32>
    %c0_104 = arith.constant 0 : index
    %c8_105 = arith.constant 8 : index
    %c0_106 = arith.constant 0 : index
    %211 = vector.load %arg9[%c0_104, %c8_105, %c0_106] : memref<1x96x128xf32, #tpu.memory_space<vmem>>, vector<1x72x128xf32>
    %212 = vector.extract_strided_slice %31 {offsets = [14, 0], sizes = [1, 128], strides = [1, 1]} : vector<31x128xf32> to vector<1x128xf32>
    %213 = vector.shape_cast %212 : vector<1x128xf32> to vector<1x1x128xf32>
    %214 = vector.broadcast %213 : vector<1x1x128xf32> to vector<1x72x128xf32>
    %215 = arith.mulf %211, %214 : vector<1x72x128xf32>
    %216 = arith.addf %210, %215 : vector<1x72x128xf32>
    %c0_107 = arith.constant 0 : index
    %c16_108 = arith.constant 16 : index
    %c0_109 = arith.constant 0 : index
    %217 = vector.load %arg9[%c0_107, %c16_108, %c0_109] : memref<1x96x128xf32, #tpu.memory_space<vmem>>, vector<1x72x128xf32>
    %218 = vector.extract_strided_slice %31 {offsets = [22, 0], sizes = [1, 128], strides = [1, 1]} : vector<31x128xf32> to vector<1x128xf32>
    %219 = vector.shape_cast %218 : vector<1x128xf32> to vector<1x1x128xf32>
    %220 = vector.broadcast %219 : vector<1x1x128xf32> to vector<1x72x128xf32>
    %221 = arith.mulf %217, %220 : vector<1x72x128xf32>
    %222 = arith.addf %216, %221 : vector<1x72x128xf32>
    %c0_110 = arith.constant 0 : index
    %c24_111 = arith.constant 24 : index
    %c0_112 = arith.constant 0 : index
    %223 = vector.load %arg9[%c0_110, %c24_111, %c0_112] : memref<1x96x128xf32, #tpu.memory_space<vmem>>, vector<1x72x128xf32>
    %224 = vector.extract_strided_slice %31 {offsets = [30, 0], sizes = [1, 128], strides = [1, 1]} : vector<31x128xf32> to vector<1x128xf32>
    %225 = vector.shape_cast %224 : vector<1x128xf32> to vector<1x1x128xf32>
    %226 = vector.broadcast %225 : vector<1x1x128xf32> to vector<1x72x128xf32>
    %227 = arith.mulf %223, %226 : vector<1x72x128xf32>
    %228 = arith.addf %222, %227 : vector<1x72x128xf32>
    %229 = vector.extract_strided_slice %228 {offsets = [0, 7, 0], sizes = [1, 64, 128], strides = [1, 1, 1]} : vector<1x72x128xf32> to vector<1x64x128xf32>
    %230 = arith.addf %205, %229 : vector<1x64x128xf32>
    %c0_113 = arith.constant 0 : index
    %c0_114 = arith.constant 0 : index
    %231 = vector.load %arg5[%c0_113, %c0_114] : memref<1x128xf32, #tpu.memory_space<vmem>>, vector<1x128xf32>
    %232 = vector.shape_cast %231 : vector<1x128xf32> to vector<1x1x128xf32>
    %233 = vector.broadcast %232 : vector<1x1x128xf32> to vector<1x64x128xf32>
    %234 = arith.addf %230, %233 : vector<1x64x128xf32>
    %235 = arith.negf %234 : vector<1x64x128xf32>
    %236 = math.exp %235 : vector<1x64x128xf32>
    %cst_115 = arith.constant 1.000000e+00 : f32
    %237 = vector.broadcast %cst_115 : f32 to vector<1x64x128xf32>
    %238 = arith.addf %237, %236 : vector<1x64x128xf32>
    %239 = arith.divf %237, %238 : vector<1x64x128xf32>
    %240 = arith.mulf %234, %239 : vector<1x64x128xf32>
    %241 = vector.shape_cast %240 : vector<1x64x128xf32> to vector<64x128xf32>
    %242 = arith.truncf %241 : vector<64x128xf32> to vector<64x128xbf16>
    %c0_116 = arith.constant 0 : index
    %c0_117 = arith.constant 0 : index
    %243 = vector.load %arg6[%c0_116, %c0_117] : memref<128x128xbf16, #tpu.memory_space<vmem>>, vector<128x128xbf16>
    %cst_118 = arith.constant dense<0.000000e+00> : vector<64x128xf32>
    %244 = tpu.matmul %242, %243, %cst_118 {dimension_numbers = #tpu.dot_dimension_numbers<[1], [0], [0], [1], [0, 0, 1, 1], [], []>} : vector<64x128xbf16>, vector<128x128xbf16>, vector<64x128xf32> -> vector<64x128xf32>
    %c0_119 = arith.constant 0 : index
    %c0_120 = arith.constant 0 : index
    %245 = vector.load %arg7[%c0_119, %c0_120] : memref<1x128xf32, #tpu.memory_space<vmem>>, vector<1x128xf32>
    %246 = vector.broadcast %245 : vector<1x128xf32> to vector<64x128xf32>
    %247 = arith.addf %244, %246 : vector<64x128xf32>
    %c0_121 = arith.constant 0 : index
    %c0_122 = arith.constant 0 : index
    %248 = vector.load %arg1[%c0_121, %c0_122] : memref<64x128xf32, #tpu.memory_space<vmem>>, vector<64x128xf32>
    %249 = arith.addf %247, %248 : vector<64x128xf32>
    %c0_123 = arith.constant 0 : index
    %c0_124 = arith.constant 0 : index
    %250 = vector.load %arg8[%c0_123, %c0_124] : memref<64x128xf32, #tpu.memory_space<vmem>>, vector<64x128xf32>
    tpu.vector_store %arg8[%c0_123, %c0_124], %249 {strides = array<i32>} : memref<64x128xf32, #tpu.memory_space<vmem>>, vector<64x128xf32>,
    return
  }
  func.func @transform_0(%arg0: i32) -> (i32, i32) {
    %c0_i32 = arith.constant 0 : i32
    %c0_i32_0 = arith.constant 0 : i32
    return %arg0, %c0_i32 : i32, i32
  }
  func.func @transform_1(%arg0: i32) -> (i32, i32) {
    %c0_i32 = arith.constant 0 : i32
    %c0_i32_0 = arith.constant 0 : i32
    %c0_i32_1 = arith.constant 0 : i32
    return %c0_i32, %c0_i32_0 : i32, i32
  }
  func.func @transform_2(%arg0: i32) -> (i32, i32) {
    %c0_i32 = arith.constant 0 : i32
    %c0_i32_0 = arith.constant 0 : i32
    %c0_i32_1 = arith.constant 0 : i32
    return %c0_i32, %c0_i32_0 : i32, i32
  }
  func.func @transform_3(%arg0: i32) -> (i32, i32) {
    %c0_i32 = arith.constant 0 : i32
    %c0_i32_0 = arith.constant 0 : i32
    %c0_i32_1 = arith.constant 0 : i32
    return %c0_i32, %c0_i32_0 : i32, i32
  }
  func.func @transform_4(%arg0: i32) -> (i32, i32) {
    %c0_i32 = arith.constant 0 : i32
    %c0_i32_0 = arith.constant 0 : i32
    %c0_i32_1 = arith.constant 0 : i32
    return %c0_i32, %c0_i32_0 : i32, i32
  }
  func.func @transform_5(%arg0: i32) -> (i32, i32) {
    %c0_i32 = arith.constant 0 : i32
    %c0_i32_0 = arith.constant 0 : i32
    %c0_i32_1 = arith.constant 0 : i32
    return %c0_i32, %c0_i32_0 : i32, i32
  }
  func.func @transform_6(%arg0: i32) -> (i32, i32) {
    %c0_i32 = arith.constant 0 : i32
    %c0_i32_0 = arith.constant 0 : i32
    %c0_i32_1 = arith.constant 0 : i32
    return %c0_i32, %c0_i32_0 : i32, i32
  }
  func.func @transform_7(%arg0: i32) -> (i32, i32) {
    %c0_i32 = arith.constant 0 : i32
    %c0_i32_0 = arith.constant 0 : i32
    return %arg0, %c0_i32 : i32, i32
  }
}

</mosaic_0001>

<llo_original>
// kernel: tpu_custom_call.1
$region0: #{tpu_custom_call.1}
  #allocation0 [shape = 'u32[]', space=smem, size = 0x4, offset = 0x4, fixed_abs, tag = 'smem constant byte address 0x4 - core index']
  #allocation1 [shape = 'u32[72,128]{1,0:T(1,128)}', space=vmem, size = 0x9000, scoped, tag = 'internal scratch']
  #allocation2 [shape = 'f32[1,96,128]{2,1,0:T(8,128)}', space=vmem, size = 0xc000, scoped, tag = 'scratch operand']
  %s0 = inlined_call_operand.hbm [shape: f32[128,128], index: 0, kind: input, shape index: {}]
  %s1 = inlined_call_operand.hbm [shape: bf16[128,256], index: 1, kind: input, shape index: {}]
  %s2 = inlined_call_operand.hbm [shape: f32[1,256], index: 2, kind: input, shape index: {}]
  %s3 = inlined_call_operand.hbm [shape: f32[31,128], index: 3, kind: input, shape index: {}]
  %s4 = inlined_call_operand.vmem [shape: f32[1,128], index: 4, kind: input, shape index: {}]
  %s5 = inlined_call_operand.hbm [shape: bf16[128,128], index: 5, kind: input, shape index: {}]
  %s6 = inlined_call_operand.vmem [shape: f32[1,128], index: 6, kind: input, shape index: {}]
  %s7 = inlined_call_operand.hbm [shape: f32[128,128], index: 7, kind: output, shape index: {}]
  %s8 = sld [smem:[#allocation0]]
  $region81: #{tpu_custom_call.1} parent=0
    _
  %s10 = ssub.s32 1, %s8
  %s11 = scalar_select 0, %s10, %s8
  $region1: #{tpu_custom_call.1} parent=0
    #allocation3 [shape = 'u8[65536]{0}', space=vmem, size = 0x10000, scoped, tag = 'input window, operand 0']
    #allocation4 [shape = 's32[2]{0}', space=sflag, size = 0x8, scoped, tag = 'scoped memory for tpu_custom_call.1']
    #allocation5 [shape = 's32[2]{0}', space=sflag, size = 0x8, scoped, tag = 'scoped memory for tpu_custom_call.1']
    #allocation6 [shape = 'u8[65536]{0}', space=vmem, size = 0x10000, scoped, tag = 'input window, operand 1, single buffered']
    #allocation7 [shape = 's32[1]{0}', space=sflag, size = 0x4, scoped, tag = 'scoped memory for tpu_custom_call.1']
    #allocation8 [shape = 'u8[1024]{0}', space=vmem, size = 0x400, scoped, tag = 'input window, operand 2, single buffered']
    #allocation9 [shape = 'u8[16384]{0}', space=vmem, size = 0x4000, scoped, tag = 'input window, operand 3, single buffered']
    #allocation10 [shape = 's32[1]{0}', space=sflag, size = 0x4, scoped, tag = 'scoped memory for tpu_custom_call.1']
    #allocation11 [shape = 'u8[32768]{0}', space=vmem, size = 0x8000, scoped, tag = 'input window, operand 5, single buffered']
    #allocation12 [shape = 'u8[65536]{0}', space=vmem, size = 0x10000, scoped, tag = 'output window, operand 0']
    %12 = vsyncpa [#allocation4], 0
    %s13 = scalar_lea.sflag [#allocation4], 1
    %14 = vsyncpa %s13, 0
    %15 = vsyncpa [#allocation7], 0
    %16 = vsyncpa [#allocation10], 0
    %17 = vsyncpa [#allocation5], 0
    %s18 = scalar_lea.sflag [#allocation5], 1
    %19 = vsyncpa %s18, 0
    loop: start=0, step=1, limit=4
    $region2: #{tpu_custom_call.1} parent=1 // loop_pre_header
      _
    $region3: #{tpu_custom_call.1} parent=1 // loop_header
      %s21 = sphi 0, %s25
      %p22 = scmp.ge.s32.totalorder %s21, 4
      %s31 = sphi 0, %s33
      %s34 = sphi 0, %s31
      %s35 = sphi 0, %s34
      %s51 = sphi 0, %s35
      %s55 = sphi 0, %s55
      %s57 = sphi 0, %s55
      %s58 = sphi 0, %s57
      %s72 = sphi 0, %s58
      %s76 = sphi 0, %s76
      %s78 = sphi 0, %s76
      %s79 = sphi 0, %s78
      %s93 = sphi 0, %s79
      %s97 = sphi 0, %s97
      %s99 = sphi 0, %s97
      %s100 = sphi 0, %s99
      %s114 = sphi 0, %s100
      %s118 = sphi 0, %s118
      %s120 = sphi 0, %s118
      %s121 = sphi 0, %s120
      %s135 = sphi 0, %s121
      %s139 = sphi 0, %s139
      %s141 = sphi 0, %s139
      %s142 = sphi 0, %s141
      %s156 = sphi 0, %s142
      %s160 = sphi 0, %s160
      %s162 = sphi 0, %s160
      %s163 = sphi 0, %s162
      %s177 = sphi 0, %s163
      %s183 = sphi 0, %s185
      %s186 = sphi 0, %s183
      %s187 = sphi 0, %s186
      %s203 = sphi 0, %s187
    $region4: #{tpu_custom_call.1} parent=1 // loop_header_branch
      %24 = sbr.rel (%p22) target = $region8
    $region5: #{tpu_custom_call.1} parent=1 // loop_body
      %s26 = ssub.s32 %s21, 1
      %s27 = ssub.s32 %s21, 2
      %s28 = sadd.s32 %s21, 1
      %s29 = ssub.s32 %s21, %s28
      %p30 = scmp.eq.s32.totalorder %s29, 0
      %s32 = sadd.s32 %s31, 1
      %s33 = scalar_select %p30, %s31, %s32
      %p36 = pneg %p30
      %p37 = scmp.eq.s32.totalorder %s21, 1
      %p38 = por %p36, %p37
      %p39 = scmp.ne.s32.totalorder %s31, %s34
      %p40 = scmp.eq.s32.totalorder %s21, 0
      %p41 = por %p39, %p40
      %p42 = scmp.ne.s32.totalorder %s31, %s34
      %p43 = scmp.eq.s32.totalorder %s26, 1
      %p44 = por %p42, %p43
      %p45 = scmp.ne.s32.totalorder %s34, %s35
      %p46 = scmp.eq.s32.totalorder %s26, 0
      %p47 = por %p45, %p46
      %p48 = scmp.ne.s32.totalorder %s34, %s35
      %p49 = scmp.eq.s32.totalorder %s27, 1
      %p50 = por %p48, %p49
      %p52 = scmp.ne.s32.totalorder %s35, %s51
      %p53 = scmp.eq.s32.totalorder %s27, 0
      %p54 = por %p52, %p53
      %s56 = sadd.s32 %s55, 1
      %p59 = scmp.eq.s32.totalorder %s21, 1
      %p60 = scmp.ne.s32.totalorder %s55, %s57
      %p61 = scmp.eq.s32.totalorder %s21, 0
      %p62 = por %p60, %p61
      %p63 = scmp.ne.s32.totalorder %s55, %s57
      %p64 = scmp.eq.s32.totalorder %s26, 1
      %p65 = por %p63, %p64
      %p66 = scmp.ne.s32.totalorder %s57, %s58
      %p67 = scmp.eq.s32.totalorder %s26, 0
      %p68 = por %p66, %p67
      %p69 = scmp.ne.s32.totalorder %s57, %s58
      %p70 = scmp.eq.s32.totalorder %s27, 1
      %p71 = por %p69, %p70
      %p73 = scmp.ne.s32.totalorder %s58, %s72
      %p74 = scmp.eq.s32.totalorder %s27, 0
      %p75 = por %p73, %p74
      %s77 = sadd.s32 %s76, 1
      %p80 = scmp.eq.s32.totalorder %s21, 1
      %p81 = scmp.ne.s32.totalorder %s76, %s78
      %p82 = scmp.eq.s32.totalorder %s21, 0
      %p83 = por %p81, %p82
      %p84 = scmp.ne.s32.totalorder %s76, %s78
      %p85 = scmp.eq.s32.totalorder %s26, 1
      %p86 = por %p84, %p85
      %p87 = scmp.ne.s32.totalorder %s78, %s79
      %p88 = scmp.eq.s32.totalorder %s26, 0
      %p89 = por %p87, %p88
      %p90 = scmp.ne.s32.totalorder %s78, %s79
      %p91 = scmp.eq.s32.totalorder %s27, 1
      %p92 = por %p90, %p91
      %p94 = scmp.ne.s32.totalorder %s79, %s93
      %p95 = scmp.eq.s32.totalorder %s27, 0
      %p96 = por %p94, %p95
      %s98 = sadd.s32 %s97, 1
      %p101 = scmp.eq.s32.totalorder %s21, 1
      %p102 = scmp.ne.s32.totalorder %s97, %s99
      %p103 = scmp.eq.s32.totalorder %s21, 0
      %p104 = por %p102, %p103
      %p105 = scmp.ne.s32.totalorder %s97, %s99
      %p106 = scmp.eq.s32.totalorder %s26, 1
      %p107 = por %p105, %p106
      %p108 = scmp.ne.s32.totalorder %s99, %s100
      %p109 = scmp.eq.s32.totalorder %s26, 0
      %p110 = por %p108, %p109
      %p111 = scmp.ne.s32.totalorder %s99, %s100
      %p112 = scmp.eq.s32.totalorder %s27, 1
      %p113 = por %p111, %p112
      %p115 = scmp.ne.s32.totalorder %s100, %s114
      %p116 = scmp.eq.s32.totalorder %s27, 0
      %p117 = por %p115, %p116
      %s119 = sadd.s32 %s118, 1
      %p122 = scmp.eq.s32.totalorder %s21, 1
      %p123 = scmp.ne.s32.totalorder %s118, %s120
      %p124 = scmp.eq.s32.totalorder %s21, 0
      %p125 = por %p123, %p124
      %p126 = scmp.ne.s32.totalorder %s118, %s120
      %p127 = scmp.eq.s32.totalorder %s26, 1
      %p128 = por %p126, %p127
      %p129 = scmp.ne.s32.totalorder %s120, %s121
      %p130 = scmp.eq.s32.totalorder %s26, 0
      %p131 = por %p129, %p130
      %p132 = scmp.ne.s32.totalorder %s120, %s121
      %p133 = scmp.eq.s32.totalorder %s27, 1
      %p134 = por %p132, %p133
      %p136 = scmp.ne.s32.totalorder %s121, %s135
      %p137 = scmp.eq.s32.totalorder %s27, 0
      %p138 = por %p136, %p137
      %s140 = sadd.s32 %s139, 1
      %p143 = scmp.eq.s32.totalorder %s21, 1
      %p144 = scmp.ne.s32.totalorder %s139, %s141
      %p145 = scmp.eq.s32.totalorder %s21, 0
      %p146 = por %p144, %p145
      %p147 = scmp.ne.s32.totalorder %s139, %s141
      %p148 = scmp.eq.s32.totalorder %s26, 1
      %p149 = por %p147, %p148
      %p150 = scmp.ne.s32.totalorder %s141, %s142
      %p151 = scmp.eq.s32.totalorder %s26, 0
      %p152 = por %p150, %p151
      %p153 = scmp.ne.s32.totalorder %s141, %s142
      %p154 = scmp.eq.s32.totalorder %s27, 1
      %p155 = por %p153, %p154
      %p157 = scmp.ne.s32.totalorder %s142, %s156
      %p158 = scmp.eq.s32.totalorder %s27, 0
      %p159 = por %p157, %p158
      %s161 = sadd.s32 %s160, 1
      %p164 = scmp.eq.s32.totalorder %s21, 1
      %p165 = scmp.ne.s32.totalorder %s160, %s162
      %p166 = scmp.eq.s32.totalorder %s21, 0
      %p167 = por %p165, %p166
      %p168 = scmp.ne.s32.totalorder %s160, %s162
      %p169 = scmp.eq.s32.totalorder %s26, 1
      %p170 = por %p168, %p169
      %p171 = scmp.ne.s32.totalorder %s162, %s163
      %p172 = scmp.eq.s32.totalorder %s26, 0
      %p173 = por %p171, %p172
      %p174 = scmp.ne.s32.totalorder %s162, %s163
      %p175 = scmp.eq.s32.totalorder %s27, 1
      %p176 = por %p174, %p175
      %p178 = scmp.ne.s32.totalorder %s163, %s177
      %p179 = scmp.eq.s32.totalorder %s27, 0
      %p180 = por %p178, %p179
      %s181 = ssub.s32 %s21, %s28
      %p182 = scmp.eq.s32.totalorder %s181, 0
      %s184 = sadd.s32 %s183, 1
      %s185 = scalar_select %p182, %s183, %s184
      %p188 = pneg %p182
      %p189 = scmp.eq.s32.totalorder %s21, 1
      %p190 = por %p188, %p189
      %p191 = scmp.ne.s32.totalorder %s183, %s186
      %p192 = scmp.eq.s32.totalorder %s21, 0
      %p193 = por %p191, %p192
      %p194 = scmp.ne.s32.totalorder %s183, %s186
      %p195 = scmp.eq.s32.totalorder %s26, 1
      %p196 = por %p194, %p195
      %p197 = scmp.ne.s32.totalorder %s186, %s187
      %p198 = scmp.eq.s32.totalorder %s26, 0
      %p199 = por %p197, %p198
      %p200 = scmp.ne.s32.totalorder %s186, %s187
      %p201 = scmp.eq.s32.totalorder %s27, 1
      %p202 = por %p200, %p201
      %p204 = scmp.ne.s32.totalorder %s187, %s203
      %p205 = scmp.eq.s32.totalorder %s27, 0
      %p206 = por %p204, %p205
      %p207 = scmp.le.s32.totalorder 1, %s21
      %p208 = scmp.lt.s32.totalorder %s21, 3
      %p209 = pnand %p207, %p208
      %p210 = pneg %p209
      // Predicated region
      $region9: #{tpu_custom_call.1} parent=5 // pred_check
        _
      $region10: #{tpu_custom_call.1} parent=5 // pred_check_branch
        %212 = sbr.rel (%p209) target = $region12
      $region11: #{tpu_custom_call.1} parent=5 // pred_region
        %s213 = ssub.s32 %s21, 1
        // Predicated region
        $region13: #{tpu_custom_call.1} parent=11 // pred_check
          %p214 = pneg %p68
        $region14: #{tpu_custom_call.1} parent=11 // pred_check_branch
          %216 = sbr.rel (%p214) target = $region16
        $region15: #{tpu_custom_call.1} parent=11 // pred_region
          %218 = vsyncadd [#allocation7], 0
          %s219 = sshll.u32 %s1, 4
          %s220 = int_to_ptr.hbm [resolvable:$true] %s219
          %s221 = sshll.u32 [#allocation6], 4
          %s222 = int_to_ptr.vmem [resolvable:$true] %s221
          %227 = dma.hbm_to_vmem [thread:$0]  %s220, 2048, %s222, [#allocation7], 128, 128, 8
        $region16: #{tpu_custom_call.1} parent=11 // pred_fallthru
          _
        // Predicated region
        $region17: #{tpu_custom_call.1} parent=11 // pred_check
          %p228 = pneg %p89
        $region18: #{tpu_custom_call.1} parent=11 // pred_check_branch
          %230 = sbr.rel (%p228) target = $region20
        $region19: #{tpu_custom_call.1} parent=11 // pred_region
          %232 = vsyncadd [#allocation7], 0
          %s234 = sshll.u32 %s2, 4
          %s235 = int_to_ptr.hbm [resolvable:$true] %s234
          %s236 = sshll.u32 [#allocation8], 4
          %s237 = int_to_ptr.vmem [resolvable:$true] %s236
          %239 = dma.hbm_to_vmem [thread:$0]  %s235, 32, %s237, [#allocation7]
        $region20: #{tpu_custom_call.1} parent=11 // pred_fallthru
          _
        // Predicated region
        $region21: #{tpu_custom_call.1} parent=11 // pred_check
          %p240 = pneg %p110
        $region22: #{tpu_custom_call.1} parent=11 // pred_check_branch
          %242 = sbr.rel (%p240) target = $region24
        $region23: #{tpu_custom_call.1} parent=11 // pred_region
          %244 = vsyncadd [#allocation10], 0
          %s245 = sshll.u32 %s3, 4
          %s246 = int_to_ptr.hbm [resolvable:$true] %s245
          %s247 = sshll.u32 [#allocation9], 4
          %s248 = int_to_ptr.vmem [resolvable:$true] %s247
          %253 = dma.hbm_to_vmem [thread:$0]  %s246, 512, %s248, [#allocation10], 128, 128, 8
        $region24: #{tpu_custom_call.1} parent=11 // pred_fallthru
          _
        // Predicated region
        $region25: #{tpu_custom_call.1} parent=11 // pred_check
          %p254 = pneg %p131
        $region26: #{tpu_custom_call.1} parent=11 // pred_check_branch
          %256 = sbr.rel (%p254) target = $region28
        $region27: #{tpu_custom_call.1} parent=11 // pred_region
          _
        $region28: #{tpu_custom_call.1} parent=11 // pred_fallthru
          _
        // Predicated region
        $region29: #{tpu_custom_call.1} parent=11 // pred_check
          %p257 = pneg %p152
        $region30: #{tpu_custom_call.1} parent=11 // pred_check_branch
          %259 = sbr.rel (%p257) target = $region32
        $region31: #{tpu_custom_call.1} parent=11 // pred_region
          %261 = vsyncadd [#allocation10], 0
          %s262 = sshll.u32 %s5, 4
          %s263 = int_to_ptr.hbm [resolvable:$true] %s262
          %s264 = sshll.u32 [#allocation11], 4
          %s265 = int_to_ptr.vmem [resolvable:$true] %s264
          %270 = dma.hbm_to_vmem [thread:$0]  %s263, 1024, %s265, [#allocation10], 64, 64, 4
        $region32: #{tpu_custom_call.1} parent=11 // pred_fallthru
          _
        // Predicated region
        $region33: #{tpu_custom_call.1} parent=11 // pred_check
          %p271 = pneg %p173
        $region34: #{tpu_custom_call.1} parent=11 // pred_check_branch
          %273 = sbr.rel (%p271) target = $region36
        $region35: #{tpu_custom_call.1} parent=11 // pred_region
          _
        $region36: #{tpu_custom_call.1} parent=11 // pred_fallthru
          _
      $region12: #{tpu_custom_call.1} parent=5 // pred_fallthru
        _
      %p274 = scmp.lt.s32.totalorder %s21, 2
      // Predicated region
      $region37: #{tpu_custom_call.1} parent=5 // pred_check
        %p275 = pneg %p274
      $region38: #{tpu_custom_call.1} parent=5 // pred_check_branch
        %277 = sbr.rel (%p275) target = $region40
      $region39: #{tpu_custom_call.1} parent=5 // pred_region
        // Predicated region
        $region41: #{tpu_custom_call.1} parent=39 // pred_check
          %p278 = pneg %p41
        $region42: #{tpu_custom_call.1} parent=39 // pred_check_branch
          %280 = sbr.rel (%p278) target = $region44
        $region43: #{tpu_custom_call.1} parent=39 // pred_region
          %s281 = sand.u32 %s31, 1
          %s282 = scalar_lea.sflag [#allocation4], %s281
          %s283 = sand.u32 %s31, 1
          %s284 = smul.addr %s283, 64
          %s285 = scalar_lea.vmem [#allocation3], %s284
          %s286 = smul.u32 8, %s21
          %288 = vsyncadd %s282, 0
          %s289 = smul.addr %s286, 8
          %s290 = scalar_lea.hbm %s0, %s289
          %s291 = sshll.u32 %s290, 4
          %s292 = int_to_ptr.hbm [resolvable:$true] %s291
          %s293 = sshll.u32 %s285, 4
          %s294 = int_to_ptr.vmem [resolvable:$true] %s293
          %299 = dma.hbm_to_vmem [thread:$0]  %s292, 1024, %s294, %s282, 128, 128, 8
        $region44: #{tpu_custom_call.1} parent=39 // pred_fallthru
          _
      $region40: #{tpu_custom_call.1} parent=5 // pred_fallthru
        _
      %p300 = scmp.le.s32.totalorder 1, %s21
      %p301 = scmp.lt.s32.totalorder %s21, 3
      %p302 = pnand %p300, %p301
      %p303 = pneg %p302
      // Predicated region
      $region45: #{tpu_custom_call.1} parent=5 // pred_check
        _
      $region46: #{tpu_custom_call.1} parent=5 // pred_check_branch
        %305 = sbr.rel (%p302) target = $region48
      $region47: #{tpu_custom_call.1} parent=5 // pred_region
        %s306 = ssub.s32 %s21, 1
        %s307 = sand.u32 %s34, 1
        %s308 = scalar_lea.sflag [#allocation4], %s307
        %s309 = sand.u32 %s34, 1
        %s310 = smul.addr %s309, 64
        %s311 = scalar_lea.vmem [#allocation3], %s310
        // Predicated region
        $region49: #{tpu_custom_call.1} parent=47 // pred_check
          %p312 = pneg %p47
        $region50: #{tpu_custom_call.1} parent=47 // pred_check_branch
          %314 = sbr.rel (%p312) target = $region52
        $region51: #{tpu_custom_call.1} parent=47 // pred_region
          %316 = dma.done %s308, 1024
        $region52: #{tpu_custom_call.1} parent=47 // pred_fallthru
          _
        // Predicated region
        $region53: #{tpu_custom_call.1} parent=47 // pred_check
          %p317 = pneg %p68
        $region54: #{tpu_custom_call.1} parent=47 // pred_check_branch
          %319 = sbr.rel (%p317) target = $region56
        $region55: #{tpu_custom_call.1} parent=47 // pred_region
          %321 = dma.done [#allocation7], 2048
        $region56: #{tpu_custom_call.1} parent=47 // pred_fallthru
          _
        // Predicated region
        $region57: #{tpu_custom_call.1} parent=47 // pred_check
          %p322 = pneg %p89
        $region58: #{tpu_custom_call.1} parent=47 // pred_check_branch
          %324 = sbr.rel (%p322) target = $region60
        $region59: #{tpu_custom_call.1} parent=47 // pred_region
          %326 = dma.done [#allocation7], 32
        $region60: #{tpu_custom_call.1} parent=47 // pred_fallthru
          _
        // Predicated region
        $region61: #{tpu_custom_call.1} parent=47 // pred_check
          %p327 = pneg %p110
        $region62: #{tpu_custom_call.1} parent=47 // pred_check_branch
          %329 = sbr.rel (%p327) target = $region64
        $region63: #{tpu_custom_call.1} parent=47 // pred_region
          %331 = dma.done [#allocation10], 512
        $region64: #{tpu_custom_call.1} parent=47 // pred_fallthru
          _
        // Predicated region
        $region65: #{tpu_custom_call.1} parent=47 // pred_check
          %p332 = pneg %p152
        $region66: #{tpu_custom_call.1} parent=47 // pred_check_branch
          %334 = sbr.rel (%p332) target = $region68
        $region67: #{tpu_custom_call.1} parent=47 // pred_region
          %336 = dma.done [#allocation10], 1024
        $region68: #{tpu_custom_call.1} parent=47 // pred_fallthru
          _
        %s337 = sand.u32 %s34, 1
        %s338 = scalar_lea.sflag [#allocation4], %s337
        %s339 = sand.u32 %s34, 1
        %s340 = smul.addr %s339, 64
        %s341 = scalar_lea.vmem [#allocation3], %s340
        %p342 = pneg %p47
        %p343 = pneg %p44
        %p344 = pneg %p68
        %p345 = pneg %p65
        %p346 = pneg %p89
        %p347 = pneg %p86
        %p348 = pneg %p110
        %p349 = pneg %p107
        %p350 = pneg %p131
        %p351 = pneg %p128
        %p352 = pneg %p152
        %p353 = pneg %p149
        %p354 = pneg %p173
        %p355 = pneg %p170
        %p356 = pneg %p199
        %p357 = pneg %p196
        %s358 = sand.u32 %s186, 1
        %s359 = scalar_lea.sflag [#allocation5], %s358
        %s360 = sand.u32 %s186, 1
        %s361 = smul.addr %s360, 64
        %s362 = scalar_lea.vmem [#allocation12], %s361
        %s363 = smul.u32 8, %s26
        %s364 = smul.u32 8, %s26
        %v365 = vld [vmem:[%s311] sm:$0xff]
        %v366 = vld [vmem:[%s311 + $0x8] sm:$0xff]
        %v367 = vld [vmem:[%s311 + $0x10] sm:$0xff]
        %v368 = vld [vmem:[%s311 + $0x18] sm:$0xff]
        %v369 = vld [vmem:[%s311 + $0x20] sm:$0xff]
        %v370 = vld [vmem:[%s311 + $0x28] sm:$0xff]
        %v371 = vld [vmem:[%s311 + $0x30] sm:$0xff]
        %v372 = vld [vmem:[%s311 + $0x38] sm:$0xff]
        %373 = vadd.xlane.f32.xlu0 %v365
        %v374 = vpop.xlane.xlu0 %373
        %375 = vadd.xlane.f32.xlu0 %v366
        %v376 = vpop.xlane.xlu0 %375
        %377 = vadd.xlane.f32.xlu0 %v367
        %v378 = vpop.xlane.xlu0 %377
        %379 = vadd.xlane.f32.xlu0 %v368
        %v380 = vpop.xlane.xlu0 %379
        %381 = vadd.xlane.f32.xlu0 %v369
        %v382 = vpop.xlane.xlu0 %381
        %383 = vadd.xlane.f32.xlu0 %v370
        %v384 = vpop.xlane.xlu0 %383
        %385 = vadd.xlane.f32.xlu0 %v371
        %v386 = vpop.xlane.xlu0 %385
        %387 = vadd.xlane.f32.xlu0 %v372
        %v388 = vpop.xlane.xlu0 %387
        %v389 = vrcp.pop 128.0
        %v390 = vmul.f32 128.0, %v389
        %v391 = vsub.f32 1.0, %v390
        %v392 = vmul.f32 %v389, %v391
        %v393 = vadd.f32 %v389, %v392
        %vm394 = vweird.f32 %v389
        %v395 = vsel %vm394, %v389, %v393
        %v396 = vmul.f32 %v374, %v395
        %v397 = vmul.f32 %v376, %v395
        %v398 = vmul.f32 %v378, %v395
        %v399 = vmul.f32 %v380, %v395
        %v400 = vmul.f32 %v382, %v395
        %v401 = vmul.f32 %v384, %v395
        %v402 = vmul.f32 %v386, %v395
        %v403 = vmul.f32 %v388, %v395
        %v404 = vsub.f32 %v365, %v396
        %v405 = vsub.f32 %v366, %v397
        %v406 = vsub.f32 %v367, %v398
        %v407 = vsub.f32 %v368, %v399
        %v408 = vsub.f32 %v369, %v400
        %v409 = vsub.f32 %v370, %v401
        %v410 = vsub.f32 %v371, %v402
        %v411 = vsub.f32 %v372, %v403
        %v412 = vmul.f32 %v404, %v404
        %v413 = vmul.f32 %v405, %v405
        %v414 = vmul.f32 %v406, %v406
        %v415 = vmul.f32 %v407, %v407
        %v416 = vmul.f32 %v408, %v408
        %v417 = vmul.f32 %v409, %v409
        %v418 = vmul.f32 %v410, %v410
        %v419 = vmul.f32 %v411, %v411
        %420 = vadd.xlane.f32.xlu0 %v412
        %v421 = vpop.xlane.xlu0 %420
        %422 = vadd.xlane.f32.xlu0 %v413
        %v423 = vpop.xlane.xlu0 %422
        %424 = vadd.xlane.f32.xlu0 %v414
        %v425 = vpop.xlane.xlu0 %424
        %426 = vadd.xlane.f32.xlu0 %v415
        %v427 = vpop.xlane.xlu0 %426
        %428 = vadd.xlane.f32.xlu0 %v416
        %v429 = vpop.xlane.xlu0 %428
        %430 = vadd.xlane.f32.xlu0 %v417
        %v431 = vpop.xlane.xlu0 %430
        %432 = vadd.xlane.f32.xlu0 %v418
        %v433 = vpop.xlane.xlu0 %432
        %434 = vadd.xlane.f32.xlu0 %v419
        %v435 = vpop.xlane.xlu0 %434
        %v436 = vmul.f32 %v421, %v395
        %v437 = vmul.f32 %v423, %v395
        %v438 = vmul.f32 %v425, %v395
        %v439 = vmul.f32 %v427, %v395
        %v440 = vmul.f32 %v429, %v395
        %v441 = vmul.f32 %v431, %v395
        %v442 = vmul.f32 %v433, %v395
        %v443 = vmul.f32 %v435, %v395
        %v444 = vadd.f32 %v436, 1e-05
        %v445 = vadd.f32 %v437, 1e-05
        %v446 = vadd.f32 %v438, 1e-05
        %v447 = vadd.f32 %v439, 1e-05
        %v448 = vadd.f32 %v440, 1e-05
        %v449 = vadd.f32 %v441, 1e-05
        %v450 = vadd.f32 %v442, 1e-05
        %v451 = vadd.f32 %v443, 1e-05
        %v452 = vrsqrt.pop %v444
        %v453 = vmul.f32 %v452, %v444
        %v454 = vmul.f32 %v453, %v452
        %v455 = vmul.f32 0.5, %v454
        %v456 = vsub.f32 1.5, %v455
        %v457 = vmul.f32 %v452, %v456
        %vm458 = vweird.f32 %v444
        %vm459 = vweird.f32 %v452
        %vm460 = vmor %vm458, %vm459
        %v461 = vsel %vm460, %v452, %v457
        %v462 = vrsqrt.pop %v445
        %v463 = vmul.f32 %v462, %v445
        %v464 = vmul.f32 %v463, %v462
        %v465 = vmul.f32 0.5, %v464
        %v466 = vsub.f32 1.5, %v465
        %v467 = vmul.f32 %v462, %v466
        %vm468 = vweird.f32 %v445
        %vm469 = vweird.f32 %v462
        %vm470 = vmor %vm468, %vm469
        %v471 = vsel %vm470, %v462, %v467
        %v472 = vrsqrt.pop %v446
        %v473 = vmul.f32 %v472, %v446
        %v474 = vmul.f32 %v473, %v472
        %v475 = vmul.f32 0.5, %v474
        %v476 = vsub.f32 1.5, %v475
        %v477 = vmul.f32 %v472, %v476
        %vm478 = vweird.f32 %v446
        %vm479 = vweird.f32 %v472
        %vm480 = vmor %vm478, %vm479
        %v481 = vsel %vm480, %v472, %v477
        %v482 = vrsqrt.pop %v447
        %v483 = vmul.f32 %v482, %v447
        %v484 = vmul.f32 %v483, %v482
        %v485 = vmul.f32 0.5, %v484
        %v486 = vsub.f32 1.5, %v485
        %v487 = vmul.f32 %v482, %v486
        %vm488 = vweird.f32 %v447
        %vm489 = vweird.f32 %v482
        %vm490 = vmor %vm488, %vm489
        %v491 = vsel %vm490, %v482, %v487
        %v492 = vrsqrt.pop %v448
        %v493 = vmul.f32 %v492, %v448
        %v494 = vmul.f32 %v493, %v492
        %v495 = vmul.f32 0.5, %v494
        %v496 = vsub.f32 1.5, %v495
        %v497 = vmul.f32 %v492, %v496
        %vm498 = vweird.f32 %v448
        %vm499 = vweird.f32 %v492
        %vm500 = vmor %vm498, %vm499
        %v501 = vsel %vm500, %v492, %v497
        %v502 = vrsqrt.pop %v449
        %v503 = vmul.f32 %v502, %v449
        %v504 = vmul.f32 %v503, %v502
        %v505 = vmul.f32 0.5, %v504
        %v506 = vsub.f32 1.5, %v505
        %v507 = vmul.f32 %v502, %v506
        %vm508 = vweird.f32 %v449
        %vm509 = vweird.f32 %v502
        %vm510 = vmor %vm508, %vm509
        %v511 = vsel %vm510, %v502, %v507
        %v512 = vrsqrt.pop %v450
        %v513 = vmul.f32 %v512, %v450
        %v514 = vmul.f32 %v513, %v512
        %v515 = vmul.f32 0.5, %v514
        %v516 = vsub.f32 1.5, %v515
        %v517 = vmul.f32 %v512, %v516
        %vm518 = vweird.f32 %v450
        %vm519 = vweird.f32 %v512
        %vm520 = vmor %vm518, %vm519
        %v521 = vsel %vm520, %v512, %v517
        %v522 = vrsqrt.pop %v451
        %v523 = vmul.f32 %v522, %v451
        %v524 = vmul.f32 %v523, %v522
        %v525 = vmul.f32 0.5, %v524
        %v526 = vsub.f32 1.5, %v525
        %v527 = vmul.f32 %v522, %v526
        %vm528 = vweird.f32 %v451
        %vm529 = vweird.f32 %v522
        %vm530 = vmor %vm528, %vm529
        %v531 = vsel %vm530, %v522, %v527
        %v532 = vmul.f32 %v404, %v461
        %v533 = vmul.f32 %v405, %v471
        %v534 = vmul.f32 %v406, %v481
        %v535 = vmul.f32 %v407, %v491
        %v536 = vmul.f32 %v408, %v501
        %v537 = vmul.f32 %v409, %v511
        %v538 = vmul.f32 %v410, %v521
        %v539 = vmul.f32 %v411, %v531
        %v540 = vpack.c.bf16 %v533, %v532
        %v541 = vpack.c.bf16 %v535, %v534
        %v542 = vpack.c.bf16 %v537, %v536
        %v543 = vpack.c.bf16 %v539, %v538
        %v544 = vld [vmem:[#allocation6] sm:$0xff]
        %v545 = vld [vmem:[#allocation6 + $0x8] sm:$0xff]
        %v546 = vld [vmem:[#allocation6 + $0x10] sm:$0xff]
        %v547 = vld [vmem:[#allocation6 + $0x18] sm:$0xff]
        %v548 = vld [vmem:[#allocation6 + $0x20] sm:$0xff]
        %v549 = vld [vmem:[#allocation6 + $0x28] sm:$0xff]
        %v550 = vld [vmem:[#allocation6 + $0x30] sm:$0xff]
        %v551 = vld [vmem:[#allocation6 + $0x38] sm:$0xff]
        %v552 = vld [vmem:[#allocation6 + $0x40] sm:$0xff]
        %v553 = vld [vmem:[#allocation6 + $0x48] sm:$0xff]
        %v554 = vld [vmem:[#allocation6 + $0x50] sm:$0xff]
        %v555 = vld [vmem:[#allocation6 + $0x58] sm:$0xff]
        %v556 = vld [vmem:[#allocation6 + $0x60] sm:$0xff]
        %v557 = vld [vmem:[#allocation6 + $0x68] sm:$0xff]
        %v558 = vld [vmem:[#allocation6 + $0x70] sm:$0xff]
        %v559 = vld [vmem:[#allocation6 + $0x78] sm:$0xff]
        %v560 = vld [vmem:[#allocation8] sm:$0x3]
        %v562 = vperm.slane %v560, 0
        %v563 = vperm.slane %v560, 1
        %v582 = vunpack.c.l.b16 %v544
        %v583 = vunpack.c.h.b16 %v544
        %v584 = vunpack.c.l.b16 %v545
        %v585 = vunpack.c.h.b16 %v545
        %v586 = vunpack.c.l.b16 %v546
        %v587 = vunpack.c.h.b16 %v546
        %v588 = vunpack.c.l.b16 %v547
        %v589 = vunpack.c.h.b16 %v547
        %v590 = vunpack.c.l.b16 %v548
        %v591 = vunpack.c.h.b16 %v548
        %v592 = vunpack.c.l.b16 %v549
        %v593 = vunpack.c.h.b16 %v549
        %v594 = vunpack.c.l.b16 %v550
        %v595 = vunpack.c.h.b16 %v550
        %v596 = vunpack.c.l.b16 %v551
        %v597 = vunpack.c.h.b16 %v551
        %v598 = vunpack.c.l.b16 %v552
        %v599 = vunpack.c.h.b16 %v552
        %v600 = vunpack.c.l.b16 %v553
        %v601 = vunpack.c.h.b16 %v553
        %v602 = vunpack.c.l.b16 %v554
        %v603 = vunpack.c.h.b16 %v554
        %v604 = vunpack.c.l.b16 %v555
        %v605 = vunpack.c.h.b16 %v555
        %v606 = vunpack.c.l.b16 %v556
        %v607 = vunpack.c.h.b16 %v556
        %v608 = vunpack.c.l.b16 %v557
        %v609 = vunpack.c.h.b16 %v557
        %v610 = vunpack.c.l.b16 %v558
        %v611 = vunpack.c.h.b16 %v558
        %v612 = vunpack.c.l.b16 %v559
        %v613 = vunpack.c.h.b16 %v559
        %v614 = vpack.c.b16 %v584, %v582
        %v615 = vpack.c.b16 %v585, %v583
        %v616 = vpack.c.b16 %v588, %v586
        %v617 = vpack.c.b16 %v589, %v587
        %v618 = vpack.c.b16 %v592, %v590
        %v619 = vpack.c.b16 %v593, %v591
        %v620 = vpack.c.b16 %v596, %v594
        %v621 = vpack.c.b16 %v597, %v595
        %v622 = vpack.c.b16 %v600, %v598
        %v623 = vpack.c.b16 %v601, %v599
        %v624 = vpack.c.b16 %v604, %v602
        %v625 = vpack.c.b16 %v605, %v603
        %v626 = vpack.c.b16 %v608, %v606
        %v627 = vpack.c.b16 %v609, %v607
        %v628 = vpack.c.b16 %v612, %v610
        %v629 = vpack.c.b16 %v613, %v611
        %646 = vmatpush.bf16.msra.mxu0 %v628
        %647 = vmatpush.bf16.msra.mxu0 %v626
        %648 = vmatpush.bf16.msra.mxu0 %v624
        %649 = vmatpush.bf16.msra.mxu0 %v622
        %650 = vmatpush.bf16.msra.mxu0 %v620
        %651 = vmatpush.bf16.msra.mxu0 %v618
        %652 = vmatpush.bf16.msra.mxu0 %v616
        %653 = vmatpush.bf16.msra.mxu0 %v614
        %654 = vmatmul.bf16.gmra.mxu0 %v540
        %v655 = vpop.f32.mrf.mxu0
        %v656 = vadd.f32 %v562, %v655
        %v657 = vpop.f32.mrf.mxu0
        %v658 = vadd.f32 %v562, %v657
        %659 = vmatmul.bf16.gmra.mxu0 %v541
        %v660 = vpop.f32.mrf.mxu0
        %v661 = vadd.f32 %v562, %v660
        %v662 = vpop.f32.mrf.mxu0
        %v663 = vadd.f32 %v562, %v662
        %664 = vmatmul.bf16.gmra.mxu0 %v542
        %v665 = vpop.f32.mrf.mxu0
        %v666 = vadd.f32 %v562, %v665
        %v667 = vpop.f32.mrf.mxu0
        %v668 = vadd.f32 %v562, %v667
        %669 = vmatmul.bf16.gmra.mxu0 %v543
        %v670 = vpop.f32.mrf.mxu0
        %v671 = vadd.f32 %v562, %v670
        %v672 = vpop.f32.mrf.mxu0
        %v673 = vadd.f32 %v562, %v672
        %674 = vdwg.mxu0
        %675 = vmatpush.bf16.msra.mxu0 %v629
        %676 = vmatpush.bf16.msra.mxu0 %v627
        %677 = vmatpush.bf16.msra.mxu0 %v625
        %678 = vmatpush.bf16.msra.mxu0 %v623
        %679 = vmatpush.bf16.msra.mxu0 %v621
        %680 = vmatpush.bf16.msra.mxu0 %v619
        %681 = vmatpush.bf16.msra.mxu0 %v617
        %682 = vmatpush.bf16.msra.mxu0 %v615
        %683 = vmatmul.bf16.gmra.mxu0 %v540
        %v684 = vpop.f32.mrf.mxu0
        %v685 = vadd.f32 %v563, %v684
        %v686 = vpop.f32.mrf.mxu0
        %v687 = vadd.f32 %v563, %v686
        %688 = vmatmul.bf16.gmra.mxu0 %v541
        %v689 = vpop.f32.mrf.mxu0
        %v690 = vadd.f32 %v563, %v689
        %v691 = vpop.f32.mrf.mxu0
        %v692 = vadd.f32 %v563, %v691
        %693 = vmatmul.bf16.gmra.mxu0 %v542
        %v694 = vpop.f32.mrf.mxu0
        %v695 = vadd.f32 %v563, %v694
        %v696 = vpop.f32.mrf.mxu0
        %v697 = vadd.f32 %v563, %v696
        %698 = vmatmul.bf16.gmra.mxu0 %v543
        %v699 = vpop.f32.mrf.mxu0
        %v700 = vadd.f32 %v563, %v699
        %v701 = vpop.f32.mrf.mxu0
        %v702 = vadd.f32 %v563, %v701
        %703 = vdwg.mxu0
        %v704 = vxor.u32 %v685, 2147483648
        %v705 = vxor.u32 %v687, 2147483648
        %v706 = vxor.u32 %v690, 2147483648
        %v707 = vxor.u32 %v692, 2147483648
        %v708 = vxor.u32 %v695, 2147483648
        %v709 = vxor.u32 %v697, 2147483648
        %v710 = vxor.u32 %v700, 2147483648
        %v711 = vxor.u32 %v702, 2147483648
        %v712 = vmul.f32 %v704, 1.442695
        %v713 = vpow.pop %v712
        %v714 = vmul.f32 %v705, 1.442695
        %v715 = vpow.pop %v714
        %v716 = vmul.f32 %v706, 1.442695
        %v717 = vpow.pop %v716
        %v718 = vmul.f32 %v707, 1.442695
        %v719 = vpow.pop %v718
        %v720 = vmul.f32 %v708, 1.442695
        %v721 = vpow.pop %v720
        %v722 = vmul.f32 %v709, 1.442695
        %v723 = vpow.pop %v722
        %v724 = vmul.f32 %v710, 1.442695
        %v725 = vpow.pop %v724
        %v726 = vmul.f32 %v711, 1.442695
        %v727 = vpow.pop %v726
        %v728 = vadd.f32 %v713, 1.0
        %v729 = vadd.f32 %v715, 1.0
        %v730 = vadd.f32 %v717, 1.0
        %v731 = vadd.f32 %v719, 1.0
        %v732 = vadd.f32 %v721, 1.0
        %v733 = vadd.f32 %v723, 1.0
        %v734 = vadd.f32 %v725, 1.0
        %v735 = vadd.f32 %v727, 1.0
        %v736 = vrcp.pop %v728
        %v737 = vmul.f32 %v728, %v736
        %v738 = vsub.f32 1.0, %v737
        %v739 = vmul.f32 %v736, %v738
        %v740 = vadd.f32 %v736, %v739
        %vm741 = vweird.f32 %v728
        %vm742 = vweird.f32 %v736
        %vm743 = vmor %vm741, %vm742
        %v744 = vsel %vm743, %v736, %v740
        %v745 = vand.u32 2147483647, %v728
        %vm746 = vcmp.eq.f32.partialorder %v745, 8.507059e+37
        %v747 = vand.u32 %v728, 2147483648
        %v748 = vor.u32 1.1754944e-38, %v747
        %v749 = vsel %vm746, %v748, %v744
        %v750 = vmul.f32 1.0, %v749
        %v751 = vrcp.pop %v729
        %v752 = vmul.f32 %v729, %v751
        %v753 = vsub.f32 1.0, %v752
        %v754 = vmul.f32 %v751, %v753
        %v755 = vadd.f32 %v751, %v754
        %vm756 = vweird.f32 %v729
        %vm757 = vweird.f32 %v751
        %vm758 = vmor %vm756, %vm757
        %v759 = vsel %vm758, %v751, %v755
        %v760 = vand.u32 2147483647, %v729
        %vm761 = vcmp.eq.f32.partialorder %v760, 8.507059e+37
        %v762 = vand.u32 %v729, 2147483648
        %v763 = vor.u32 1.1754944e-38, %v762
        %v764 = vsel %vm761, %v763, %v759
        %v765 = vmul.f32 1.0, %v764
        %v766 = vrcp.pop %v730
        %v767 = vmul.f32 %v730, %v766
        %v768 = vsub.f32 1.0, %v767
        %v769 = vmul.f32 %v766, %v768
        %v770 = vadd.f32 %v766, %v769
        %vm771 = vweird.f32 %v730
        %vm772 = vweird.f32 %v766
        %vm773 = vmor %vm771, %vm772
        %v774 = vsel %vm773, %v766, %v770
        %v775 = vand.u32 2147483647, %v730
        %vm776 = vcmp.eq.f32.partialorder %v775, 8.507059e+37
        %v777 = vand.u32 %v730, 2147483648
        %v778 = vor.u32 1.1754944e-38, %v777
        %v779 = vsel %vm776, %v778, %v774
        %v780 = vmul.f32 1.0, %v779
        %v781 = vrcp.pop %v731
        %v782 = vmul.f32 %v731, %v781
        %v783 = vsub.f32 1.0, %v782
        %v784 = vmul.f32 %v781, %v783
        %v785 = vadd.f32 %v781, %v784
        %vm786 = vweird.f32 %v731
        %vm787 = vweird.f32 %v781
        %vm788 = vmor %vm786, %vm787
        %v789 = vsel %vm788, %v781, %v785
        %v790 = vand.u32 2147483647, %v731
        %vm791 = vcmp.eq.f32.partialorder %v790, 8.507059e+37
        %v792 = vand.u32 %v731, 2147483648
        %v793 = vor.u32 1.1754944e-38, %v792
        %v794 = vsel %vm791, %v793, %v789
        %v795 = vmul.f32 1.0, %v794
        %v796 = vrcp.pop %v732
        %v797 = vmul.f32 %v732, %v796
        %v798 = vsub.f32 1.0, %v797
        %v799 = vmul.f32 %v796, %v798
        %v800 = vadd.f32 %v796, %v799
        %vm801 = vweird.f32 %v732
        %vm802 = vweird.f32 %v796
        %vm803 = vmor %vm801, %vm802
        %v804 = vsel %vm803, %v796, %v800
        %v805 = vand.u32 2147483647, %v732
        %vm806 = vcmp.eq.f32.partialorder %v805, 8.507059e+37
        %v807 = vand.u32 %v732, 2147483648
        %v808 = vor.u32 1.1754944e-38, %v807
        %v809 = vsel %vm806, %v808, %v804
        %v810 = vmul.f32 1.0, %v809
        %v811 = vrcp.pop %v733
        %v812 = vmul.f32 %v733, %v811
        %v813 = vsub.f32 1.0, %v812
        %v814 = vmul.f32 %v811, %v813
        %v815 = vadd.f32 %v811, %v814
        %vm816 = vweird.f32 %v733
        %vm817 = vweird.f32 %v811
        %vm818 = vmor %vm816, %vm817
        %v819 = vsel %vm818, %v811, %v815
        %v820 = vand.u32 2147483647, %v733
        %vm821 = vcmp.eq.f32.partialorder %v820, 8.507059e+37
        %v822 = vand.u32 %v733, 2147483648
        %v823 = vor.u32 1.1754944e-38, %v822
        %v824 = vsel %vm821, %v823, %v819
        %v825 = vmul.f32 1.0, %v824
        %v826 = vrcp.pop %v734
        %v827 = vmul.f32 %v734, %v826
        %v828 = vsub.f32 1.0, %v827
        %v829 = vmul.f32 %v826, %v828
        %v830 = vadd.f32 %v826, %v829
        %vm831 = vweird.f32 %v734
        %vm832 = vweird.f32 %v826
        %vm833 = vmor %vm831, %vm832
        %v834 = vsel %vm833, %v826, %v830
        %v835 = vand.u32 2147483647, %v734
        %vm836 = vcmp.eq.f32.partialorder %v835, 8.507059e+37
        %v837 = vand.u32 %v734, 2147483648
        %v838 = vor.u32 1.1754944e-38, %v837
        %v839 = vsel %vm836, %v838, %v834
        %v840 = vmul.f32 1.0, %v839
        %v841 = vrcp.pop %v735
        %v842 = vmul.f32 %v735, %v841
        %v843 = vsub.f32 1.0, %v842
        %v844 = vmul.f32 %v841, %v843
        %v845 = vadd.f32 %v841, %v844
        %vm846 = vweird.f32 %v735
        %vm847 = vweird.f32 %v841
        %vm848 = vmor %vm846, %vm847
        %v849 = vsel %vm848, %v841, %v845
        %v850 = vand.u32 2147483647, %v735
        %vm851 = vcmp.eq.f32.partialorder %v850, 8.507059e+37
        %v852 = vand.u32 %v735, 2147483648
        %v853 = vor.u32 1.1754944e-38, %v852
        %v854 = vsel %vm851, %v853, %v849
        %v855 = vmul.f32 1.0, %v854
        %v856 = vmul.f32 %v656, %v750
        %v857 = vmul.f32 %v658, %v765
        %v858 = vmul.f32 %v661, %v780
        %v859 = vmul.f32 %v663, %v795
        %v860 = vmul.f32 %v666, %v810
        %v861 = vmul.f32 %v668, %v825
        %v862 = vmul.f32 %v671, %v840
        %v863 = vmul.f32 %v673, %v855
        %v864 = vld [vmem:[#allocation9] sm:$0xff]
        %v865 = vld [vmem:[#allocation9 + $0x8] sm:$0xff]
        %v866 = vld [vmem:[#allocation9 + $0x10] sm:$0xff]
        %v867 = vld [vmem:[#allocation9 + $0x18] sm:$0x7f]
        %868 = vst [vmem:[#allocation2] sm:$0xff] 0.0
        %869 = vst [vmem:[#allocation2 + $0x8] sm:$0xff] 0.0
        %870 = vst [vmem:[#allocation2 + $0x50] sm:$0xff] 0.0
        %871 = vst [vmem:[#allocation2 + $0x58] sm:$0xff] 0.0
        %872 = vst [vmem:[#allocation2 + $0x10] sm:$0xff] %v856
        %873 = vst [vmem:[#allocation2 + $0x18] sm:$0xff] %v857
        %874 = vst [vmem:[#allocation2 + $0x20] sm:$0xff] %v858
        %875 = vst [vmem:[#allocation2 + $0x28] sm:$0xff] %v859
        %876 = vst [vmem:[#allocation2 + $0x30] sm:$0xff] %v860
        %877 = vst [vmem:[#allocation2 + $0x38] sm:$0xff] %v861
        %878 = vst [vmem:[#allocation2 + $0x40] sm:$0xff] %v862
        %879 = vst [vmem:[#allocation2 + $0x48] sm:$0xff] %v863
        %v880 = vld [vmem:[#allocation2 + $0x8] sm:$0xff]
        %v881 = vld [vmem:[#allocation2 + $0x10] sm:$0xff]
        %v882 = vld [vmem:[#allocation2 + $0x18] sm:$0xff]
        %v883 = vld [vmem:[#allocation2 + $0x20] sm:$0xff]
        %v884 = vld [vmem:[#allocation2 + $0x28] sm:$0xff]
        %v885 = vld [vmem:[#allocation2 + $0x30] sm:$0xff]
        %v886 = vld [vmem:[#allocation2 + $0x38] sm:$0xff]
        %v887 = vld [vmem:[#allocation2 + $0x40] sm:$0xff]
        %v888 = vld [vmem:[#allocation2 + $0x48] sm:$0xff]
        %v889 = vperm.slane %v864, 7
        %v890 = vmul.f32 %v880, %v889
        %v891 = vmul.f32 %v881, %v889
        %v892 = vmul.f32 %v882, %v889
        %v893 = vmul.f32 %v883, %v889
        %v894 = vmul.f32 %v884, %v889
        %v895 = vmul.f32 %v885, %v889
        %v896 = vmul.f32 %v886, %v889
        %v897 = vmul.f32 %v887, %v889
        %v898 = vld [vmem:[#allocation2 + $0x50] sm:$0xff]
        %v899 = vperm.slane %v865, 7
        %v900 = vmul.f32 %v881, %v899
        %v901 = vmul.f32 %v882, %v899
        %v902 = vmul.f32 %v883, %v899
        %v903 = vmul.f32 %v884, %v899
        %v904 = vmul.f32 %v885, %v899
        %v905 = vmul.f32 %v886, %v899
        %v906 = vmul.f32 %v887, %v899
        %v907 = vmul.f32 %v888, %v899
        %v908 = vadd.f32 %v890, %v900
        %v909 = vadd.f32 %v891, %v901
        %v910 = vadd.f32 %v892, %v902
        %v911 = vadd.f32 %v893, %v903
        %v912 = vadd.f32 %v894, %v904
        %v913 = vadd.f32 %v895, %v905
        %v914 = vadd.f32 %v896, %v906
        %v915 = vadd.f32 %v897, %v907
        %v916 = vld [vmem:[#allocation2 + $0x18] sm:$0xff]
        %v917 = vld [vmem:[#allocation2 + $0x20] sm:$0xff]
        %v918 = vld [vmem:[#allocation2 + $0x28] sm:$0xff]
        %v919 = vld [vmem:[#allocation2 + $0x30] sm:$0xff]
        %v920 = vld [vmem:[#allocation2 + $0x38] sm:$0xff]
        %v921 = vld [vmem:[#allocation2 + $0x40] sm:$0xff]
        %v922 = vld [vmem:[#allocation2 + $0x48] sm:$0xff]
        %v923 = vld [vmem:[#allocation2 + $0x50] sm:$0xff]
        %v924 = vld [vmem:[#allocation2 + $0x58] sm:$0xff]
        %v925 = vperm.slane %v866, 7
        %v926 = vmul.f32 %v916, %v925
        %v927 = vmul.f32 %v917, %v925
        %v928 = vmul.f32 %v918, %v925
        %v929 = vmul.f32 %v919, %v925
        %v930 = vmul.f32 %v920, %v925
        %v931 = vmul.f32 %v921, %v925
        %v932 = vmul.f32 %v922, %v925
        %v933 = vmul.f32 %v923, %v925
        %v934 = vadd.f32 %v908, %v926
        %v935 = vadd.f32 %v909, %v927
        %v936 = vadd.f32 %v910, %v928
        %v937 = vadd.f32 %v911, %v929
        %v938 = vadd.f32 %v912, %v930
        %v939 = vadd.f32 %v913, %v931
        %v940 = vadd.f32 %v914, %v932
        %v941 = vadd.f32 %v915, %v933
        %v942 = vld [vmem:[#allocation2] sm:$0xff]
        %v943 = vperm.slane %v864, 0
        %v944 = vmul.f32 %v942, %v943
        %v945 = vmul.f32 %v880, %v943
        %v946 = vmul.f32 %v881, %v943
        %v947 = vmul.f32 %v882, %v943
        %v948 = vmul.f32 %v883, %v943
        %v949 = vmul.f32 %v884, %v943
        %v950 = vmul.f32 %v885, %v943
        %v951 = vmul.f32 %v886, %v943
        %v952 = vmul.f32 %v887, %v943
        %v953 = vperm.slane %v865, 0
        %v954 = vmul.f32 %v880, %v953
        %v955 = vmul.f32 %v881, %v953
        %v956 = vmul.f32 %v882, %v953
        %v957 = vmul.f32 %v883, %v953
        %v958 = vmul.f32 %v884, %v953
        %v959 = vmul.f32 %v885, %v953
        %v960 = vmul.f32 %v886, %v953
        %v961 = vmul.f32 %v887, %v953
        %v962 = vmul.f32 %v888, %v953
        %v963 = vadd.f32 %v944, %v954
        %v964 = vadd.f32 %v945, %v955
        %v965 = vadd.f32 %v946, %v956
        %v966 = vadd.f32 %v947, %v957
        %v967 = vadd.f32 %v948, %v958
        %v968 = vadd.f32 %v949, %v959
        %v969 = vadd.f32 %v950, %v960
        %v970 = vadd.f32 %v951, %v961
        %v971 = vadd.f32 %v952, %v962
        %v972 = vperm.slane %v866, 0
        %v973 = vmul.f32 %v881, %v972
        %v974 = vmul.f32 %v882, %v972
        %v975 = vmul.f32 %v883, %v972
        %v976 = vmul.f32 %v884, %v972
        %v977 = vmul.f32 %v885, %v972
        %v978 = vmul.f32 %v886, %v972
        %v979 = vmul.f32 %v887, %v972
        %v980 = vmul.f32 %v888, %v972
        %v981 = vmul.f32 %v898, %v972
        %v982 = vadd.f32 %v963, %v973
        %v983 = vadd.f32 %v964, %v974
        %v984 = vadd.f32 %v965, %v975
        %v985 = vadd.f32 %v966, %v976
        %v986 = vadd.f32 %v967, %v977
        %v987 = vadd.f32 %v968, %v978
        %v988 = vadd.f32 %v969, %v979
        %v989 = vadd.f32 %v970, %v980
        %v990 = vadd.f32 %v971, %v981
        %v991 = vperm.slane %v867, 0
        %v992 = vmul.f32 %v916, %v991
        %v993 = vmul.f32 %v917, %v991
        %v994 = vmul.f32 %v918, %v991
        %v995 = vmul.f32 %v919, %v991
        %v996 = vmul.f32 %v920, %v991
        %v997 = vmul.f32 %v921, %v991
        %v998 = vmul.f32 %v922, %v991
        %v999 = vmul.f32 %v923, %v991
        %v1000 = vmul.f32 %v924, %v991
        %v1001 = vadd.f32 %v982, %v992
        %v1002 = vadd.f32 %v983, %v993
        %v1003 = vadd.f32 %v984, %v994
        %v1004 = vadd.f32 %v985, %v995
        %v1005 = vadd.f32 %v986, %v996
        %v1006 = vadd.f32 %v987, %v997
        %v1007 = vadd.f32 %v988, %v998
        %v1008 = vadd.f32 %v989, %v999
        %v1009 = vadd.f32 %v990, %v1000
        %vm1019 = vcmask 1046528
        %v1020 = vrot.slane %v1001, 1
        %v1021 = vrot.slane %v1002, 1
        %v1022 = vsel %vm1019, %v1020, %v1021
        %v1023 = vrot.slane %v1003, 1
        %v1024 = vsel %vm1019, %v1021, %v1023
        %v1025 = vrot.slane %v1004, 1
        %v1026 = vsel %vm1019, %v1023, %v1025
        %v1027 = vrot.slane %v1005, 1
        %v1028 = vsel %vm1019, %v1025, %v1027
        %v1029 = vrot.slane %v1006, 1
        %v1030 = vsel %vm1019, %v1027, %v1029
        %v1031 = vrot.slane %v1007, 1
        %v1032 = vsel %vm1019, %v1029, %v1031
        %v1033 = vrot.slane %v1008, 1
        %v1034 = vsel %vm1019, %v1031, %v1033
        %v1035 = vrot.slane %v1009, 1
        %v1036 = vsel %vm1019, %v1033, %v1035
        %v1045 = vadd.f32 %v934, %v1022
        %v1046 = vadd.f32 %v935, %v1024
        %v1047 = vadd.f32 %v936, %v1026
        %v1048 = vadd.f32 %v937, %v1028
        %v1049 = vadd.f32 %v938, %v1030
        %v1050 = vadd.f32 %v939, %v1032
        %v1051 = vadd.f32 %v940, %v1034
        %v1052 = vadd.f32 %v941, %v1036
        %v1053 = vperm.slane %v864, 1
        %v1054 = vmul.f32 %v942, %v1053
        %v1055 = vmul.f32 %v880, %v1053
        %v1056 = vmul.f32 %v881, %v1053
        %v1057 = vmul.f32 %v882, %v1053
        %v1058 = vmul.f32 %v883, %v1053
        %v1059 = vmul.f32 %v884, %v1053
        %v1060 = vmul.f32 %v885, %v1053
        %v1061 = vmul.f32 %v886, %v1053
        %v1062 = vmul.f32 %v887, %v1053
        %v1063 = vperm.slane %v865, 1
        %v1064 = vmul.f32 %v880, %v1063
        %v1065 = vmul.f32 %v881, %v1063
        %v1066 = vmul.f32 %v882, %v1063
        %v1067 = vmul.f32 %v883, %v1063
        %v1068 = vmul.f32 %v884, %v1063
        %v1069 = vmul.f32 %v885, %v1063
        %v1070 = vmul.f32 %v886, %v1063
        %v1071 = vmul.f32 %v887, %v1063
        %v1072 = vmul.f32 %v888, %v1063
        %v1073 = vadd.f32 %v1054, %v1064
        %v1074 = vadd.f32 %v1055, %v1065
        %v1075 = vadd.f32 %v1056, %v1066
        %v1076 = vadd.f32 %v1057, %v1067
        %v1077 = vadd.f32 %v1058, %v1068
        %v1078 = vadd.f32 %v1059, %v1069
        %v1079 = vadd.f32 %v1060, %v1070
        %v1080 = vadd.f32 %v1061, %v1071
        %v1081 = vadd.f32 %v1062, %v1072
        %v1082 = vperm.slane %v866, 1
        %v1083 = vmul.f32 %v881, %v1082
        %v1084 = vmul.f32 %v882, %v1082
        %v1085 = vmul.f32 %v883, %v1082
        %v1086 = vmul.f32 %v884, %v1082
        %v1087 = vmul.f32 %v885, %v1082
        %v1088 = vmul.f32 %v886, %v1082
        %v1089 = vmul.f32 %v887, %v1082
        %v1090 = vmul.f32 %v888, %v1082
        %v1091 = vmul.f32 %v898, %v1082
        %v1092 = vadd.f32 %v1073, %v1083
        %v1093 = vadd.f32 %v1074, %v1084
        %v1094 = vadd.f32 %v1075, %v1085
        %v1095 = vadd.f32 %v1076, %v1086
        %v1096 = vadd.f32 %v1077, %v1087
        %v1097 = vadd.f32 %v1078, %v1088
        %v1098 = vadd.f32 %v1079, %v1089
        %v1099 = vadd.f32 %v1080, %v1090
        %v1100 = vadd.f32 %v1081, %v1091
        %v1101 = vperm.slane %v867, 1
        %v1102 = vmul.f32 %v916, %v1101
        %v1103 = vmul.f32 %v917, %v1101
        %v1104 = vmul.f32 %v918, %v1101
        %v1105 = vmul.f32 %v919, %v1101
        %v1106 = vmul.f32 %v920, %v1101
        %v1107 = vmul.f32 %v921, %v1101
        %v1108 = vmul.f32 %v922, %v1101
        %v1109 = vmul.f32 %v923, %v1101
        %v1110 = vmul.f32 %v924, %v1101
        %v1111 = vadd.f32 %v1092, %v1102
        %v1112 = vadd.f32 %v1093, %v1103
        %v1113 = vadd.f32 %v1094, %v1104
        %v1114 = vadd.f32 %v1095, %v1105
        %v1115 = vadd.f32 %v1096, %v1106
        %v1116 = vadd.f32 %v1097, %v1107
        %v1117 = vadd.f32 %v1098, %v1108
        %v1118 = vadd.f32 %v1099, %v1109
        %v1119 = vadd.f32 %v1100, %v1110
        %vm1129 = vcmask 1045504
        %v1130 = vrot.slane %v1111, 2
        %v1131 = vrot.slane %v1112, 2
        %v1132 = vsel %vm1129, %v1130, %v1131
        %v1133 = vrot.slane %v1113, 2
        %v1134 = vsel %vm1129, %v1131, %v1133
        %v1135 = vrot.slane %v1114, 2
        %v1136 = vsel %vm1129, %v1133, %v1135
        %v1137 = vrot.slane %v1115, 2
        %v1138 = vsel %vm1129, %v1135, %v1137
        %v1139 = vrot.slane %v1116, 2
        %v1140 = vsel %vm1129, %v1137, %v1139
        %v1141 = vrot.slane %v1117, 2
        %v1142 = vsel %vm1129, %v1139, %v1141
        %v1143 = vrot.slane %v1118, 2
        %v1144 = vsel %vm1129, %v1141, %v1143
        %v1145 = vrot.slane %v1119, 2
        %v1146 = vsel %vm1129, %v1143, %v1145
        %v1155 = vadd.f32 %v1045, %v1132
        %v1156 = vadd.f32 %v1046, %v1134
        %v1157 = vadd.f32 %v1047, %v1136
        %v1158 = vadd.f32 %v1048, %v1138
        %v1159 = vadd.f32 %v1049, %v1140
        %v1160 = vadd.f32 %v1050, %v1142
        %v1161 = vadd.f32 %v1051, %v1144
        %v1162 = vadd.f32 %v1052, %v1146
        %v1163 = vperm.slane %v864, 2
        %v1164 = vmul.f32 %v942, %v1163
        %v1165 = vmul.f32 %v880, %v1163
        %v1166 = vmul.f32 %v881, %v1163
        %v1167 = vmul.f32 %v882, %v1163
        %v1168 = vmul.f32 %v883, %v1163
        %v1169 = vmul.f32 %v884, %v1163
        %v1170 = vmul.f32 %v885, %v1163
        %v1171 = vmul.f32 %v886, %v1163
        %v1172 = vmul.f32 %v887, %v1163
        %v1173 = vperm.slane %v865, 2
        %v1174 = vmul.f32 %v880, %v1173
        %v1175 = vmul.f32 %v881, %v1173
        %v1176 = vmul.f32 %v882, %v1173
        %v1177 = vmul.f32 %v883, %v1173
        %v1178 = vmul.f32 %v884, %v1173
        %v1179 = vmul.f32 %v885, %v1173
        %v1180 = vmul.f32 %v886, %v1173
        %v1181 = vmul.f32 %v887, %v1173
        %v1182 = vmul.f32 %v888, %v1173
        %v1183 = vadd.f32 %v1164, %v1174
        %v1184 = vadd.f32 %v1165, %v1175
        %v1185 = vadd.f32 %v1166, %v1176
        %v1186 = vadd.f32 %v1167, %v1177
        %v1187 = vadd.f32 %v1168, %v1178
        %v1188 = vadd.f32 %v1169, %v1179
        %v1189 = vadd.f32 %v1170, %v1180
        %v1190 = vadd.f32 %v1171, %v1181
        %v1191 = vadd.f32 %v1172, %v1182
        %v1192 = vperm.slane %v866, 2
        %v1193 = vmul.f32 %v881, %v1192
        %v1194 = vmul.f32 %v882, %v1192
        %v1195 = vmul.f32 %v883, %v1192
        %v1196 = vmul.f32 %v884, %v1192
        %v1197 = vmul.f32 %v885, %v1192
        %v1198 = vmul.f32 %v886, %v1192
        %v1199 = vmul.f32 %v887, %v1192
        %v1200 = vmul.f32 %v888, %v1192
        %v1201 = vmul.f32 %v898, %v1192
        %v1202 = vadd.f32 %v1183, %v1193
        %v1203 = vadd.f32 %v1184, %v1194
        %v1204 = vadd.f32 %v1185, %v1195
        %v1205 = vadd.f32 %v1186, %v1196
        %v1206 = vadd.f32 %v1187, %v1197
        %v1207 = vadd.f32 %v1188, %v1198
        %v1208 = vadd.f32 %v1189, %v1199
        %v1209 = vadd.f32 %v1190, %v1200
        %v1210 = vadd.f32 %v1191, %v1201
        %v1211 = vperm.slane %v867, 2
        %v1212 = vmul.f32 %v916, %v1211
        %v1213 = vmul.f32 %v917, %v1211
        %v1214 = vmul.f32 %v918, %v1211
        %v1215 = vmul.f32 %v919, %v1211
        %v1216 = vmul.f32 %v920, %v1211
        %v1217 = vmul.f32 %v921, %v1211
        %v1218 = vmul.f32 %v922, %v1211
        %v1219 = vmul.f32 %v923, %v1211
        %v1220 = vmul.f32 %v924, %v1211
        %v1221 = vadd.f32 %v1202, %v1212
        %v1222 = vadd.f32 %v1203, %v1213
        %v1223 = vadd.f32 %v1204, %v1214
        %v1224 = vadd.f32 %v1205, %v1215
        %v1225 = vadd.f32 %v1206, %v1216
        %v1226 = vadd.f32 %v1207, %v1217
        %v1227 = vadd.f32 %v1208, %v1218
        %v1228 = vadd.f32 %v1209, %v1219
        %v1229 = vadd.f32 %v1210, %v1220
        %vm1239 = vcmask 1044480
        %v1240 = vrot.slane %v1221, 3
        %v1241 = vrot.slane %v1222, 3
        %v1242 = vsel %vm1239, %v1240, %v1241
        %v1243 = vrot.slane %v1223, 3
        %v1244 = vsel %vm1239, %v1241, %v1243
        %v1245 = vrot.slane %v1224, 3
        %v1246 = vsel %vm1239, %v1243, %v1245
        %v1247 = vrot.slane %v1225, 3
        %v1248 = vsel %vm1239, %v1245, %v1247
        %v1249 = vrot.slane %v1226, 3
        %v1250 = vsel %vm1239, %v1247, %v1249
        %v1251 = vrot.slane %v1227, 3
        %v1252 = vsel %vm1239, %v1249, %v1251
        %v1253 = vrot.slane %v1228, 3
        %v1254 = vsel %vm1239, %v1251, %v1253
        %v1255 = vrot.slane %v1229, 3
        %v1256 = vsel %vm1239, %v1253, %v1255
        %v1265 = vadd.f32 %v1155, %v1242
        %v1266 = vadd.f32 %v1156, %v1244
        %v1267 = vadd.f32 %v1157, %v1246
        %v1268 = vadd.f32 %v1158, %v1248
        %v1269 = vadd.f32 %v1159, %v1250
        %v1270 = vadd.f32 %v1160, %v1252
        %v1271 = vadd.f32 %v1161, %v1254
        %v1272 = vadd.f32 %v1162, %v1256
        %v1273 = vperm.slane %v864, 3
        %v1274 = vmul.f32 %v942, %v1273
        %v1275 = vmul.f32 %v880, %v1273
        %v1276 = vmul.f32 %v881, %v1273
        %v1277 = vmul.f32 %v882, %v1273
        %v1278 = vmul.f32 %v883, %v1273
        %v1279 = vmul.f32 %v884, %v1273
        %v1280 = vmul.f32 %v885, %v1273
        %v1281 = vmul.f32 %v886, %v1273
        %v1282 = vmul.f32 %v887, %v1273
        %v1283 = vperm.slane %v865, 3
        %v1284 = vmul.f32 %v880, %v1283
        %v1285 = vmul.f32 %v881, %v1283
        %v1286 = vmul.f32 %v882, %v1283
        %v1287 = vmul.f32 %v883, %v1283
        %v1288 = vmul.f32 %v884, %v1283
        %v1289 = vmul.f32 %v885, %v1283
        %v1290 = vmul.f32 %v886, %v1283
        %v1291 = vmul.f32 %v887, %v1283
        %v1292 = vmul.f32 %v888, %v1283
        %v1293 = vadd.f32 %v1274, %v1284
        %v1294 = vadd.f32 %v1275, %v1285
        %v1295 = vadd.f32 %v1276, %v1286
        %v1296 = vadd.f32 %v1277, %v1287
        %v1297 = vadd.f32 %v1278, %v1288
        %v1298 = vadd.f32 %v1279, %v1289
        %v1299 = vadd.f32 %v1280, %v1290
        %v1300 = vadd.f32 %v1281, %v1291
        %v1301 = vadd.f32 %v1282, %v1292
        %v1302 = vperm.slane %v866, 3
        %v1303 = vmul.f32 %v881, %v1302
        %v1304 = vmul.f32 %v882, %v1302
        %v1305 = vmul.f32 %v883, %v1302
        %v1306 = vmul.f32 %v884, %v1302
        %v1307 = vmul.f32 %v885, %v1302
        %v1308 = vmul.f32 %v886, %v1302
        %v1309 = vmul.f32 %v887, %v1302
        %v1310 = vmul.f32 %v888, %v1302
        %v1311 = vmul.f32 %v898, %v1302
        %v1312 = vadd.f32 %v1293, %v1303
        %v1313 = vadd.f32 %v1294, %v1304
        %v1314 = vadd.f32 %v1295, %v1305
        %v1315 = vadd.f32 %v1296, %v1306
        %v1316 = vadd.f32 %v1297, %v1307
        %v1317 = vadd.f32 %v1298, %v1308
        %v1318 = vadd.f32 %v1299, %v1309
        %v1319 = vadd.f32 %v1300, %v1310
        %v1320 = vadd.f32 %v1301, %v1311
        %v1321 = vperm.slane %v867, 3
        %v1322 = vmul.f32 %v916, %v1321
        %v1323 = vmul.f32 %v917, %v1321
        %v1324 = vmul.f32 %v918, %v1321
        %v1325 = vmul.f32 %v919, %v1321
        %v1326 = vmul.f32 %v920, %v1321
        %v1327 = vmul.f32 %v921, %v1321
        %v1328 = vmul.f32 %v922, %v1321
        %v1329 = vmul.f32 %v923, %v1321
        %v1330 = vmul.f32 %v924, %v1321
        %v1331 = vadd.f32 %v1312, %v1322
        %v1332 = vadd.f32 %v1313, %v1323
        %v1333 = vadd.f32 %v1314, %v1324
        %v1334 = vadd.f32 %v1315, %v1325
        %v1335 = vadd.f32 %v1316, %v1326
        %v1336 = vadd.f32 %v1317, %v1327
        %v1337 = vadd.f32 %v1318, %v1328
        %v1338 = vadd.f32 %v1319, %v1329
        %v1339 = vadd.f32 %v1320, %v1330
        %vm1349 = vcmask 1043456
        %v1350 = vrot.slane %v1331, 4
        %v1351 = vrot.slane %v1332, 4
        %v1352 = vsel %vm1349, %v1350, %v1351
        %v1353 = vrot.slane %v1333, 4
        %v1354 = vsel %vm1349, %v1351, %v1353
        %v1355 = vrot.slane %v1334, 4
        %v1356 = vsel %vm1349, %v1353, %v1355
        %v1357 = vrot.slane %v1335, 4
        %v1358 = vsel %vm1349, %v1355, %v1357
        %v1359 = vrot.slane %v1336, 4
        %v1360 = vsel %vm1349, %v1357, %v1359
        %v1361 = vrot.slane %v1337, 4
        %v1362 = vsel %vm1349, %v1359, %v1361
        %v1363 = vrot.slane %v1338, 4
        %v1364 = vsel %vm1349, %v1361, %v1363
        %v1365 = vrot.slane %v1339, 4
        %v1366 = vsel %vm1349, %v1363, %v1365
        %v1375 = vadd.f32 %v1265, %v1352
        %v1376 = vadd.f32 %v1266, %v1354
        %v1377 = vadd.f32 %v1267, %v1356
        %v1378 = vadd.f32 %v1268, %v1358
        %v1379 = vadd.f32 %v1269, %v1360
        %v1380 = vadd.f32 %v1270, %v1362
        %v1381 = vadd.f32 %v1271, %v1364
        %v1382 = vadd.f32 %v1272, %v1366
        %v1383 = vperm.slane %v864, 4
        %v1384 = vmul.f32 %v942, %v1383
        %v1385 = vmul.f32 %v880, %v1383
        %v1386 = vmul.f32 %v881, %v1383
        %v1387 = vmul.f32 %v882, %v1383
        %v1388 = vmul.f32 %v883, %v1383
        %v1389 = vmul.f32 %v884, %v1383
        %v1390 = vmul.f32 %v885, %v1383
        %v1391 = vmul.f32 %v886, %v1383
        %v1392 = vmul.f32 %v887, %v1383
        %v1393 = vperm.slane %v865, 4
        %v1394 = vmul.f32 %v880, %v1393
        %v1395 = vmul.f32 %v881, %v1393
        %v1396 = vmul.f32 %v882, %v1393
        %v1397 = vmul.f32 %v883, %v1393
        %v1398 = vmul.f32 %v884, %v1393
        %v1399 = vmul.f32 %v885, %v1393
        %v1400 = vmul.f32 %v886, %v1393
        %v1401 = vmul.f32 %v887, %v1393
        %v1402 = vmul.f32 %v888, %v1393
        %v1403 = vadd.f32 %v1384, %v1394
        %v1404 = vadd.f32 %v1385, %v1395
        %v1405 = vadd.f32 %v1386, %v1396
        %v1406 = vadd.f32 %v1387, %v1397
        %v1407 = vadd.f32 %v1388, %v1398
        %v1408 = vadd.f32 %v1389, %v1399
        %v1409 = vadd.f32 %v1390, %v1400
        %v1410 = vadd.f32 %v1391, %v1401
        %v1411 = vadd.f32 %v1392, %v1402
        %v1412 = vperm.slane %v866, 4
        %v1413 = vmul.f32 %v881, %v1412
        %v1414 = vmul.f32 %v882, %v1412
        %v1415 = vmul.f32 %v883, %v1412
        %v1416 = vmul.f32 %v884, %v1412
        %v1417 = vmul.f32 %v885, %v1412
        %v1418 = vmul.f32 %v886, %v1412
        %v1419 = vmul.f32 %v887, %v1412
        %v1420 = vmul.f32 %v888, %v1412
        %v1421 = vmul.f32 %v898, %v1412
        %v1422 = vadd.f32 %v1403, %v1413
        %v1423 = vadd.f32 %v1404, %v1414
        %v1424 = vadd.f32 %v1405, %v1415
        %v1425 = vadd.f32 %v1406, %v1416
        %v1426 = vadd.f32 %v1407, %v1417
        %v1427 = vadd.f32 %v1408, %v1418
        %v1428 = vadd.f32 %v1409, %v1419
        %v1429 = vadd.f32 %v1410, %v1420
        %v1430 = vadd.f32 %v1411, %v1421
        %v1431 = vperm.slane %v867, 4
        %v1432 = vmul.f32 %v916, %v1431
        %v1433 = vmul.f32 %v917, %v1431
        %v1434 = vmul.f32 %v918, %v1431
        %v1435 = vmul.f32 %v919, %v1431
        %v1436 = vmul.f32 %v920, %v1431
        %v1437 = vmul.f32 %v921, %v1431
        %v1438 = vmul.f32 %v922, %v1431
        %v1439 = vmul.f32 %v923, %v1431
        %v1440 = vmul.f32 %v924, %v1431
        %v1441 = vadd.f32 %v1422, %v1432
        %v1442 = vadd.f32 %v1423, %v1433
        %v1443 = vadd.f32 %v1424, %v1434
        %v1444 = vadd.f32 %v1425, %v1435
        %v1445 = vadd.f32 %v1426, %v1436
        %v1446 = vadd.f32 %v1427, %v1437
        %v1447 = vadd.f32 %v1428, %v1438
        %v1448 = vadd.f32 %v1429, %v1439
        %v1449 = vadd.f32 %v1430, %v1440
        %vm1459 = vcmask 1042432
        %v1460 = vrot.slane %v1441, 5
        %v1461 = vrot.slane %v1442, 5
        %v1462 = vsel %vm1459, %v1460, %v1461
        %v1463 = vrot.slane %v1443, 5
        %v1464 = vsel %vm1459, %v1461, %v1463
        %v1465 = vrot.slane %v1444, 5
        %v1466 = vsel %vm1459, %v1463, %v1465
        %v1467 = vrot.slane %v1445, 5
        %v1468 = vsel %vm1459, %v1465, %v1467
        %v1469 = vrot.slane %v1446, 5
        %v1470 = vsel %vm1459, %v1467, %v1469
        %v1471 = vrot.slane %v1447, 5
        %v1472 = vsel %vm1459, %v1469, %v1471
        %v1473 = vrot.slane %v1448, 5
        %v1474 = vsel %vm1459, %v1471, %v1473
        %v1475 = vrot.slane %v1449, 5
        %v1476 = vsel %vm1459, %v1473, %v1475
        %v1485 = vadd.f32 %v1375, %v1462
        %v1486 = vadd.f32 %v1376, %v1464
        %v1487 = vadd.f32 %v1377, %v1466
        %v1488 = vadd.f32 %v1378, %v1468
        %v1489 = vadd.f32 %v1379, %v1470
        %v1490 = vadd.f32 %v1380, %v1472
        %v1491 = vadd.f32 %v1381, %v1474
        %v1492 = vadd.f32 %v1382, %v1476
        %v1493 = vperm.slane %v864, 5
        %v1494 = vmul.f32 %v942, %v1493
        %v1495 = vmul.f32 %v880, %v1493
        %v1496 = vmul.f32 %v881, %v1493
        %v1497 = vmul.f32 %v882, %v1493
        %v1498 = vmul.f32 %v883, %v1493
        %v1499 = vmul.f32 %v884, %v1493
        %v1500 = vmul.f32 %v885, %v1493
        %v1501 = vmul.f32 %v886, %v1493
        %v1502 = vmul.f32 %v887, %v1493
        %v1503 = vperm.slane %v865, 5
        %v1504 = vmul.f32 %v880, %v1503
        %v1505 = vmul.f32 %v881, %v1503
        %v1506 = vmul.f32 %v882, %v1503
        %v1507 = vmul.f32 %v883, %v1503
        %v1508 = vmul.f32 %v884, %v1503
        %v1509 = vmul.f32 %v885, %v1503
        %v1510 = vmul.f32 %v886, %v1503
        %v1511 = vmul.f32 %v887, %v1503
        %v1512 = vmul.f32 %v888, %v1503
        %v1513 = vadd.f32 %v1494, %v1504
        %v1514 = vadd.f32 %v1495, %v1505
        %v1515 = vadd.f32 %v1496, %v1506
        %v1516 = vadd.f32 %v1497, %v1507
        %v1517 = vadd.f32 %v1498, %v1508
        %v1518 = vadd.f32 %v1499, %v1509
        %v1519 = vadd.f32 %v1500, %v1510
        %v1520 = vadd.f32 %v1501, %v1511
        %v1521 = vadd.f32 %v1502, %v1512
        %v1522 = vperm.slane %v866, 5
        %v1523 = vmul.f32 %v881, %v1522
        %v1524 = vmul.f32 %v882, %v1522
        %v1525 = vmul.f32 %v883, %v1522
        %v1526 = vmul.f32 %v884, %v1522
        %v1527 = vmul.f32 %v885, %v1522
        %v1528 = vmul.f32 %v886, %v1522
        %v1529 = vmul.f32 %v887, %v1522
        %v1530 = vmul.f32 %v888, %v1522
        %v1531 = vmul.f32 %v898, %v1522
        %v1532 = vadd.f32 %v1513, %v1523
        %v1533 = vadd.f32 %v1514, %v1524
        %v1534 = vadd.f32 %v1515, %v1525
        %v1535 = vadd.f32 %v1516, %v1526
        %v1536 = vadd.f32 %v1517, %v1527
        %v1537 = vadd.f32 %v1518, %v1528
        %v1538 = vadd.f32 %v1519, %v1529
        %v1539 = vadd.f32 %v1520, %v1530
        %v1540 = vadd.f32 %v1521, %v1531
        %v1541 = vperm.slane %v867, 5
        %v1542 = vmul.f32 %v916, %v1541
        %v1543 = vmul.f32 %v917, %v1541
        %v1544 = vmul.f32 %v918, %v1541
        %v1545 = vmul.f32 %v919, %v1541
        %v1546 = vmul.f32 %v920, %v1541
        %v1547 = vmul.f32 %v921, %v1541
        %v1548 = vmul.f32 %v922, %v1541
        %v1549 = vmul.f32 %v923, %v1541
        %v1550 = vmul.f32 %v924, %v1541
        %v1551 = vadd.f32 %v1532, %v1542
        %v1552 = vadd.f32 %v1533, %v1543
        %v1553 = vadd.f32 %v1534, %v1544
        %v1554 = vadd.f32 %v1535, %v1545
        %v1555 = vadd.f32 %v1536, %v1546
        %v1556 = vadd.f32 %v1537, %v1547
        %v1557 = vadd.f32 %v1538, %v1548
        %v1558 = vadd.f32 %v1539, %v1549
        %v1559 = vadd.f32 %v1540, %v1550
        %vm1569 = vcmask 1041408
        %v1570 = vrot.slane %v1551, 6
        %v1571 = vrot.slane %v1552, 6
        %v1572 = vsel %vm1569, %v1570, %v1571
        %v1573 = vrot.slane %v1553, 6
        %v1574 = vsel %vm1569, %v1571, %v1573
        %v1575 = vrot.slane %v1554, 6
        %v1576 = vsel %vm1569, %v1573, %v1575
        %v1577 = vrot.slane %v1555, 6
        %v1578 = vsel %vm1569, %v1575, %v1577
        %v1579 = vrot.slane %v1556, 6
        %v1580 = vsel %vm1569, %v1577, %v1579
        %v1581 = vrot.slane %v1557, 6
        %v1582 = vsel %vm1569, %v1579, %v1581
        %v1583 = vrot.slane %v1558, 6
        %v1584 = vsel %vm1569, %v1581, %v1583
        %v1585 = vrot.slane %v1559, 6
        %v1586 = vsel %vm1569, %v1583, %v1585
        %v1595 = vadd.f32 %v1485, %v1572
        %v1596 = vadd.f32 %v1486, %v1574
        %v1597 = vadd.f32 %v1487, %v1576
        %v1598 = vadd.f32 %v1488, %v1578
        %v1599 = vadd.f32 %v1489, %v1580
        %v1600 = vadd.f32 %v1490, %v1582
        %v1601 = vadd.f32 %v1491, %v1584
        %v1602 = vadd.f32 %v1492, %v1586
        %v1603 = vperm.slane %v864, 6
        %v1604 = vmul.f32 %v942, %v1603
        %v1605 = vmul.f32 %v880, %v1603
        %v1606 = vmul.f32 %v881, %v1603
        %v1607 = vmul.f32 %v882, %v1603
        %v1608 = vmul.f32 %v883, %v1603
        %v1609 = vmul.f32 %v884, %v1603
        %v1610 = vmul.f32 %v885, %v1603
        %v1611 = vmul.f32 %v886, %v1603
        %v1612 = vmul.f32 %v887, %v1603
        %v1613 = vperm.slane %v865, 6
        %v1614 = vmul.f32 %v880, %v1613
        %v1615 = vmul.f32 %v881, %v1613
        %v1616 = vmul.f32 %v882, %v1613
        %v1617 = vmul.f32 %v883, %v1613
        %v1618 = vmul.f32 %v884, %v1613
        %v1619 = vmul.f32 %v885, %v1613
        %v1620 = vmul.f32 %v886, %v1613
        %v1621 = vmul.f32 %v887, %v1613
        %v1622 = vmul.f32 %v888, %v1613
        %v1623 = vadd.f32 %v1604, %v1614
        %v1624 = vadd.f32 %v1605, %v1615
        %v1625 = vadd.f32 %v1606, %v1616
        %v1626 = vadd.f32 %v1607, %v1617
        %v1627 = vadd.f32 %v1608, %v1618
        %v1628 = vadd.f32 %v1609, %v1619
        %v1629 = vadd.f32 %v1610, %v1620
        %v1630 = vadd.f32 %v1611, %v1621
        %v1631 = vadd.f32 %v1612, %v1622
        %v1632 = vperm.slane %v866, 6
        %v1633 = vmul.f32 %v881, %v1632
        %v1634 = vmul.f32 %v882, %v1632
        %v1635 = vmul.f32 %v883, %v1632
        %v1636 = vmul.f32 %v884, %v1632
        %v1637 = vmul.f32 %v885, %v1632
        %v1638 = vmul.f32 %v886, %v1632
        %v1639 = vmul.f32 %v887, %v1632
        %v1640 = vmul.f32 %v888, %v1632
        %v1641 = vmul.f32 %v898, %v1632
        %v1642 = vadd.f32 %v1623, %v1633
        %v1643 = vadd.f32 %v1624, %v1634
        %v1644 = vadd.f32 %v1625, %v1635
        %v1645 = vadd.f32 %v1626, %v1636
        %v1646 = vadd.f32 %v1627, %v1637
        %v1647 = vadd.f32 %v1628, %v1638
        %v1648 = vadd.f32 %v1629, %v1639
        %v1649 = vadd.f32 %v1630, %v1640
        %v1650 = vadd.f32 %v1631, %v1641
        %v1651 = vperm.slane %v867, 6
        %v1652 = vmul.f32 %v916, %v1651
        %v1653 = vmul.f32 %v917, %v1651
        %v1654 = vmul.f32 %v918, %v1651
        %v1655 = vmul.f32 %v919, %v1651
        %v1656 = vmul.f32 %v920, %v1651
        %v1657 = vmul.f32 %v921, %v1651
        %v1658 = vmul.f32 %v922, %v1651
        %v1659 = vmul.f32 %v923, %v1651
        %v1660 = vmul.f32 %v924, %v1651
        %v1661 = vadd.f32 %v1642, %v1652
        %v1662 = vadd.f32 %v1643, %v1653
        %v1663 = vadd.f32 %v1644, %v1654
        %v1664 = vadd.f32 %v1645, %v1655
        %v1665 = vadd.f32 %v1646, %v1656
        %v1666 = vadd.f32 %v1647, %v1657
        %v1667 = vadd.f32 %v1648, %v1658
        %v1668 = vadd.f32 %v1649, %v1659
        %v1669 = vadd.f32 %v1650, %v1660
        %vm1679 = vcmask 1040384
        %v1680 = vrot.slane %v1661, 7
        %v1681 = vrot.slane %v1662, 7
        %v1682 = vsel %vm1679, %v1680, %v1681
        %v1683 = vrot.slane %v1663, 7
        %v1684 = vsel %vm1679, %v1681, %v1683
        %v1685 = vrot.slane %v1664, 7
        %v1686 = vsel %vm1679, %v1683, %v1685
        %v1687 = vrot.slane %v1665, 7
        %v1688 = vsel %vm1679, %v1685, %v1687
        %v1689 = vrot.slane %v1666, 7
        %v1690 = vsel %vm1679, %v1687, %v1689
        %v1691 = vrot.slane %v1667, 7
        %v1692 = vsel %vm1679, %v1689, %v1691
        %v1693 = vrot.slane %v1668, 7
        %v1694 = vsel %vm1679, %v1691, %v1693
        %v1695 = vrot.slane %v1669, 7
        %v1696 = vsel %vm1679, %v1693, %v1695
        %v1705 = vadd.f32 %v1595, %v1682
        %v1706 = vadd.f32 %v1596, %v1684
        %v1707 = vadd.f32 %v1597, %v1686
        %v1708 = vadd.f32 %v1598, %v1688
        %v1709 = vadd.f32 %v1599, %v1690
        %v1710 = vadd.f32 %v1600, %v1692
        %v1711 = vadd.f32 %v1601, %v1694
        %v1712 = vadd.f32 %v1602, %v1696
        %v1713 = vld [vmem:[%s4] sm:$0x1]
        %v1715 = vperm.slane %v1713, 0
        %v1717 = vadd.f32 %v1705, %v1715
        %v1718 = vadd.f32 %v1706, %v1715
        %v1719 = vadd.f32 %v1707, %v1715
        %v1720 = vadd.f32 %v1708, %v1715
        %v1721 = vadd.f32 %v1709, %v1715
        %v1722 = vadd.f32 %v1710, %v1715
        %v1723 = vadd.f32 %v1711, %v1715
        %v1724 = vadd.f32 %v1712, %v1715
        %v1725 = vxor.u32 %v1717, 2147483648
        %v1726 = vxor.u32 %v1718, 2147483648
        %v1727 = vxor.u32 %v1719, 2147483648
        %v1728 = vxor.u32 %v1720, 2147483648
        %v1729 = vxor.u32 %v1721, 2147483648
        %v1730 = vxor.u32 %v1722, 2147483648
        %v1731 = vxor.u32 %v1723, 2147483648
        %v1732 = vxor.u32 %v1724, 2147483648
        %v1733 = vmul.f32 %v1725, 1.442695
        %v1734 = vpow.pop %v1733
        %v1735 = vmul.f32 %v1726, 1.442695
        %v1736 = vpow.pop %v1735
        %v1737 = vmul.f32 %v1727, 1.442695
        %v1738 = vpow.pop %v1737
        %v1739 = vmul.f32 %v1728, 1.442695
        %v1740 = vpow.pop %v1739
        %v1741 = vmul.f32 %v1729, 1.442695
        %v1742 = vpow.pop %v1741
        %v1743 = vmul.f32 %v1730, 1.442695
        %v1744 = vpow.pop %v1743
        %v1745 = vmul.f32 %v1731, 1.442695
        %v1746 = vpow.pop %v1745
        %v1747 = vmul.f32 %v1732, 1.442695
        %v1748 = vpow.pop %v1747
        %v1749 = vadd.f32 %v1734, 1.0
        %v1750 = vadd.f32 %v1736, 1.0
        %v1751 = vadd.f32 %v1738, 1.0
        %v1752 = vadd.f32 %v1740, 1.0
        %v1753 = vadd.f32 %v1742, 1.0
        %v1754 = vadd.f32 %v1744, 1.0
        %v1755 = vadd.f32 %v1746, 1.0
        %v1756 = vadd.f32 %v1748, 1.0
        %v1757 = vrcp.pop %v1749
        %v1758 = vmul.f32 %v1749, %v1757
        %v1759 = vsub.f32 1.0, %v1758
        %v1760 = vmul.f32 %v1757, %v1759
        %v1761 = vadd.f32 %v1757, %v1760
        %vm1762 = vweird.f32 %v1749
        %vm1763 = vweird.f32 %v1757
        %vm1764 = vmor %vm1762, %vm1763
        %v1765 = vsel %vm1764, %v1757, %v1761
        %v1766 = vand.u32 2147483647, %v1749
        %vm1767 = vcmp.eq.f32.partialorder %v1766, 8.507059e+37
        %v1768 = vand.u32 %v1749, 2147483648
        %v1769 = vor.u32 1.1754944e-38, %v1768
        %v1770 = vsel %vm1767, %v1769, %v1765
        %v1771 = vmul.f32 1.0, %v1770
        %v1772 = vrcp.pop %v1750
        %v1773 = vmul.f32 %v1750, %v1772
        %v1774 = vsub.f32 1.0, %v1773
        %v1775 = vmul.f32 %v1772, %v1774
        %v1776 = vadd.f32 %v1772, %v1775
        %vm1777 = vweird.f32 %v1750
        %vm1778 = vweird.f32 %v1772
        %vm1779 = vmor %vm1777, %vm1778
        %v1780 = vsel %vm1779, %v1772, %v1776
        %v1781 = vand.u32 2147483647, %v1750
        %vm1782 = vcmp.eq.f32.partialorder %v1781, 8.507059e+37
        %v1783 = vand.u32 %v1750, 2147483648
        %v1784 = vor.u32 1.1754944e-38, %v1783
        %v1785 = vsel %vm1782, %v1784, %v1780
        %v1786 = vmul.f32 1.0, %v1785
        %v1787 = vrcp.pop %v1751
        %v1788 = vmul.f32 %v1751, %v1787
        %v1789 = vsub.f32 1.0, %v1788
        %v1790 = vmul.f32 %v1787, %v1789
        %v1791 = vadd.f32 %v1787, %v1790
        %vm1792 = vweird.f32 %v1751
        %vm1793 = vweird.f32 %v1787
        %vm1794 = vmor %vm1792, %vm1793
        %v1795 = vsel %vm1794, %v1787, %v1791
        %v1796 = vand.u32 2147483647, %v1751
        %vm1797 = vcmp.eq.f32.partialorder %v1796, 8.507059e+37
        %v1798 = vand.u32 %v1751, 2147483648
        %v1799 = vor.u32 1.1754944e-38, %v1798
        %v1800 = vsel %vm1797, %v1799, %v1795
        %v1801 = vmul.f32 1.0, %v1800
        %v1802 = vrcp.pop %v1752
        %v1803 = vmul.f32 %v1752, %v1802
        %v1804 = vsub.f32 1.0, %v1803
        %v1805 = vmul.f32 %v1802, %v1804
        %v1806 = vadd.f32 %v1802, %v1805
        %vm1807 = vweird.f32 %v1752
        %vm1808 = vweird.f32 %v1802
        %vm1809 = vmor %vm1807, %vm1808
        %v1810 = vsel %vm1809, %v1802, %v1806
        %v1811 = vand.u32 2147483647, %v1752
        %vm1812 = vcmp.eq.f32.partialorder %v1811, 8.507059e+37
        %v1813 = vand.u32 %v1752, 2147483648
        %v1814 = vor.u32 1.1754944e-38, %v1813
        %v1815 = vsel %vm1812, %v1814, %v1810
        %v1816 = vmul.f32 1.0, %v1815
        %v1817 = vrcp.pop %v1753
        %v1818 = vmul.f32 %v1753, %v1817
        %v1819 = vsub.f32 1.0, %v1818
        %v1820 = vmul.f32 %v1817, %v1819
        %v1821 = vadd.f32 %v1817, %v1820
        %vm1822 = vweird.f32 %v1753
        %vm1823 = vweird.f32 %v1817
        %vm1824 = vmor %vm1822, %vm1823
        %v1825 = vsel %vm1824, %v1817, %v1821
        %v1826 = vand.u32 2147483647, %v1753
        %vm1827 = vcmp.eq.f32.partialorder %v1826, 8.507059e+37
        %v1828 = vand.u32 %v1753, 2147483648
        %v1829 = vor.u32 1.1754944e-38, %v1828
        %v1830 = vsel %vm1827, %v1829, %v1825
        %v1831 = vmul.f32 1.0, %v1830
        %v1832 = vrcp.pop %v1754
        %v1833 = vmul.f32 %v1754, %v1832
        %v1834 = vsub.f32 1.0, %v1833
        %v1835 = vmul.f32 %v1832, %v1834
        %v1836 = vadd.f32 %v1832, %v1835
        %vm1837 = vweird.f32 %v1754
        %vm1838 = vweird.f32 %v1832
        %vm1839 = vmor %vm1837, %vm1838
        %v1840 = vsel %vm1839, %v1832, %v1836
        %v1841 = vand.u32 2147483647, %v1754
        %vm1842 = vcmp.eq.f32.partialorder %v1841, 8.507059e+37
        %v1843 = vand.u32 %v1754, 2147483648
        %v1844 = vor.u32 1.1754944e-38, %v1843
        %v1845 = vsel %vm1842, %v1844, %v1840
        %v1846 = vmul.f32 1.0, %v1845
        %v1847 = vrcp.pop %v1755
        %v1848 = vmul.f32 %v1755, %v1847
        %v1849 = vsub.f32 1.0, %v1848
        %v1850 = vmul.f32 %v1847, %v1849
        %v1851 = vadd.f32 %v1847, %v1850
        %vm1852 = vweird.f32 %v1755
        %vm1853 = vweird.f32 %v1847
        %vm1854 = vmor %vm1852, %vm1853
        %v1855 = vsel %vm1854, %v1847, %v1851
        %v1856 = vand.u32 2147483647, %v1755
        %vm1857 = vcmp.eq.f32.partialorder %v1856, 8.507059e+37
        %v1858 = vand.u32 %v1755, 2147483648
        %v1859 = vor.u32 1.1754944e-38, %v1858
        %v1860 = vsel %vm1857, %v1859, %v1855
        %v1861 = vmul.f32 1.0, %v1860
        %v1862 = vrcp.pop %v1756
        %v1863 = vmul.f32 %v1756, %v1862
        %v1864 = vsub.f32 1.0, %v1863
        %v1865 = vmul.f32 %v1862, %v1864
        %v1866 = vadd.f32 %v1862, %v1865
        %vm1867 = vweird.f32 %v1756
        %vm1868 = vweird.f32 %v1862
        %vm1869 = vmor %vm1867, %vm1868
        %v1870 = vsel %vm1869, %v1862, %v1866
        %v1871 = vand.u32 2147483647, %v1756
        %vm1872 = vcmp.eq.f32.partialorder %v1871, 8.507059e+37
        %v1873 = vand.u32 %v1756, 2147483648
        %v1874 = vor.u32 1.1754944e-38, %v1873
        %v1875 = vsel %vm1872, %v1874, %v1870
        %v1876 = vmul.f32 1.0, %v1875
        %v1877 = vmul.f32 %v1717, %v1771
        %v1878 = vmul.f32 %v1718, %v1786
        %v1879 = vmul.f32 %v1719, %v1801
        %v1880 = vmul.f32 %v1720, %v1816
        %v1881 = vmul.f32 %v1721, %v1831
        %v1882 = vmul.f32 %v1722, %v1846
        %v1883 = vmul.f32 %v1723, %v1861
        %v1884 = vmul.f32 %v1724, %v1876
        %v1885 = vpack.c.bf16 %v1878, %v1877
        %v1886 = vpack.c.bf16 %v1880, %v1879
        %v1887 = vpack.c.bf16 %v1882, %v1881
        %v1888 = vpack.c.bf16 %v1884, %v1883
        %v1889 = vld [vmem:[#allocation11] sm:$0xf]
        %v1890 = vld [vmem:[#allocation11 + $0x4] sm:$0xf]
        %v1891 = vld [vmem:[#allocation11 + $0x8] sm:$0xf]
        %v1892 = vld [vmem:[#allocation11 + $0xc] sm:$0xf]
        %v1893 = vld [vmem:[#allocation11 + $0x10] sm:$0xf]
        %v1894 = vld [vmem:[#allocation11 + $0x14] sm:$0xf]
        %v1895 = vld [vmem:[#allocation11 + $0x18] sm:$0xf]
        %v1896 = vld [vmem:[#allocation11 + $0x1c] sm:$0xf]
        %v1897 = vld [vmem:[#allocation11 + $0x20] sm:$0xf]
        %v1898 = vld [vmem:[#allocation11 + $0x24] sm:$0xf]
        %v1899 = vld [vmem:[#allocation11 + $0x28] sm:$0xf]
        %v1900 = vld [vmem:[#allocation11 + $0x2c] sm:$0xf]
        %v1901 = vld [vmem:[#allocation11 + $0x30] sm:$0xf]
        %v1902 = vld [vmem:[#allocation11 + $0x34] sm:$0xf]
        %v1903 = vld [vmem:[#allocation11 + $0x38] sm:$0xf]
        %v1904 = vld [vmem:[#allocation11 + $0x3c] sm:$0xf]
        %v1905 = vld [vmem:[%s6] sm:$0x1]
        %v1907 = vperm.slane %v1905, 0
        %v1925 = vunpack.c.l.b16 %v1889
        %v1926 = vunpack.c.l.b16 %v1890
        %v1927 = vunpack.c.l.b16 %v1891
        %v1928 = vunpack.c.l.b16 %v1892
        %v1929 = vunpack.c.l.b16 %v1893
        %v1930 = vunpack.c.l.b16 %v1894
        %v1931 = vunpack.c.l.b16 %v1895
        %v1932 = vunpack.c.l.b16 %v1896
        %v1933 = vunpack.c.l.b16 %v1897
        %v1934 = vunpack.c.l.b16 %v1898
        %v1935 = vunpack.c.l.b16 %v1899
        %v1936 = vunpack.c.l.b16 %v1900
        %v1937 = vunpack.c.l.b16 %v1901
        %v1938 = vunpack.c.l.b16 %v1902
        %v1939 = vunpack.c.l.b16 %v1903
        %v1940 = vunpack.c.l.b16 %v1904
        %v1941 = vpack.c.b16 %v1926, %v1925
        %v1942 = vpack.c.b16 %v1928, %v1927
        %v1943 = vpack.c.b16 %v1930, %v1929
        %v1944 = vpack.c.b16 %v1932, %v1931
        %v1945 = vpack.c.b16 %v1934, %v1933
        %v1946 = vpack.c.b16 %v1936, %v1935
        %v1947 = vpack.c.b16 %v1938, %v1937
        %v1948 = vpack.c.b16 %v1940, %v1939
        %1957 = vmatpush.bf16.msra.mxu0 %v1948
        %1958 = vmatpush.bf16.msra.mxu0 %v1947
        %1959 = vmatpush.bf16.msra.mxu0 %v1946
        %1960 = vmatpush.bf16.msra.mxu0 %v1945
        %1961 = vmatpush.bf16.msra.mxu0 %v1944
        %1962 = vmatpush.bf16.msra.mxu0 %v1943
        %1963 = vmatpush.bf16.msra.mxu0 %v1942
        %1964 = vmatpush.bf16.msra.mxu0 %v1941
        %1965 = vmatmul.bf16.gmra.mxu0 %v1885
        %v1966 = vpop.f32.mrf.mxu0
        %v1967 = vadd.f32 %v1907, %v1966
        %v1968 = vpop.f32.mrf.mxu0
        %v1969 = vadd.f32 %v1907, %v1968
        %1970 = vmatmul.bf16.gmra.mxu0 %v1886
        %v1971 = vpop.f32.mrf.mxu0
        %v1972 = vadd.f32 %v1907, %v1971
        %v1973 = vpop.f32.mrf.mxu0
        %v1974 = vadd.f32 %v1907, %v1973
        %1975 = vmatmul.bf16.gmra.mxu0 %v1887
        %v1976 = vpop.f32.mrf.mxu0
        %v1977 = vadd.f32 %v1907, %v1976
        %v1978 = vpop.f32.mrf.mxu0
        %v1979 = vadd.f32 %v1907, %v1978
        %1980 = vmatmul.bf16.gmra.mxu0 %v1888
        %v1981 = vpop.f32.mrf.mxu0
        %v1982 = vadd.f32 %v1907, %v1981
        %v1983 = vpop.f32.mrf.mxu0
        %v1984 = vadd.f32 %v1907, %v1983
        %1985 = vdwg.mxu0
        %v1986 = vld [vmem:[%s311] sm:$0xff]
        %v1987 = vld [vmem:[%s311 + $0x8] sm:$0xff]
        %v1988 = vld [vmem:[%s311 + $0x10] sm:$0xff]
        %v1989 = vld [vmem:[%s311 + $0x18] sm:$0xff]
        %v1990 = vld [vmem:[%s311 + $0x20] sm:$0xff]
        %v1991 = vld [vmem:[%s311 + $0x28] sm:$0xff]
        %v1992 = vld [vmem:[%s311 + $0x30] sm:$0xff]
        %v1993 = vld [vmem:[%s311 + $0x38] sm:$0xff]
        %v1994 = vadd.f32 %v1967, %v1986
        %v1995 = vadd.f32 %v1969, %v1987
        %v1996 = vadd.f32 %v1972, %v1988
        %v1997 = vadd.f32 %v1974, %v1989
        %v1998 = vadd.f32 %v1977, %v1990
        %v1999 = vadd.f32 %v1979, %v1991
        %v2000 = vadd.f32 %v1982, %v1992
        %v2001 = vadd.f32 %v1984, %v1993
        %2002 = vst [vmem:[%s362] sm:$0xff] %v1994
        %2003 = vst [vmem:[%s362 + $0x8] sm:$0xff] %v1995
        %2004 = vst [vmem:[%s362 + $0x10] sm:$0xff] %v1996
        %2005 = vst [vmem:[%s362 + $0x18] sm:$0xff] %v1997
        %2006 = vst [vmem:[%s362 + $0x20] sm:$0xff] %v1998
        %2007 = vst [vmem:[%s362 + $0x28] sm:$0xff] %v1999
        %2008 = vst [vmem:[%s362 + $0x30] sm:$0xff] %v2000
        %2009 = vst [vmem:[%s362 + $0x38] sm:$0xff] %v2001
        %s2010 = sand.u32 %s186, 1
        %s2011 = scalar_lea.sflag [#allocation5], %s2010
        %s2012 = sand.u32 %s186, 1
        %s2013 = smul.addr %s2012, 64
        %s2014 = scalar_lea.vmem [#allocation12], %s2013
        // Predicated region
        $region69: #{tpu_custom_call.1} parent=47 // pred_check
          %p2015 = pneg %p196
        $region70: #{tpu_custom_call.1} parent=47 // pred_check_branch
          %2017 = sbr.rel (%p2015) target = $region72
        $region71: #{tpu_custom_call.1} parent=47 // pred_region
          %s2018 = smul.u32 8, %s26
          %2020 = vsyncadd %s2011, 0
          %s2021 = smul.addr %s2018, 8
          %s2022 = scalar_lea.hbm %s7, %s2021
          %s2023 = sshll.u32 %s2014, 4
          %s2024 = int_to_ptr.vmem [resolvable:$true] %s2023
          %s2025 = sshll.u32 %s2022, 4
          %s2026 = int_to_ptr.hbm [resolvable:$true] %s2025
          %2031 = dma.vmem_to_hbm [thread:$0]  %s2024, 1024, %s2026, %s2011, 128, 128, 8
        $region72: #{tpu_custom_call.1} parent=47 // pred_fallthru
          _
      $region48: #{tpu_custom_call.1} parent=5 // pred_fallthru
        _
      %p2032 = scmp.le.s32.totalorder 2, %s21
      // Predicated region
      $region73: #{tpu_custom_call.1} parent=5 // pred_check
        %p2033 = pneg %p2032
      $region74: #{tpu_custom_call.1} parent=5 // pred_check_branch
        %2035 = sbr.rel (%p2033) target = $region76
      $region75: #{tpu_custom_call.1} parent=5 // pred_region
        %s2036 = ssub.s32 %s21, 2
        // Predicated region
        $region77: #{tpu_custom_call.1} parent=75 // pred_check
          %p2037 = pneg %p202
        $region78: #{tpu_custom_call.1} parent=75 // pred_check_branch
          %2039 = sbr.rel (%p2037) target = $region80
        $region79: #{tpu_custom_call.1} parent=75 // pred_region
          %s2040 = sand.u32 %s187, 1
          %s2041 = scalar_lea.sflag [#allocation5], %s2040
          %s2042 = sand.u32 %s187, 1
          %s2043 = smul.addr %s2042, 64
          %s2044 = scalar_lea.vmem [#allocation12], %s2043
          %2046 = dma.done %s2041, 1024
        $region80: #{tpu_custom_call.1} parent=75 // pred_fallthru
          _
      $region76: #{tpu_custom_call.1} parent=5 // pred_fallthru
        _
    $region6: #{tpu_custom_call.1} parent=1 // loop_footer
      %s25 = sadd.s32 1, %s21
    $region7: #{tpu_custom_call.1} parent=1 // loop_footer_branch
      %20 = sbr.rel target = $region3
    $region8: #{tpu_custom_call.1} parent=1 // loop_exit
      _
    %2047 = vsyncpa [#allocation4], 1
    %s2048 = scalar_lea.sflag [#allocation4], 1
    %2049 = vsyncpa %s2048, 1
    %2050 = vsyncpa [#allocation7], 1
    %2051 = vsyncpa [#allocation10], 1
    %2052 = vsyncpa [#allocation5], 1
    %s2053 = scalar_lea.sflag [#allocation5], 1
    %2054 = vsyncpa %s2053, 1

// kernel: tpu_custom_call.1
$region0: #{tpu_custom_call.1}
  #allocation0 [shape = 'u32[]', space=smem, size = 0x4, offset = 0x4, fixed_abs, tag = 'smem constant byte address 0x4 - core index']
  #allocation1 [shape = 'u32[72,128]{1,0:T(1,128)}', space=vmem, size = 0x9000, scoped, tag = 'internal scratch']
  #allocation2 [shape = 'f32[1,96,128]{2,1,0:T(8,128)}', space=vmem, size = 0xc000, scoped, tag = 'scratch operand']
  %s0 = inlined_call_operand.hbm [shape: f32[128,128], index: 0, kind: input, shape index: {}]
  %s1 = inlined_call_operand.hbm [shape: bf16[128,256], index: 1, kind: input, shape index: {}]
  %s2 = inlined_call_operand.hbm [shape: f32[1,256], index: 2, kind: input, shape index: {}]
  %s3 = inlined_call_operand.hbm [shape: f32[31,128], index: 3, kind: input, shape index: {}]
  %s4 = inlined_call_operand.vmem [shape: f32[1,128], index: 4, kind: input, shape index: {}]
  %s5 = inlined_call_operand.hbm [shape: bf16[128,128], index: 5, kind: input, shape index: {}]
  %s6 = inlined_call_operand.vmem [shape: f32[1,128], index: 6, kind: input, shape index: {}]
  %s7 = inlined_call_operand.hbm [shape: f32[128,128], index: 7, kind: output, shape index: {}]
  %s8 = sld [smem:[#allocation0]]
  $region81: #{tpu_custom_call.1} parent=0
    _
  %s10 = ssub.s32 1, %s8
  %s11 = scalar_select 0, %s10, %s8
  $region1: #{tpu_custom_call.1} parent=0
    #allocation3 [shape = 'u8[65536]{0}', space=vmem, size = 0x10000, scoped, tag = 'input window, operand 0']
    #allocation4 [shape = 's32[2]{0}', space=sflag, size = 0x8, scoped, tag = 'scoped memory for tpu_custom_call.1']
    #allocation5 [shape = 's32[2]{0}', space=sflag, size = 0x8, scoped, tag = 'scoped memory for tpu_custom_call.1']
    #allocation6 [shape = 'u8[65536]{0}', space=vmem, size = 0x10000, scoped, tag = 'input window, operand 1, single buffered']
    #allocation7 [shape = 's32[1]{0}', space=sflag, size = 0x4, scoped, tag = 'scoped memory for tpu_custom_call.1']
    #allocation8 [shape = 'u8[1024]{0}', space=vmem, size = 0x400, scoped, tag = 'input window, operand 2, single buffered']
    #allocation9 [shape = 'u8[16384]{0}', space=vmem, size = 0x4000, scoped, tag = 'input window, operand 3, single buffered']
    #allocation10 [shape = 's32[1]{0}', space=sflag, size = 0x4, scoped, tag = 'scoped memory for tpu_custom_call.1']
    #allocation11 [shape = 'u8[32768]{0}', space=vmem, size = 0x8000, scoped, tag = 'input window, operand 5, single buffered']
    #allocation12 [shape = 'u8[65536]{0}', space=vmem, size = 0x10000, scoped, tag = 'output window, operand 0']
    %12 = vsyncpa [#allocation4], 0
    %s13 = scalar_lea.sflag [#allocation4], 1
    %14 = vsyncpa %s13, 0
    %15 = vsyncpa [#allocation7], 0
    %16 = vsyncpa [#allocation10], 0
    %17 = vsyncpa [#allocation5], 0
    %s18 = scalar_lea.sflag [#allocation5], 1
    %19 = vsyncpa %s18, 0
    loop: start=0, step=1, limit=4
    $region2: #{tpu_custom_call.1} parent=1 // loop_pre_header
      _
    $region3: #{tpu_custom_call.1} parent=1 // loop_header
      %s21 = sphi 0, %s25
      %p22 = scmp.ge.s32.totalorder %s21, 4
      %s31 = sphi 0, %s33
      %s34 = sphi 0, %s31
      %s35 = sphi 0, %s34
      %s51 = sphi 0, %s35
      %s55 = sphi 0, %s55
      %s57 = sphi 0, %s55
      %s58 = sphi 0, %s57
      %s72 = sphi 0, %s58
      %s76 = sphi 0, %s76
      %s78 = sphi 0, %s76
      %s79 = sphi 0, %s78
      %s93 = sphi 0, %s79
      %s97 = sphi 0, %s97
      %s99 = sphi 0, %s97
      %s100 = sphi 0, %s99
      %s114 = sphi 0, %s100
      %s118 = sphi 0, %s118
      %s120 = sphi 0, %s118
      %s121 = sphi 0, %s120
      %s135 = sphi 0, %s121
      %s139 = sphi 0, %s139
      %s141 = sphi 0, %s139
      %s142 = sphi 0, %s141
      %s156 = sphi 0, %s142
      %s160 = sphi 0, %s160
      %s162 = sphi 0, %s160
      %s163 = sphi 0, %s162
      %s177 = sphi 0, %s163
      %s183 = sphi 0, %s185
      %s186 = sphi 0, %s183
      %s187 = sphi 0, %s186
      %s203 = sphi 0, %s187
    $region4: #{tpu_custom_call.1} parent=1 // loop_header_branch
      %24 = sbr.rel (%p22) target = $region8
    $region5: #{tpu_custom_call.1} parent=1 // loop_body
      %s26 = ssub.s32 %s21, 1
      %s27 = ssub.s32 %s21, 2
      %s28 = sadd.s32 %s21, 1
      %s29 = ssub.s32 %s21, %s28
      %p30 = scmp.eq.s32.totalorder %s29, 0
      %s32 = sadd.s32 %s31, 1
      %s33 = scalar_select %p30, %s31, %s32
      %p36 = pneg %p30
      %p37 = scmp.eq.s32.totalorder %s21, 1
      %p38 = por %p36, %p37
      %p39 = scmp.ne.s32.totalorder %s31, %s34
      %p40 = scmp.eq.s32.totalorder %s21, 0
      %p41 = por %p39, %p40
      %p42 = scmp.ne.s32.totalorder %s31, %s34
      %p43 = scmp.eq.s32.totalorder %s26, 1
      %p44 = por %p42, %p43
      %p45 = scmp.ne.s32.totalorder %s34, %s35
      %p46 = scmp.eq.s32.totalorder %s26, 0
      %p47 = por %p45, %p46
      %p48 = scmp.ne.s32.totalorder %s34, %s35
      %p49 = scmp.eq.s32.totalorder %s27, 1
      %p50 = por %p48, %p49
      %p52 = scmp.ne.s32.totalorder %s35, %s51
      %p53 = scmp.eq.s32.totalorder %s27, 0
      %p54 = por %p52, %p53
      %s56 = sadd.s32 %s55, 1
      %p59 = scmp.eq.s32.totalorder %s21, 1
      %p60 = scmp.ne.s32.totalorder %s55, %s57
      %p61 = scmp.eq.s32.totalorder %s21, 0
      %p62 = por %p60, %p61
      %p63 = scmp.ne.s32.totalorder %s55, %s57
      %p64 = scmp.eq.s32.totalorder %s26, 1
      %p65 = por %p63, %p64
      %p66 = scmp.ne.s32.totalorder %s57, %s58
      %p67 = scmp.eq.s32.totalorder %s26, 0
      %p68 = por %p66, %p67
      %p69 = scmp.ne.s32.totalorder %s57, %s58
      %p70 = scmp.eq.s32.totalorder %s27, 1
      %p71 = por %p69, %p70
      %p73 = scmp.ne.s32.totalorder %s58, %s72
      %p74 = scmp.eq.s32.totalorder %s27, 0
      %p75 = por %p73, %p74
      %s77 = sadd.s32 %s76, 1
      %p80 = scmp.eq.s32.totalorder %s21, 1
      %p81 = scmp.ne.s32.totalorder %s76, %s78
      %p82 = scmp.eq.s32.totalorder %s21, 0
      %p83 = por %p81, %p82
      %p84 = scmp.ne.s32.totalorder %s76, %s78
      %p85 = scmp.eq.s32.totalorder %s26, 1
      %p86 = por %p84, %p85
      %p87 = scmp.ne.s32.totalorder %s78, %s79
      %p88 = scmp.eq.s32.totalorder %s26, 0
      %p89 = por %p87, %p88
      %p90 = scmp.ne.s32.totalorder %s78, %s79
      %p91 = scmp.eq.s32.totalorder %s27, 1
      %p92 = por %p90, %p91
      %p94 = scmp.ne.s32.totalorder %s79, %s93
      %p95 = scmp.eq.s32.totalorder %s27, 0
      %p96 = por %p94, %p95
      %s98 = sadd.s32 %s97, 1
      %p101 = scmp.eq.s32.totalorder %s21, 1
      %p102 = scmp.ne.s32.totalorder %s97, %s99
      %p103 = scmp.eq.s32.totalorder %s21, 0
      %p104 = por %p102, %p103
      %p105 = scmp.ne.s32.totalorder %s97, %s99
      %p106 = scmp.eq.s32.totalorder %s26, 1
      %p107 = por %p105, %p106
      %p108 = scmp.ne.s32.totalorder %s99, %s100
      %p109 = scmp.eq.s32.totalorder %s26, 0
      %p110 = por %p108, %p109
      %p111 = scmp.ne.s32.totalorder %s99, %s100
      %p112 = scmp.eq.s32.totalorder %s27, 1
      %p113 = por %p111, %p112
      %p115 = scmp.ne.s32.totalorder %s100, %s114
      %p116 = scmp.eq.s32.totalorder %s27, 0
      %p117 = por %p115, %p116
      %s119 = sadd.s32 %s118, 1
      %p122 = scmp.eq.s32.totalorder %s21, 1
      %p123 = scmp.ne.s32.totalorder %s118, %s120
      %p124 = scmp.eq.s32.totalorder %s21, 0
      %p125 = por %p123, %p124
      %p126 = scmp.ne.s32.totalorder %s118, %s120
      %p127 = scmp.eq.s32.totalorder %s26, 1
      %p128 = por %p126, %p127
      %p129 = scmp.ne.s32.totalorder %s120, %s121
      %p130 = scmp.eq.s32.totalorder %s26, 0
      %p131 = por %p129, %p130
      %p132 = scmp.ne.s32.totalorder %s120, %s121
      %p133 = scmp.eq.s32.totalorder %s27, 1
      %p134 = por %p132, %p133
      %p136 = scmp.ne.s32.totalorder %s121, %s135
      %p137 = scmp.eq.s32.totalorder %s27, 0
      %p138 = por %p136, %p137
      %s140 = sadd.s32 %s139, 1
      %p143 = scmp.eq.s32.totalorder %s21, 1
      %p144 = scmp.ne.s32.totalorder %s139, %s141
      %p145 = scmp.eq.s32.totalorder %s21, 0
      %p146 = por %p144, %p145
      %p147 = scmp.ne.s32.totalorder %s139, %s141
      %p148 = scmp.eq.s32.totalorder %s26, 1
      %p149 = por %p147, %p148
      %p150 = scmp.ne.s32.totalorder %s141, %s142
      %p151 = scmp.eq.s32.totalorder %s26, 0
      %p152 = por %p150, %p151
      %p153 = scmp.ne.s32.totalorder %s141, %s142
      %p154 = scmp.eq.s32.totalorder %s27, 1
      %p155 = por %p153, %p154
      %p157 = scmp.ne.s32.totalorder %s142, %s156
      %p158 = scmp.eq.s32.totalorder %s27, 0
      %p159 = por %p157, %p158
      %s161 = sadd.s32 %s160, 1
      %p164 = scmp.eq.s32.totalorder %s21, 1
      %p165 = scmp.ne.s32.totalorder %s160, %s162
      %p166 = scmp.eq.s32.totalorder %s21, 0
      %p167 = por %p165, %p166
      %p168 = scmp.ne.s32.totalorder %s160, %s162
      %p169 = scmp.eq.s32.totalorder %s26, 1
      %p170 = por %p168, %p169
      %p171 = scmp.ne.s32.totalorder %s162, %s163
      %p172 = scmp.eq.s32.totalorder %s26, 0
      %p173 = por %p171, %p172
      %p174 = scmp.ne.s32.totalorder %s162, %s163
      %p175 = scmp.eq.s32.totalorder %s27, 1
      %p176 = por %p174, %p175
      %p178 = scmp.ne.s32.totalorder %s163, %s177
      %p179 = scmp.eq.s32.totalorder %s27, 0
      %p180 = por %p178, %p179
      %s181 = ssub.s32 %s21, %s28
      %p182 = scmp.eq.s32.totalorder %s181, 0
      %s184 = sadd.s32 %s183, 1
      %s185 = scalar_select %p182, %s183, %s184
      %p188 = pneg %p182
      %p189 = scmp.eq.s32.totalorder %s21, 1
      %p190 = por %p188, %p189
      %p191 = scmp.ne.s32.totalorder %s183, %s186
      %p192 = scmp.eq.s32.totalorder %s21, 0
      %p193 = por %p191, %p192
      %p194 = scmp.ne.s32.totalorder %s183, %s186
      %p195 = scmp.eq.s32.totalorder %s26, 1
      %p196 = por %p194, %p195
      %p197 = scmp.ne.s32.totalorder %s186, %s187
      %p198 = scmp.eq.s32.totalorder %s26, 0
      %p199 = por %p197, %p198
      %p200 = scmp.ne.s32.totalorder %s186, %s187
      %p201 = scmp.eq.s32.totalorder %s27, 1
      %p202 = por %p200, %p201
      %p204 = scmp.ne.s32.totalorder %s187, %s203
      %p205 = scmp.eq.s32.totalorder %s27, 0
      %p206 = por %p204, %p205
      %p207 = scmp.le.s32.totalorder 1, %s21
      %p208 = scmp.lt.s32.totalorder %s21, 3
      %p209 = pnand %p207, %p208
      %p210 = pneg %p209
      // Predicated region
      $region9: #{tpu_custom_call.1} parent=5 // pred_check
        _
      $region10: #{tpu_custom_call.1} parent=5 // pred_check_branch
        %212 = sbr.rel (%p209) target = $region12
      $region11: #{tpu_custom_call.1} parent=5 // pred_region
        %s213 = ssub.s32 %s21, 1
        // Predicated region
        $region13: #{tpu_custom_call.1} parent=11 // pred_check
          %p214 = pneg %p68
        $region14: #{tpu_custom_call.1} parent=11 // pred_check_branch
          %216 = sbr.rel (%p214) target = $region16
        $region15: #{tpu_custom_call.1} parent=11 // pred_region
          %218 = vsyncadd [#allocation7], 0
          %s219 = sshll.u32 %s1, 4
          %s220 = int_to_ptr.hbm [resolvable:$true] %s219
          %s221 = sshll.u32 [#allocation6], 4
          %s222 = int_to_ptr.vmem [resolvable:$true] %s221
          %227 = dma.hbm_to_vmem [thread:$0]  %s220, 2048, %s222, [#allocation7], 128, 128, 8
        $region16: #{tpu_custom_call.1} parent=11 // pred_fallthru
          _
        // Predicated region
        $region17: #{tpu_custom_call.1} parent=11 // pred_check
          %p228 = pneg %p89
        $region18: #{tpu_custom_call.1} parent=11 // pred_check_branch
          %230 = sbr.rel (%p228) target = $region20
        $region19: #{tpu_custom_call.1} parent=11 // pred_region
          %232 = vsyncadd [#allocation7], 0
          %s234 = sshll.u32 %s2, 4
          %s235 = int_to_ptr.hbm [resolvable:$true] %s234
          %s236 = sshll.u32 [#allocation8], 4
          %s237 = int_to_ptr.vmem [resolvable:$true] %s236
          %239 = dma.hbm_to_vmem [thread:$0]  %s235, 32, %s237, [#allocation7]
        $region20: #{tpu_custom_call.1} parent=11 // pred_fallthru
          _
        // Predicated region
        $region21: #{tpu_custom_call.1} parent=11 // pred_check
          %p240 = pneg %p110
        $region22: #{tpu_custom_call.1} parent=11 // pred_check_branch
          %242 = sbr.rel (%p240) target = $region24
        $region23: #{tpu_custom_call.1} parent=11 // pred_region
          %244 = vsyncadd [#allocation10], 0
          %s245 = sshll.u32 %s3, 4
          %s246 = int_to_ptr.hbm [resolvable:$true] %s245
          %s247 = sshll.u32 [#allocation9], 4
          %s248 = int_to_ptr.vmem [resolvable:$true] %s247
          %253 = dma.hbm_to_vmem [thread:$0]  %s246, 512, %s248, [#allocation10], 128, 128, 8
        $region24: #{tpu_custom_call.1} parent=11 // pred_fallthru
          _
        // Predicated region
        $region25: #{tpu_custom_call.1} parent=11 // pred_check
          %p254 = pneg %p131
        $region26: #{tpu_custom_call.1} parent=11 // pred_check_branch
          %256 = sbr.rel (%p254) target = $region28
        $region27: #{tpu_custom_call.1} parent=11 // pred_region
          _
        $region28: #{tpu_custom_call.1} parent=11 // pred_fallthru
          _
        // Predicated region
        $region29: #{tpu_custom_call.1} parent=11 // pred_check
          %p257 = pneg %p152
        $region30: #{tpu_custom_call.1} parent=11 // pred_check_branch
          %259 = sbr.rel (%p257) target = $region32
        $region31: #{tpu_custom_call.1} parent=11 // pred_region
          %261 = vsyncadd [#allocation10], 0
          %s262 = sshll.u32 %s5, 4
          %s263 = int_to_ptr.hbm [resolvable:$true] %s262
          %s264 = sshll.u32 [#allocation11], 4
          %s265 = int_to_ptr.vmem [resolvable:$true] %s264
          %270 = dma.hbm_to_vmem [thread:$0]  %s263, 1024, %s265, [#allocation10], 64, 64, 4
        $region32: #{tpu_custom_call.1} parent=11 // pred_fallthru
          _
        // Predicated region
        $region33: #{tpu_custom_call.1} parent=11 // pred_check
          %p271 = pneg %p173
        $region34: #{tpu_custom_call.1} parent=11 // pred_check_branch
          %273 = sbr.rel (%p271) target = $region36
        $region35: #{tpu_custom_call.1} parent=11 // pred_region
          _
        $region36: #{tpu_custom_call.1} parent=11 // pred_fallthru
          _
      $region12: #{tpu_custom_call.1} parent=5 // pred_fallthru
        _
      %p274 = scmp.lt.s32.totalorder %s21, 2
      // Predicated region
      $region37: #{tpu_custom_call.1} parent=5 // pred_check
        %p275 = pneg %p274
      $region38: #{tpu_custom_call.1} parent=5 // pred_check_branch
        %277 = sbr.rel (%p275) target = $region40
      $region39: #{tpu_custom_call.1} parent=5 // pred_region
        // Predicated region
        $region41: #{tpu_custom_call.1} parent=39 // pred_check
          %p278 = pneg %p41
        $region42: #{tpu_custom_call.1} parent=39 // pred_check_branch
          %280 = sbr.rel (%p278) target = $region44
        $region43: #{tpu_custom_call.1} parent=39 // pred_region
          %s281 = sand.u32 %s31, 1
          %s282 = scalar_lea.sflag [#allocation4], %s281
          %s283 = sand.u32 %s31, 1
          %s284 = smul.addr %s283, 64
          %s285 = scalar_lea.vmem [#allocation3], %s284
          %s286 = smul.u32 8, %s21
          %288 = vsyncadd %s282, 0
          %s289 = smul.addr %s286, 8
          %s290 = scalar_lea.hbm %s0, %s289
          %s291 = sshll.u32 %s290, 4
          %s292 = int_to_ptr.hbm [resolvable:$true] %s291
          %s293 = sshll.u32 %s285, 4
          %s294 = int_to_ptr.vmem [resolvable:$true] %s293
          %299 = dma.hbm_to_vmem [thread:$0]  %s292, 1024, %s294, %s282, 128, 128, 8
        $region44: #{tpu_custom_call.1} parent=39 // pred_fallthru
          _
      $region40: #{tpu_custom_call.1} parent=5 // pred_fallthru
        _
      %p300 = scmp.le.s32.totalorder 1, %s21
      %p301 = scmp.lt.s32.totalorder %s21, 3
      %p302 = pnand %p300, %p301
      %p303 = pneg %p302
      // Predicated region
      $region45: #{tpu_custom_call.1} parent=5 // pred_check
        _
      $region46: #{tpu_custom_call.1} parent=5 // pred_check_branch
        %305 = sbr.rel (%p302) target = $region48
      $region47: #{tpu_custom_call.1} parent=5 // pred_region
        %s306 = ssub.s32 %s21, 1
        %s307 = sand.u32 %s34, 1
        %s308 = scalar_lea.sflag [#allocation4], %s307
        %s309 = sand.u32 %s34, 1
        %s310 = smul.addr %s309, 64
        %s311 = scalar_lea.vmem [#allocation3], %s310
        // Predicated region
        $region49: #{tpu_custom_call.1} parent=47 // pred_check
          %p312 = pneg %p47
        $region50: #{tpu_custom_call.1} parent=47 // pred_check_branch
          %314 = sbr.rel (%p312) target = $region52
        $region51: #{tpu_custom_call.1} parent=47 // pred_region
          %316 = dma.done %s308, 1024
        $region52: #{tpu_custom_call.1} parent=47 // pred_fallthru
          _
        // Predicated region
        $region53: #{tpu_custom_call.1} parent=47 // pred_check
          %p317 = pneg %p68
        $region54: #{tpu_custom_call.1} parent=47 // pred_check_branch
          %319 = sbr.rel (%p317) target = $region56
        $region55: #{tpu_custom_call.1} parent=47 // pred_region
          %321 = dma.done [#allocation7], 2048
        $region56: #{tpu_custom_call.1} parent=47 // pred_fallthru
          _
        // Predicated region
        $region57: #{tpu_custom_call.1} parent=47 // pred_check
          %p322 = pneg %p89
        $region58: #{tpu_custom_call.1} parent=47 // pred_check_branch
          %324 = sbr.rel (%p322) target = $region60
        $region59: #{tpu_custom_call.1} parent=47 // pred_region
          %326 = dma.done [#allocation7], 32
        $region60: #{tpu_custom_call.1} parent=47 // pred_fallthru
          _
        // Predicated region
        $region61: #{tpu_custom_call.1} parent=47 // pred_check
          %p327 = pneg %p110
        $region62: #{tpu_custom_call.1} parent=47 // pred_check_branch
          %329 = sbr.rel (%p327) target = $region64
        $region63: #{tpu_custom_call.1} parent=47 // pred_region
          %331 = dma.done [#allocation10], 512
        $region64: #{tpu_custom_call.1} parent=47 // pred_fallthru
          _
        // Predicated region
        $region65: #{tpu_custom_call.1} parent=47 // pred_check
          %p332 = pneg %p152
        $region66: #{tpu_custom_call.1} parent=47 // pred_check_branch
          %334 = sbr.rel (%p332) target = $region68
        $region67: #{tpu_custom_call.1} parent=47 // pred_region
          %336 = dma.done [#allocation10], 1024
        $region68: #{tpu_custom_call.1} parent=47 // pred_fallthru
          _
        %s337 = sand.u32 %s34, 1
        %s338 = scalar_lea.sflag [#allocation4], %s337
        %s339 = sand.u32 %s34, 1
        %s340 = smul.addr %s339, 64
        %s341 = scalar_lea.vmem [#allocation3], %s340
        %p342 = pneg %p47
        %p343 = pneg %p44
        %p344 = pneg %p68
        %p345 = pneg %p65
        %p346 = pneg %p89
        %p347 = pneg %p86
        %p348 = pneg %p110
        %p349 = pneg %p107
        %p350 = pneg %p131
        %p351 = pneg %p128
        %p352 = pneg %p152
        %p353 = pneg %p149
        %p354 = pneg %p173
        %p355 = pneg %p170
        %p356 = pneg %p199
        %p357 = pneg %p196
        %s358 = sand.u32 %s186, 1
        %s359 = scalar_lea.sflag [#allocation5], %s358
        %s360 = sand.u32 %s186, 1
        %s361 = smul.addr %s360, 64
        %s362 = scalar_lea.vmem [#allocation12], %s361
        %s363 = smul.u32 8, %s26
        %s364 = smul.u32 8, %s26
        %v365 = vld [vmem:[%s311] sm:$0xff]
        %v366 = vld [vmem:[%s311 + $0x8] sm:$0xff]
        %v367 = vld [vmem:[%s311 + $0x10] sm:$0xff]
        %v368 = vld [vmem:[%s311 + $0x18] sm:$0xff]
        %v369 = vld [vmem:[%s311 + $0x20] sm:$0xff]
        %v370 = vld [vmem:[%s311 + $0x28] sm:$0xff]
        %v371 = vld [vmem:[%s311 + $0x30] sm:$0xff]
        %v372 = vld [vmem:[%s311 + $0x38] sm:$0xff]
        %373 = vadd.xlane.f32.xlu0 %v365
        %v374 = vpop.xlane.xlu0 %373
        %375 = vadd.xlane.f32.xlu0 %v366
        %v376 = vpop.xlane.xlu0 %375
        %377 = vadd.xlane.f32.xlu0 %v367
        %v378 = vpop.xlane.xlu0 %377
        %379 = vadd.xlane.f32.xlu0 %v368
        %v380 = vpop.xlane.xlu0 %379
        %381 = vadd.xlane.f32.xlu0 %v369
        %v382 = vpop.xlane.xlu0 %381
        %383 = vadd.xlane.f32.xlu0 %v370
        %v384 = vpop.xlane.xlu0 %383
        %385 = vadd.xlane.f32.xlu0 %v371
        %v386 = vpop.xlane.xlu0 %385
        %387 = vadd.xlane.f32.xlu0 %v372
        %v388 = vpop.xlane.xlu0 %387
        %v389 = vrcp.pop 128.0
        %v390 = vmul.f32 128.0, %v389
        %v391 = vsub.f32 1.0, %v390
        %v392 = vmul.f32 %v389, %v391
        %v393 = vadd.f32 %v389, %v392
        %vm394 = vweird.f32 %v389
        %v395 = vsel %vm394, %v389, %v393
        %v396 = vmul.f32 %v374, %v395
        %v397 = vmul.f32 %v376, %v395
        %v398 = vmul.f32 %v378, %v395
        %v399 = vmul.f32 %v380, %v395
        %v400 = vmul.f32 %v382, %v395
        %v401 = vmul.f32 %v384, %v395
        %v402 = vmul.f32 %v386, %v395
        %v403 = vmul.f32 %v388, %v395
        %v404 = vsub.f32 %v365, %v396
        %v405 = vsub.f32 %v366, %v397
        %v406 = vsub.f32 %v367, %v398
        %v407 = vsub.f32 %v368, %v399
        %v408 = vsub.f32 %v369, %v400
        %v409 = vsub.f32 %v370, %v401
        %v410 = vsub.f32 %v371, %v402
        %v411 = vsub.f32 %v372, %v403
        %v412 = vmul.f32 %v404, %v404
        %v413 = vmul.f32 %v405, %v405
        %v414 = vmul.f32 %v406, %v406
        %v415 = vmul.f32 %v407, %v407
        %v416 = vmul.f32 %v408, %v408
        %v417 = vmul.f32 %v409, %v409
        %v418 = vmul.f32 %v410, %v410
        %v419 = vmul.f32 %v411, %v411
        %420 = vadd.xlane.f32.xlu0 %v412
        %v421 = vpop.xlane.xlu0 %420
        %422 = vadd.xlane.f32.xlu0 %v413
        %v423 = vpop.xlane.xlu0 %422
        %424 = vadd.xlane.f32.xlu0 %v414
        %v425 = vpop.xlane.xlu0 %424
        %426 = vadd.xlane.f32.xlu0 %v415
        %v427 = vpop.xlane.xlu0 %426
        %428 = vadd.xlane.f32.xlu0 %v416
        %v429 = vpop.xlane.xlu0 %428
        %430 = vadd.xlane.f32.xlu0 %v417
        %v431 = vpop.xlane.xlu0 %430
        %432 = vadd.xlane.f32.xlu0 %v418
        %v433 = vpop.xlane.xlu0 %432
        %434 = vadd.xlane.f32.xlu0 %v419
        %v435 = vpop.xlane.xlu0 %434
        %v436 = vmul.f32 %v421, %v395
        %v437 = vmul.f32 %v423, %v395
        %v438 = vmul.f32 %v425, %v395
        %v439 = vmul.f32 %v427, %v395
        %v440 = vmul.f32 %v429, %v395
        %v441 = vmul.f32 %v431, %v395
        %v442 = vmul.f32 %v433, %v395
        %v443 = vmul.f32 %v435, %v395
        %v444 = vadd.f32 %v436, 1e-05
        %v445 = vadd.f32 %v437, 1e-05
        %v446 = vadd.f32 %v438, 1e-05
        %v447 = vadd.f32 %v439, 1e-05
        %v448 = vadd.f32 %v440, 1e-05
        %v449 = vadd.f32 %v441, 1e-05
        %v450 = vadd.f32 %v442, 1e-05
        %v451 = vadd.f32 %v443, 1e-05
        %v452 = vrsqrt.pop %v444
        %v453 = vmul.f32 %v452, %v444
        %v454 = vmul.f32 %v453, %v452
        %v455 = vmul.f32 0.5, %v454
        %v456 = vsub.f32 1.5, %v455
        %v457 = vmul.f32 %v452, %v456
        %vm458 = vweird.f32 %v444
        %vm459 = vweird.f32 %v452
        %vm460 = vmor %vm458, %vm459
        %v461 = vsel %vm460, %v452, %v457
        %v462 = vrsqrt.pop %v445
        %v463 = vmul.f32 %v462, %v445
        %v464 = vmul.f32 %v463, %v462
        %v465 = vmul.f32 0.5, %v464
        %v466 = vsub.f32 1.5, %v465
        %v467 = vmul.f32 %v462, %v466
        %vm468 = vweird.f32 %v445
        %vm469 = vweird.f32 %v462
        %vm470 = vmor %vm468, %vm469
        %v471 = vsel %vm470, %v462, %v467
        %v472 = vrsqrt.pop %v446
        %v473 = vmul.f32 %v472, %v446
        %v474 = vmul.f32 %v473, %v472
        %v475 = vmul.f32 0.5, %v474
        %v476 = vsub.f32 1.5, %v475
        %v477 = vmul.f32 %v472, %v476
        %vm478 = vweird.f32 %v446
        %vm479 = vweird.f32 %v472
        %vm480 = vmor %vm478, %vm479
        %v481 = vsel %vm480, %v472, %v477
        %v482 = vrsqrt.pop %v447
        %v483 = vmul.f32 %v482, %v447
        %v484 = vmul.f32 %v483, %v482
        %v485 = vmul.f32 0.5, %v484
        %v486 = vsub.f32 1.5, %v485
        %v487 = vmul.f32 %v482, %v486
        %vm488 = vweird.f32 %v447
        %vm489 = vweird.f32 %v482
        %vm490 = vmor %vm488, %vm489
        %v491 = vsel %vm490, %v482, %v487
        %v492 = vrsqrt.pop %v448
        %v493 = vmul.f32 %v492, %v448
        %v494 = vmul.f32 %v493, %v492
        %v495 = vmul.f32 0.5, %v494
        %v496 = vsub.f32 1.5, %v495
        %v497 = vmul.f32 %v492, %v496
        %vm498 = vweird.f32 %v448
        %vm499 = vweird.f32 %v492
        %vm500 = vmor %vm498, %vm499
        %v501 = vsel %vm500, %v492, %v497
        %v502 = vrsqrt.pop %v449
        %v503 = vmul.f32 %v502, %v449
        %v504 = vmul.f32 %v503, %v502
        %v505 = vmul.f32 0.5, %v504
        %v506 = vsub.f32 1.5, %v505
        %v507 = vmul.f32 %v502, %v506
        %vm508 = vweird.f32 %v449
        %vm509 = vweird.f32 %v502
        %vm510 = vmor %vm508, %vm509
        %v511 = vsel %vm510, %v502, %v507
        %v512 = vrsqrt.pop %v450
        %v513 = vmul.f32 %v512, %v450
        %v514 = vmul.f32 %v513, %v512
        %v515 = vmul.f32 0.5, %v514
        %v516 = vsub.f32 1.5, %v515
        %v517 = vmul.f32 %v512, %v516
        %vm518 = vweird.f32 %v450
        %vm519 = vweird.f32 %v512
        %vm520 = vmor %vm518, %vm519
        %v521 = vsel %vm520, %v512, %v517
        %v522 = vrsqrt.pop %v451
        %v523 = vmul.f32 %v522, %v451
        %v524 = vmul.f32 %v523, %v522
        %v525 = vmul.f32 0.5, %v524
        %v526 = vsub.f32 1.5, %v525
        %v527 = vmul.f32 %v522, %v526
        %vm528 = vweird.f32 %v451
        %vm529 = vweird.f32 %v522
        %vm530 = vmor %vm528, %vm529
        %v531 = vsel %vm530, %v522, %v527
        %v532 = vmul.f32 %v404, %v461
        %v533 = vmul.f32 %v405, %v471
        %v534 = vmul.f32 %v406, %v481
        %v535 = vmul.f32 %v407, %v491
        %v536 = vmul.f32 %v408, %v501
        %v537 = vmul.f32 %v409, %v511
        %v538 = vmul.f32 %v410, %v521
        %v539 = vmul.f32 %v411, %v531
        %v540 = vpack.c.bf16 %v533, %v532
        %v541 = vpack.c.bf16 %v535, %v534
        %v542 = vpack.c.bf16 %v537, %v536
        %v543 = vpack.c.bf16 %v539, %v538
        %v544 = vld [vmem:[#allocation6] sm:$0xff]
        %v545 = vld [vmem:[#allocation6 + $0x8] sm:$0xff]
        %v546 = vld [vmem:[#allocation6 + $0x10] sm:$0xff]
        %v547 = vld [vmem:[#allocation6 + $0x18] sm:$0xff]
        %v548 = vld [vmem:[#allocation6 + $0x20] sm:$0xff]
        %v549 = vld [vmem:[#allocation6 + $0x28] sm:$0xff]
        %v550 = vld [vmem:[#allocation6 + $0x30] sm:$0xff]
        %v551 = vld [vmem:[#allocation6 + $0x38] sm:$0xff]
        %v552 = vld [vmem:[#allocation6 + $0x40] sm:$0xff]
        %v553 = vld [vmem:[#allocation6 + $0x48] sm:$0xff]
        %v554 = vld [vmem:[#allocation6 + $0x50] sm:$0xff]
        %v555 = vld [vmem:[#allocation6 + $0x58] sm:$0xff]
        %v556 = vld [vmem:[#allocation6 + $0x60] sm:$0xff]
        %v557 = vld [vmem:[#allocation6 + $0x68] sm:$0xff]
        %v558 = vld [vmem:[#allocation6 + $0x70] sm:$0xff]
        %v559 = vld [vmem:[#allocation6 + $0x78] sm:$0xff]
        %v560 = vld [vmem:[#allocation8] sm:$0x3]
        %v562 = vperm.slane %v560, 0
        %v563 = vperm.slane %v560, 1
        %v582 = vunpack.c.l.b16 %v544
        %v583 = vunpack.c.h.b16 %v544
        %v584 = vunpack.c.l.b16 %v545
        %v585 = vunpack.c.h.b16 %v545
        %v586 = vunpack.c.l.b16 %v546
        %v587 = vunpack.c.h.b16 %v546
        %v588 = vunpack.c.l.b16 %v547
        %v589 = vunpack.c.h.b16 %v547
        %v590 = vunpack.c.l.b16 %v548
        %v591 = vunpack.c.h.b16 %v548
        %v592 = vunpack.c.l.b16 %v549
        %v593 = vunpack.c.h.b16 %v549
        %v594 = vunpack.c.l.b16 %v550
        %v595 = vunpack.c.h.b16 %v550
        %v596 = vunpack.c.l.b16 %v551
        %v597 = vunpack.c.h.b16 %v551
        %v598 = vunpack.c.l.b16 %v552
        %v599 = vunpack.c.h.b16 %v552
        %v600 = vunpack.c.l.b16 %v553
        %v601 = vunpack.c.h.b16 %v553
        %v602 = vunpack.c.l.b16 %v554
        %v603 = vunpack.c.h.b16 %v554
        %v604 = vunpack.c.l.b16 %v555
        %v605 = vunpack.c.h.b16 %v555
        %v606 = vunpack.c.l.b16 %v556
        %v607 = vunpack.c.h.b16 %v556
        %v608 = vunpack.c.l.b16 %v557
        %v609 = vunpack.c.h.b16 %v557
        %v610 = vunpack.c.l.b16 %v558
        %v611 = vunpack.c.h.b16 %v558
        %v612 = vunpack.c.l.b16 %v559
        %v613 = vunpack.c.h.b16 %v559
        %v614 = vpack.c.b16 %v584, %v582
        %v615 = vpack.c.b16 %v585, %v583
        %v616 = vpack.c.b16 %v588, %v586
        %v617 = vpack.c.b16 %v589, %v587
        %v618 = vpack.c.b16 %v592, %v590
        %v619 = vpack.c.b16 %v593, %v591
        %v620 = vpack.c.b16 %v596, %v594
        %v621 = vpack.c.b16 %v597, %v595
        %v622 = vpack.c.b16 %v600, %v598
        %v623 = vpack.c.b16 %v601, %v599
        %v624 = vpack.c.b16 %v604, %v602
        %v625 = vpack.c.b16 %v605, %v603
        %v626 = vpack.c.b16 %v608, %v606
        %v627 = vpack.c.b16 %v609, %v607
        %v628 = vpack.c.b16 %v612, %v610
        %v629 = vpack.c.b16 %v613, %v611
        %646 = vmatpush.bf16.msra.mxu0 %v628
        %647 = vmatpush.bf16.msra.mxu0 %v626
        %648 = vmatpush.bf16.msra.mxu0 %v624
        %649 = vmatpush.bf16.msra.mxu0 %v622
        %650 = vmatpush.bf16.msra.mxu0 %v620
        %651 = vmatpush.bf16.msra.mxu0 %v618
        %652 = vmatpush.bf16.msra.mxu0 %v616
        %653 = vmatpush.bf16.msra.mxu0 %v614
        %654 = vmatmul.bf16.gmra.mxu0 %v540
        %v655 = vpop.f32.mrf.mxu0
        %v656 = vadd.f32 %v562, %v655
        %v657 = vpop.f32.mrf.mxu0
        %v658 = vadd.f32 %v562, %v657
        %659 = vmatmul.bf16.gmra.mxu0 %v541
        %v660 = vpop.f32.mrf.mxu0
        %v661 = vadd.f32 %v562, %v660
        %v662 = vpop.f32.mrf.mxu0
        %v663 = vadd.f32 %v562, %v662
        %664 = vmatmul.bf16.gmra.mxu0 %v542
        %v665 = vpop.f32.mrf.mxu0
        %v666 = vadd.f32 %v562, %v665
        %v667 = vpop.f32.mrf.mxu0
        %v668 = vadd.f32 %v562, %v667
        %669 = vmatmul.bf16.gmra.mxu0 %v543
        %v670 = vpop.f32.mrf.mxu0
        %v671 = vadd.f32 %v562, %v670
        %v672 = vpop.f32.mrf.mxu0
        %v673 = vadd.f32 %v562, %v672
        %674 = vdwg.mxu0
        %675 = vmatpush.bf16.msra.mxu0 %v629
        %676 = vmatpush.bf16.msra.mxu0 %v627
        %677 = vmatpush.bf16.msra.mxu0 %v625
        %678 = vmatpush.bf16.msra.mxu0 %v623
        %679 = vmatpush.bf16.msra.mxu0 %v621
        %680 = vmatpush.bf16.msra.mxu0 %v619
        %681 = vmatpush.bf16.msra.mxu0 %v617
        %682 = vmatpush.bf16.msra.mxu0 %v615
        %683 = vmatmul.bf16.gmra.mxu0 %v540
        %v684 = vpop.f32.mrf.mxu0
        %v685 = vadd.f32 %v563, %v684
        %v686 = vpop.f32.mrf.mxu0
        %v687 = vadd.f32 %v563, %v686
        %688 = vmatmul.bf16.gmra.mxu0 %v541
        %v689 = vpop.f32.mrf.mxu0
        %v690 = vadd.f32 %v563, %v689
        %v691 = vpop.f32.mrf.mxu0
        %v692 = vadd.f32 %v563, %v691
        %693 = vmatmul.bf16.gmra.mxu0 %v542
        %v694 = vpop.f32.mrf.mxu0
        %v695 = vadd.f32 %v563, %v694
        %v696 = vpop.f32.mrf.mxu0
        %v697 = vadd.f32 %v563, %v696
        %698 = vmatmul.bf16.gmra.mxu0 %v543
        %v699 = vpop.f32.mrf.mxu0
        %v700 = vadd.f32 %v563, %v699
        %v701 = vpop.f32.mrf.mxu0
        %v702 = vadd.f32 %v563, %v701
        %703 = vdwg.mxu0
        %v704 = vxor.u32 %v685, 2147483648
        %v705 = vxor.u32 %v687, 2147483648
        %v706 = vxor.u32 %v690, 2147483648
        %v707 = vxor.u32 %v692, 2147483648
        %v708 = vxor.u32 %v695, 2147483648
        %v709 = vxor.u32 %v697, 2147483648
        %v710 = vxor.u32 %v700, 2147483648
        %v711 = vxor.u32 %v702, 2147483648
        %v712 = vmul.f32 %v704, 1.442695
        %v713 = vpow.pop %v712
        %v714 = vmul.f32 %v705, 1.442695
        %v715 = vpow.pop %v714
        %v716 = vmul.f32 %v706, 1.442695
        %v717 = vpow.pop %v716
        %v718 = vmul.f32 %v707, 1.442695
        %v719 = vpow.pop %v718
        %v720 = vmul.f32 %v708, 1.442695
        %v721 = vpow.pop %v720
        %v722 = vmul.f32 %v709, 1.442695
        %v723 = vpow.pop %v722
        %v724 = vmul.f32 %v710, 1.442695
        %v725 = vpow.pop %v724
        %v726 = vmul.f32 %v711, 1.442695
        %v727 = vpow.pop %v726
        %v728 = vadd.f32 %v713, 1.0
        %v729 = vadd.f32 %v715, 1.0
        %v730 = vadd.f32 %v717, 1.0
        %v731 = vadd.f32 %v719, 1.0
        %v732 = vadd.f32 %v721, 1.0
        %v733 = vadd.f32 %v723, 1.0
        %v734 = vadd.f32 %v725, 1.0
        %v735 = vadd.f32 %v727, 1.0
        %v736 = vrcp.pop %v728
        %v737 = vmul.f32 %v728, %v736
        %v738 = vsub.f32 1.0, %v737
        %v739 = vmul.f32 %v736, %v738
        %v740 = vadd.f32 %v736, %v739
        %vm741 = vweird.f32 %v728
        %vm742 = vweird.f32 %v736
        %vm743 = vmor %vm741, %vm742
        %v744 = vsel %vm743, %v736, %v740
        %v745 = vand.u32 2147483647, %v728
        %vm746 = vcmp.eq.f32.partialorder %v745, 8.507059e+37
        %v747 = vand.u32 %v728, 2147483648
        %v748 = vor.u32 1.1754944e-38, %v747
        %v749 = vsel %vm746, %v748, %v744
        %v750 = vmul.f32 1.0, %v749
        %v751 = vrcp.pop %v729
        %v752 = vmul.f32 %v729, %v751
        %v753 = vsub.f32 1.0, %v752
        %v754 = vmul.f32 %v751, %v753
        %v755 = vadd.f32 %v751, %v754
        %vm756 = vweird.f32 %v729
        %vm757 = vweird.f32 %v751
        %vm758 = vmor %vm756, %vm757
        %v759 = vsel %vm758, %v751, %v755
        %v760 = vand.u32 2147483647, %v729
        %vm761 = vcmp.eq.f32.partialorder %v760, 8.507059e+37
        %v762 = vand.u32 %v729, 2147483648
        %v763 = vor.u32 1.1754944e-38, %v762
        %v764 = vsel %vm761, %v763, %v759
        %v765 = vmul.f32 1.0, %v764
        %v766 = vrcp.pop %v730
        %v767 = vmul.f32 %v730, %v766
        %v768 = vsub.f32 1.0, %v767
        %v769 = vmul.f32 %v766, %v768
        %v770 = vadd.f32 %v766, %v769
        %vm771 = vweird.f32 %v730
        %vm772 = vweird.f32 %v766
        %vm773 = vmor %vm771, %vm772
        %v774 = vsel %vm773, %v766, %v770
        %v775 = vand.u32 2147483647, %v730
        %vm776 = vcmp.eq.f32.partialorder %v775, 8.507059e+37
        %v777 = vand.u32 %v730, 2147483648
        %v778 = vor.u32 1.1754944e-38, %v777
        %v779 = vsel %vm776, %v778, %v774
        %v780 = vmul.f32 1.0, %v779
        %v781 = vrcp.pop %v731
        %v782 = vmul.f32 %v731, %v781
        %v783 = vsub.f32 1.0, %v782
        %v784 = vmul.f32 %v781, %v783
        %v785 = vadd.f32 %v781, %v784
        %vm786 = vweird.f32 %v731
        %vm787 = vweird.f32 %v781
        %vm788 = vmor %vm786, %vm787
        %v789 = vsel %vm788, %v781, %v785
        %v790 = vand.u32 2147483647, %v731
        %vm791 = vcmp.eq.f32.partialorder %v790, 8.507059e+37
        %v792 = vand.u32 %v731, 2147483648
        %v793 = vor.u32 1.1754944e-38, %v792
        %v794 = vsel %vm791, %v793, %v789
        %v795 = vmul.f32 1.0, %v794
        %v796 = vrcp.pop %v732
        %v797 = vmul.f32 %v732, %v796
        %v798 = vsub.f32 1.0, %v797
        %v799 = vmul.f32 %v796, %v798
        %v800 = vadd.f32 %v796, %v799
        %vm801 = vweird.f32 %v732
        %vm802 = vweird.f32 %v796
        %vm803 = vmor %vm801, %vm802
        %v804 = vsel %vm803, %v796, %v800
        %v805 = vand.u32 2147483647, %v732
        %vm806 = vcmp.eq.f32.partialorder %v805, 8.507059e+37
        %v807 = vand.u32 %v732, 2147483648
        %v808 = vor.u32 1.1754944e-38, %v807
        %v809 = vsel %vm806, %v808, %v804
        %v810 = vmul.f32 1.0, %v809
        %v811 = vrcp.pop %v733
        %v812 = vmul.f32 %v733, %v811
        %v813 = vsub.f32 1.0, %v812
        %v814 = vmul.f32 %v811, %v813
        %v815 = vadd.f32 %v811, %v814
        %vm816 = vweird.f32 %v733
        %vm817 = vweird.f32 %v811
        %vm818 = vmor %vm816, %vm817
        %v819 = vsel %vm818, %v811, %v815
        %v820 = vand.u32 2147483647, %v733
        %vm821 = vcmp.eq.f32.partialorder %v820, 8.507059e+37
        %v822 = vand.u32 %v733, 2147483648
        %v823 = vor.u32 1.1754944e-38, %v822
        %v824 = vsel %vm821, %v823, %v819
        %v825 = vmul.f32 1.0, %v824
        %v826 = vrcp.pop %v734
        %v827 = vmul.f32 %v734, %v826
        %v828 = vsub.f32 1.0, %v827
        %v829 = vmul.f32 %v826, %v828
        %v830 = vadd.f32 %v826, %v829
        %vm831 = vweird.f32 %v734
        %vm832 = vweird.f32 %v826
        %vm833 = vmor %vm831, %vm832
        %v834 = vsel %vm833, %v826, %v830
        %v835 = vand.u32 2147483647, %v734
        %vm836 = vcmp.eq.f32.partialorder %v835, 8.507059e+37
        %v837 = vand.u32 %v734, 2147483648
        %v838 = vor.u32 1.1754944e-38, %v837
        %v839 = vsel %vm836, %v838, %v834
        %v840 = vmul.f32 1.0, %v839
        %v841 = vrcp.pop %v735
        %v842 = vmul.f32 %v735, %v841
        %v843 = vsub.f32 1.0, %v842
        %v844 = vmul.f32 %v841, %v843
        %v845 = vadd.f32 %v841, %v844
        %vm846 = vweird.f32 %v735
        %vm847 = vweird.f32 %v841
        %vm848 = vmor %vm846, %vm847
        %v849 = vsel %vm848, %v841, %v845
        %v850 = vand.u32 2147483647, %v735
        %vm851 = vcmp.eq.f32.partialorder %v850, 8.507059e+37
        %v852 = vand.u32 %v735, 2147483648
        %v853 = vor.u32 1.1754944e-38, %v852
        %v854 = vsel %vm851, %v853, %v849
        %v855 = vmul.f32 1.0, %v854
        %v856 = vmul.f32 %v656, %v750
        %v857 = vmul.f32 %v658, %v765
        %v858 = vmul.f32 %v661, %v780
        %v859 = vmul.f32 %v663, %v795
        %v860 = vmul.f32 %v666, %v810
        %v861 = vmul.f32 %v668, %v825
        %v862 = vmul.f32 %v671, %v840
        %v863 = vmul.f32 %v673, %v855
        %v864 = vld [vmem:[#allocation9] sm:$0xff]
        %v865 = vld [vmem:[#allocation9 + $0x8] sm:$0xff]
        %v866 = vld [vmem:[#allocation9 + $0x10] sm:$0xff]
        %v867 = vld [vmem:[#allocation9 + $0x18] sm:$0x7f]
        %868 = vst [vmem:[#allocation2] sm:$0xff] 0.0
        %869 = vst [vmem:[#allocation2 + $0x8] sm:$0xff] 0.0
        %870 = vst [vmem:[#allocation2 + $0x50] sm:$0xff] 0.0
        %871 = vst [vmem:[#allocation2 + $0x58] sm:$0xff] 0.0
        %872 = vst [vmem:[#allocation2 + $0x10] sm:$0xff] %v856
        %873 = vst [vmem:[#allocation2 + $0x18] sm:$0xff] %v857
        %874 = vst [vmem:[#allocation2 + $0x20] sm:$0xff] %v858
        %875 = vst [vmem:[#allocation2 + $0x28] sm:$0xff] %v859
        %876 = vst [vmem:[#allocation2 + $0x30] sm:$0xff] %v860
        %877 = vst [vmem:[#allocation2 + $0x38] sm:$0xff] %v861
        %878 = vst [vmem:[#allocation2 + $0x40] sm:$0xff] %v862
        %879 = vst [vmem:[#allocation2 + $0x48] sm:$0xff] %v863
        %v880 = vld [vmem:[#allocation2 + $0x8] sm:$0xff]
        %v881 = vld [vmem:[#allocation2 + $0x10] sm:$0xff]
        %v882 = vld [vmem:[#allocation2 + $0x18] sm:$0xff]
        %v883 = vld [vmem:[#allocation2 + $0x20] sm:$0xff]
        %v884 = vld [vmem:[#allocation2 + $0x28] sm:$0xff]
        %v885 = vld [vmem:[#allocation2 + $0x30] sm:$0xff]
        %v886 = vld [vmem:[#allocation2 + $0x38] sm:$0xff]
        %v887 = vld [vmem:[#allocation2 + $0x40] sm:$0xff]
        %v888 = vld [vmem:[#allocation2 + $0x48] sm:$0xff]
        %v889 = vperm.slane %v864, 7
        %v890 = vmul.f32 %v880, %v889
        %v891 = vmul.f32 %v881, %v889
        %v892 = vmul.f32 %v882, %v889
        %v893 = vmul.f32 %v883, %v889
        %v894 = vmul.f32 %v884, %v889
        %v895 = vmul.f32 %v885, %v889
        %v896 = vmul.f32 %v886, %v889
        %v897 = vmul.f32 %v887, %v889
        %v898 = vld [vmem:[#allocation2 + $0x50] sm:$0xff]
        %v899 = vperm.slane %v865, 7
        %v900 = vmul.f32 %v881, %v899
        %v901 = vmul.f32 %v882, %v899
        %v902 = vmul.f32 %v883, %v899
        %v903 = vmul.f32 %v884, %v899
        %v904 = vmul.f32 %v885, %v899
        %v905 = vmul.f32 %v886, %v899
        %v906 = vmul.f32 %v887, %v899
        %v907 = vmul.f32 %v888, %v899
        %v908 = vadd.f32 %v890, %v900
        %v909 = vadd.f32 %v891, %v901
        %v910 = vadd.f32 %v892, %v902
        %v911 = vadd.f32 %v893, %v903
        %v912 = vadd.f32 %v894, %v904
        %v913 = vadd.f32 %v895, %v905
        %v914 = vadd.f32 %v896, %v906
        %v915 = vadd.f32 %v897, %v907
        %v916 = vld [vmem:[#allocation2 + $0x18] sm:$0xff]
        %v917 = vld [vmem:[#allocation2 + $0x20] sm:$0xff]
        %v918 = vld [vmem:[#allocation2 + $0x28] sm:$0xff]
        %v919 = vld [vmem:[#allocation2 + $0x30] sm:$0xff]
        %v920 = vld [vmem:[#allocation2 + $0x38] sm:$0xff]
        %v921 = vld [vmem:[#allocation2 + $0x40] sm:$0xff]
        %v922 = vld [vmem:[#allocation2 + $0x48] sm:$0xff]
        %v923 = vld [vmem:[#allocation2 + $0x50] sm:$0xff]
        %v924 = vld [vmem:[#allocation2 + $0x58] sm:$0xff]
        %v925 = vperm.slane %v866, 7
        %v926 = vmul.f32 %v916, %v925
        %v927 = vmul.f32 %v917, %v925
        %v928 = vmul.f32 %v918, %v925
        %v929 = vmul.f32 %v919, %v925
        %v930 = vmul.f32 %v920, %v925
        %v931 = vmul.f32 %v921, %v925
        %v932 = vmul.f32 %v922, %v925
        %v933 = vmul.f32 %v923, %v925
        %v934 = vadd.f32 %v908, %v926
        %v935 = vadd.f32 %v909, %v927
        %v936 = vadd.f32 %v910, %v928
        %v937 = vadd.f32 %v911, %v929
        %v938 = vadd.f32 %v912, %v930
        %v939 = vadd.f32 %v913, %v931
        %v940 = vadd.f32 %v914, %v932
        %v941 = vadd.f32 %v915, %v933
        %v942 = vld [vmem:[#allocation2] sm:$0xff]
        %v943 = vperm.slane %v864, 0
        %v944 = vmul.f32 %v942, %v943
        %v945 = vmul.f32 %v880, %v943
        %v946 = vmul.f32 %v881, %v943
        %v947 = vmul.f32 %v882, %v943
        %v948 = vmul.f32 %v883, %v943
        %v949 = vmul.f32 %v884, %v943
        %v950 = vmul.f32 %v885, %v943
        %v951 = vmul.f32 %v886, %v943
        %v952 = vmul.f32 %v887, %v943
        %v953 = vperm.slane %v865, 0
        %v954 = vmul.f32 %v880, %v953
        %v955 = vmul.f32 %v881, %v953
        %v956 = vmul.f32 %v882, %v953
        %v957 = vmul.f32 %v883, %v953
        %v958 = vmul.f32 %v884, %v953
        %v959 = vmul.f32 %v885, %v953
        %v960 = vmul.f32 %v886, %v953
        %v961 = vmul.f32 %v887, %v953
        %v962 = vmul.f32 %v888, %v953
        %v963 = vadd.f32 %v944, %v954
        %v964 = vadd.f32 %v945, %v955
        %v965 = vadd.f32 %v946, %v956
        %v966 = vadd.f32 %v947, %v957
        %v967 = vadd.f32 %v948, %v958
        %v968 = vadd.f32 %v949, %v959
        %v969 = vadd.f32 %v950, %v960
        %v970 = vadd.f32 %v951, %v961
        %v971 = vadd.f32 %v952, %v962
        %v972 = vperm.slane %v866, 0
        %v973 = vmul.f32 %v881, %v972
        %v974 = vmul.f32 %v882, %v972
        %v975 = vmul.f32 %v883, %v972
        %v976 = vmul.f32 %v884, %v972
        %v977 = vmul.f32 %v885, %v972
        %v978 = vmul.f32 %v886, %v972
        %v979 = vmul.f32 %v887, %v972
        %v980 = vmul.f32 %v888, %v972
        %v981 = vmul.f32 %v898, %v972
        %v982 = vadd.f32 %v963, %v973
        %v983 = vadd.f32 %v964, %v974
        %v984 = vadd.f32 %v965, %v975
        %v985 = vadd.f32 %v966, %v976
        %v986 = vadd.f32 %v967, %v977
        %v987 = vadd.f32 %v968, %v978
        %v988 = vadd.f32 %v969, %v979
        %v989 = vadd.f32 %v970, %v980
        %v990 = vadd.f32 %v971, %v981
        %v991 = vperm.slane %v867, 0
        %v992 = vmul.f32 %v916, %v991
        %v993 = vmul.f32 %v917, %v991
        %v994 = vmul.f32 %v918, %v991
        %v995 = vmul.f32 %v919, %v991
        %v996 = vmul.f32 %v920, %v991
        %v997 = vmul.f32 %v921, %v991
        %v998 = vmul.f32 %v922, %v991
        %v999 = vmul.f32 %v923, %v991
        %v1000 = vmul.f32 %v924, %v991
        %v1001 = vadd.f32 %v982, %v992
        %v1002 = vadd.f32 %v983, %v993
        %v1003 = vadd.f32 %v984, %v994
        %v1004 = vadd.f32 %v985, %v995
        %v1005 = vadd.f32 %v986, %v996
        %v1006 = vadd.f32 %v987, %v997
        %v1007 = vadd.f32 %v988, %v998
        %v1008 = vadd.f32 %v989, %v999
        %v1009 = vadd.f32 %v990, %v1000
        %vm1019 = vcmask 1046528
        %v1020 = vrot.slane %v1001, 1
        %v1021 = vrot.slane %v1002, 1
        %v1022 = vsel %vm1019, %v1020, %v1021
        %v1023 = vrot.slane %v1003, 1
        %v1024 = vsel %vm1019, %v1021, %v1023
        %v1025 = vrot.slane %v1004, 1
        %v1026 = vsel %vm1019, %v1023, %v1025
        %v1027 = vrot.slane %v1005, 1
        %v1028 = vsel %vm1019, %v1025, %v1027
        %v1029 = vrot.slane %v1006, 1
        %v1030 = vsel %vm1019, %v1027, %v1029
        %v1031 = vrot.slane %v1007, 1
        %v1032 = vsel %vm1019, %v1029, %v1031
        %v1033 = vrot.slane %v1008, 1
        %v1034 = vsel %vm1019, %v1031, %v1033
        %v1035 = vrot.slane %v1009, 1
        %v1036 = vsel %vm1019, %v1033, %v1035
        %v1045 = vadd.f32 %v934, %v1022
        %v1046 = vadd.f32 %v935, %v1024
        %v1047 = vadd.f32 %v936, %v1026
        %v1048 = vadd.f32 %v937, %v1028
        %v1049 = vadd.f32 %v938, %v1030
        %v1050 = vadd.f32 %v939, %v1032
        %v1051 = vadd.f32 %v940, %v1034
        %v1052 = vadd.f32 %v941, %v1036
        %v1053 = vperm.slane %v864, 1
        %v1054 = vmul.f32 %v942, %v1053
        %v1055 = vmul.f32 %v880, %v1053
        %v1056 = vmul.f32 %v881, %v1053
        %v1057 = vmul.f32 %v882, %v1053
        %v1058 = vmul.f32 %v883, %v1053
        %v1059 = vmul.f32 %v884, %v1053
        %v1060 = vmul.f32 %v885, %v1053
        %v1061 = vmul.f32 %v886, %v1053
        %v1062 = vmul.f32 %v887, %v1053
        %v1063 = vperm.slane %v865, 1
        %v1064 = vmul.f32 %v880, %v1063
        %v1065 = vmul.f32 %v881, %v1063
        %v1066 = vmul.f32 %v882, %v1063
        %v1067 = vmul.f32 %v883, %v1063
        %v1068 = vmul.f32 %v884, %v1063
        %v1069 = vmul.f32 %v885, %v1063
        %v1070 = vmul.f32 %v886, %v1063
        %v1071 = vmul.f32 %v887, %v1063
        %v1072 = vmul.f32 %v888, %v1063
        %v1073 = vadd.f32 %v1054, %v1064
        %v1074 = vadd.f32 %v1055, %v1065
        %v1075 = vadd.f32 %v1056, %v1066
        %v1076 = vadd.f32 %v1057, %v1067
        %v1077 = vadd.f32 %v1058, %v1068
        %v1078 = vadd.f32 %v1059, %v1069
        %v1079 = vadd.f32 %v1060, %v1070
        %v1080 = vadd.f32 %v1061, %v1071
        %v1081 = vadd.f32 %v1062, %v1072
        %v1082 = vperm.slane %v866, 1
        %v1083 = vmul.f32 %v881, %v1082
        %v1084 = vmul.f32 %v882, %v1082
        %v1085 = vmul.f32 %v883, %v1082
        %v1086 = vmul.f32 %v884, %v1082
        %v1087 = vmul.f32 %v885, %v1082
        %v1088 = vmul.f32 %v886, %v1082
        %v1089 = vmul.f32 %v887, %v1082
        %v1090 = vmul.f32 %v888, %v1082
        %v1091 = vmul.f32 %v898, %v1082
        %v1092 = vadd.f32 %v1073, %v1083
        %v1093 = vadd.f32 %v1074, %v1084
        %v1094 = vadd.f32 %v1075, %v1085
        %v1095 = vadd.f32 %v1076, %v1086
        %v1096 = vadd.f32 %v1077, %v1087
        %v1097 = vadd.f32 %v1078, %v1088
        %v1098 = vadd.f32 %v1079, %v1089
        %v1099 = vadd.f32 %v1080, %v1090
        %v1100 = vadd.f32 %v1081, %v1091
        %v1101 = vperm.slane %v867, 1
        %v1102 = vmul.f32 %v916, %v1101
        %v1103 = vmul.f32 %v917, %v1101
        %v1104 = vmul.f32 %v918, %v1101
        %v1105 = vmul.f32 %v919, %v1101
        %v1106 = vmul.f32 %v920, %v1101
        %v1107 = vmul.f32 %v921, %v1101
        %v1108 = vmul.f32 %v922, %v1101
        %v1109 = vmul.f32 %v923, %v1101
        %v1110 = vmul.f32 %v924, %v1101
        %v1111 = vadd.f32 %v1092, %v1102
        %v1112 = vadd.f32 %v1093, %v1103
        %v1113 = vadd.f32 %v1094, %v1104
        %v1114 = vadd.f32 %v1095, %v1105
        %v1115 = vadd.f32 %v1096, %v1106
        %v1116 = vadd.f32 %v1097, %v1107
        %v1117 = vadd.f32 %v1098, %v1108
        %v1118 = vadd.f32 %v1099, %v1109
        %v1119 = vadd.f32 %v1100, %v1110
        %vm1129 = vcmask 1045504
        %v1130 = vrot.slane %v1111, 2
        %v1131 = vrot.slane %v1112, 2
        %v1132 = vsel %vm1129, %v1130, %v1131
        %v1133 = vrot.slane %v1113, 2
        %v1134 = vsel %vm1129, %v1131, %v1133
        %v1135 = vrot.slane %v1114, 2
        %v1136 = vsel %vm1129, %v1133, %v1135
        %v1137 = vrot.slane %v1115, 2
        %v1138 = vsel %vm1129, %v1135, %v1137
        %v1139 = vrot.slane %v1116, 2
        %v1140 = vsel %vm1129, %v1137, %v1139
        %v1141 = vrot.slane %v1117, 2
        %v1142 = vsel %vm1129, %v1139, %v1141
        %v1143 = vrot.slane %v1118, 2
        %v1144 = vsel %vm1129, %v1141, %v1143
        %v1145 = vrot.slane %v1119, 2
        %v1146 = vsel %vm1129, %v1143, %v1145
        %v1155 = vadd.f32 %v1045, %v1132
        %v1156 = vadd.f32 %v1046, %v1134
        %v1157 = vadd.f32 %v1047, %v1136
        %v1158 = vadd.f32 %v1048, %v1138
        %v1159 = vadd.f32 %v1049, %v1140
        %v1160 = vadd.f32 %v1050, %v1142
        %v1161 = vadd.f32 %v1051, %v1144
        %v1162 = vadd.f32 %v1052, %v1146
        %v1163 = vperm.slane %v864, 2
        %v1164 = vmul.f32 %v942, %v1163
        %v1165 = vmul.f32 %v880, %v1163
        %v1166 = vmul.f32 %v881, %v1163
        %v1167 = vmul.f32 %v882, %v1163
        %v1168 = vmul.f32 %v883, %v1163
        %v1169 = vmul.f32 %v884, %v1163
        %v1170 = vmul.f32 %v885, %v1163
        %v1171 = vmul.f32 %v886, %v1163
        %v1172 = vmul.f32 %v887, %v1163
        %v1173 = vperm.slane %v865, 2
        %v1174 = vmul.f32 %v880, %v1173
        %v1175 = vmul.f32 %v881, %v1173
        %v1176 = vmul.f32 %v882, %v1173
        %v1177 = vmul.f32 %v883, %v1173
        %v1178 = vmul.f32 %v884, %v1173
        %v1179 = vmul.f32 %v885, %v1173
        %v1180 = vmul.f32 %v886, %v1173
        %v1181 = vmul.f32 %v887, %v1173
        %v1182 = vmul.f32 %v888, %v1173
        %v1183 = vadd.f32 %v1164, %v1174
        %v1184 = vadd.f32 %v1165, %v1175
        %v1185 = vadd.f32 %v1166, %v1176
        %v1186 = vadd.f32 %v1167, %v1177
        %v1187 = vadd.f32 %v1168, %v1178
        %v1188 = vadd.f32 %v1169, %v1179
        %v1189 = vadd.f32 %v1170, %v1180
        %v1190 = vadd.f32 %v1171, %v1181
        %v1191 = vadd.f32 %v1172, %v1182
        %v1192 = vperm.slane %v866, 2
        %v1193 = vmul.f32 %v881, %v1192
        %v1194 = vmul.f32 %v882, %v1192
        %v1195 = vmul.f32 %v883, %v1192
        %v1196 = vmul.f32 %v884, %v1192
        %v1197 = vmul.f32 %v885, %v1192
        %v1198 = vmul.f32 %v886, %v1192
        %v1199 = vmul.f32 %v887, %v1192
        %v1200 = vmul.f32 %v888, %v1192
        %v1201 = vmul.f32 %v898, %v1192
        %v1202 = vadd.f32 %v1183, %v1193
        %v1203 = vadd.f32 %v1184, %v1194
        %v1204 = vadd.f32 %v1185, %v1195
        %v1205 = vadd.f32 %v1186, %v1196
        %v1206 = vadd.f32 %v1187, %v1197
        %v1207 = vadd.f32 %v1188, %v1198
        %v1208 = vadd.f32 %v1189, %v1199
        %v1209 = vadd.f32 %v1190, %v1200
        %v1210 = vadd.f32 %v1191, %v1201
        %v1211 = vperm.slane %v867, 2
        %v1212 = vmul.f32 %v916, %v1211
        %v1213 = vmul.f32 %v917, %v1211
        %v1214 = vmul.f32 %v918, %v1211
        %v1215 = vmul.f32 %v919, %v1211
        %v1216 = vmul.f32 %v920, %v1211
        %v1217 = vmul.f32 %v921, %v1211
        %v1218 = vmul.f32 %v922, %v1211
        %v1219 = vmul.f32 %v923, %v1211
        %v1220 = vmul.f32 %v924, %v1211
        %v1221 = vadd.f32 %v1202, %v1212
        %v1222 = vadd.f32 %v1203, %v1213
        %v1223 = vadd.f32 %v1204, %v1214
        %v1224 = vadd.f32 %v1205, %v1215
        %v1225 = vadd.f32 %v1206, %v1216
        %v1226 = vadd.f32 %v1207, %v1217
        %v1227 = vadd.f32 %v1208, %v1218
        %v1228 = vadd.f32 %v1209, %v1219
        %v1229 = vadd.f32 %v1210, %v1220
        %vm1239 = vcmask 1044480
        %v1240 = vrot.slane %v1221, 3
        %v1241 = vrot.slane %v1222, 3
        %v1242 = vsel %vm1239, %v1240, %v1241
        %v1243 = vrot.slane %v1223, 3
        %v1244 = vsel %vm1239, %v1241, %v1243
        %v1245 = vrot.slane %v1224, 3
        %v1246 = vsel %vm1239, %v1243, %v1245
        %v1247 = vrot.slane %v1225, 3
        %v1248 = vsel %vm1239, %v1245, %v1247
        %v1249 = vrot.slane %v1226, 3
        %v1250 = vsel %vm1239, %v1247, %v1249
        %v1251 = vrot.slane %v1227, 3
        %v1252 = vsel %vm1239, %v1249, %v1251
        %v1253 = vrot.slane %v1228, 3
        %v1254 = vsel %vm1239, %v1251, %v1253
        %v1255 = vrot.slane %v1229, 3
        %v1256 = vsel %vm1239, %v1253, %v1255
        %v1265 = vadd.f32 %v1155, %v1242
        %v1266 = vadd.f32 %v1156, %v1244
        %v1267 = vadd.f32 %v1157, %v1246
        %v1268 = vadd.f32 %v1158, %v1248
        %v1269 = vadd.f32 %v1159, %v1250
        %v1270 = vadd.f32 %v1160, %v1252
        %v1271 = vadd.f32 %v1161, %v1254
        %v1272 = vadd.f32 %v1162, %v1256
        %v1273 = vperm.slane %v864, 3
        %v1274 = vmul.f32 %v942, %v1273
        %v1275 = vmul.f32 %v880, %v1273
        %v1276 = vmul.f32 %v881, %v1273
        %v1277 = vmul.f32 %v882, %v1273
        %v1278 = vmul.f32 %v883, %v1273
        %v1279 = vmul.f32 %v884, %v1273
        %v1280 = vmul.f32 %v885, %v1273
        %v1281 = vmul.f32 %v886, %v1273
        %v1282 = vmul.f32 %v887, %v1273
        %v1283 = vperm.slane %v865, 3
        %v1284 = vmul.f32 %v880, %v1283
        %v1285 = vmul.f32 %v881, %v1283
        %v1286 = vmul.f32 %v882, %v1283
        %v1287 = vmul.f32 %v883, %v1283
        %v1288 = vmul.f32 %v884, %v1283
        %v1289 = vmul.f32 %v885, %v1283
        %v1290 = vmul.f32 %v886, %v1283
        %v1291 = vmul.f32 %v887, %v1283
        %v1292 = vmul.f32 %v888, %v1283
        %v1293 = vadd.f32 %v1274, %v1284
        %v1294 = vadd.f32 %v1275, %v1285
        %v1295 = vadd.f32 %v1276, %v1286
        %v1296 = vadd.f32 %v1277, %v1287
        %v1297 = vadd.f32 %v1278, %v1288
        %v1298 = vadd.f32 %v1279, %v1289
        %v1299 = vadd.f32 %v1280, %v1290
        %v1300 = vadd.f32 %v1281, %v1291
        %v1301 = vadd.f32 %v1282, %v1292
        %v1302 = vperm.slane %v866, 3
        %v1303 = vmul.f32 %v881, %v1302
        %v1304 = vmul.f32 %v882, %v1302
        %v1305 = vmul.f32 %v883, %v1302
        %v1306 = vmul.f32 %v884, %v1302
        %v1307 = vmul.f32 %v885, %v1302
        %v1308 = vmul.f32 %v886, %v1302
        %v1309 = vmul.f32 %v887, %v1302
        %v1310 = vmul.f32 %v888, %v1302
        %v1311 = vmul.f32 %v898, %v1302
        %v1312 = vadd.f32 %v1293, %v1303
        %v1313 = vadd.f32 %v1294, %v1304
        %v1314 = vadd.f32 %v1295, %v1305
        %v1315 = vadd.f32 %v1296, %v1306
        %v1316 = vadd.f32 %v1297, %v1307
        %v1317 = vadd.f32 %v1298, %v1308
        %v1318 = vadd.f32 %v1299, %v1309
        %v1319 = vadd.f32 %v1300, %v1310
        %v1320 = vadd.f32 %v1301, %v1311
        %v1321 = vperm.slane %v867, 3
        %v1322 = vmul.f32 %v916, %v1321
        %v1323 = vmul.f32 %v917, %v1321
        %v1324 = vmul.f32 %v918, %v1321
        %v1325 = vmul.f32 %v919, %v1321
        %v1326 = vmul.f32 %v920, %v1321
        %v1327 = vmul.f32 %v921, %v1321
        %v1328 = vmul.f32 %v922, %v1321
        %v1329 = vmul.f32 %v923, %v1321
        %v1330 = vmul.f32 %v924, %v1321
        %v1331 = vadd.f32 %v1312, %v1322
        %v1332 = vadd.f32 %v1313, %v1323
        %v1333 = vadd.f32 %v1314, %v1324
        %v1334 = vadd.f32 %v1315, %v1325
        %v1335 = vadd.f32 %v1316, %v1326
        %v1336 = vadd.f32 %v1317, %v1327
        %v1337 = vadd.f32 %v1318, %v1328
        %v1338 = vadd.f32 %v1319, %v1329
        %v1339 = vadd.f32 %v1320, %v1330
        %vm1349 = vcmask 1043456
        %v1350 = vrot.slane %v1331, 4
        %v1351 = vrot.slane %v1332, 4
        %v1352 = vsel %vm1349, %v1350, %v1351
        %v1353 = vrot.slane %v1333, 4
        %v1354 = vsel %vm1349, %v1351, %v1353
        %v1355 = vrot.slane %v1334, 4
        %v1356 = vsel %vm1349, %v1353, %v1355
        %v1357 = vrot.slane %v1335, 4
        %v1358 = vsel %vm1349, %v1355, %v1357
        %v1359 = vrot.slane %v1336, 4
        %v1360 = vsel %vm1349, %v1357, %v1359
        %v1361 = vrot.slane %v1337, 4
        %v1362 = vsel %vm1349, %v1359, %v1361
        %v1363 = vrot.slane %v1338, 4
        %v1364 = vsel %vm1349, %v1361, %v1363
        %v1365 = vrot.slane %v1339, 4
        %v1366 = vsel %vm1349, %v1363, %v1365
        %v1375 = vadd.f32 %v1265, %v1352
        %v1376 = vadd.f32 %v1266, %v1354
        %v1377 = vadd.f32 %v1267, %v1356
        %v1378 = vadd.f32 %v1268, %v1358
        %v1379 = vadd.f32 %v1269, %v1360
        %v1380 = vadd.f32 %v1270, %v1362
        %v1381 = vadd.f32 %v1271, %v1364
        %v1382 = vadd.f32 %v1272, %v1366
        %v1383 = vperm.slane %v864, 4
        %v1384 = vmul.f32 %v942, %v1383
        %v1385 = vmul.f32 %v880, %v1383
        %v1386 = vmul.f32 %v881, %v1383
        %v1387 = vmul.f32 %v882, %v1383
        %v1388 = vmul.f32 %v883, %v1383
        %v1389 = vmul.f32 %v884, %v1383
        %v1390 = vmul.f32 %v885, %v1383
        %v1391 = vmul.f32 %v886, %v1383
        %v1392 = vmul.f32 %v887, %v1383
        %v1393 = vperm.slane %v865, 4
        %v1394 = vmul.f32 %v880, %v1393
        %v1395 = vmul.f32 %v881, %v1393
        %v1396 = vmul.f32 %v882, %v1393
        %v1397 = vmul.f32 %v883, %v1393
        %v1398 = vmul.f32 %v884, %v1393
        %v1399 = vmul.f32 %v885, %v1393
        %v1400 = vmul.f32 %v886, %v1393
        %v1401 = vmul.f32 %v887, %v1393
        %v1402 = vmul.f32 %v888, %v1393
        %v1403 = vadd.f32 %v1384, %v1394
        %v1404 = vadd.f32 %v1385, %v1395
        %v1405 = vadd.f32 %v1386, %v1396
        %v1406 = vadd.f32 %v1387, %v1397
        %v1407 = vadd.f32 %v1388, %v1398
        %v1408 = vadd.f32 %v1389, %v1399
        %v1409 = vadd.f32 %v1390, %v1400
        %v1410 = vadd.f32 %v1391, %v1401
        %v1411 = vadd.f32 %v1392, %v1402
        %v1412 = vperm.slane %v866, 4
        %v1413 = vmul.f32 %v881, %v1412
        %v1414 = vmul.f32 %v882, %v1412
        %v1415 = vmul.f32 %v883, %v1412
        %v1416 = vmul.f32 %v884, %v1412
        %v1417 = vmul.f32 %v885, %v1412
        %v1418 = vmul.f32 %v886, %v1412
        %v1419 = vmul.f32 %v887, %v1412
        %v1420 = vmul.f32 %v888, %v1412
        %v1421 = vmul.f32 %v898, %v1412
        %v1422 = vadd.f32 %v1403, %v1413
        %v1423 = vadd.f32 %v1404, %v1414
        %v1424 = vadd.f32 %v1405, %v1415
        %v1425 = vadd.f32 %v1406, %v1416
        %v1426 = vadd.f32 %v1407, %v1417
        %v1427 = vadd.f32 %v1408, %v1418
        %v1428 = vadd.f32 %v1409, %v1419
        %v1429 = vadd.f32 %v1410, %v1420
        %v1430 = vadd.f32 %v1411, %v1421
        %v1431 = vperm.slane %v867, 4
        %v1432 = vmul.f32 %v916, %v1431
        %v1433 = vmul.f32 %v917, %v1431
        %v1434 = vmul.f32 %v918, %v1431
        %v1435 = vmul.f32 %v919, %v1431
        %v1436 = vmul.f32 %v920, %v1431
        %v1437 = vmul.f32 %v921, %v1431
        %v1438 = vmul.f32 %v922, %v1431
        %v1439 = vmul.f32 %v923, %v1431
        %v1440 = vmul.f32 %v924, %v1431
        %v1441 = vadd.f32 %v1422, %v1432
        %v1442 = vadd.f32 %v1423, %v1433
        %v1443 = vadd.f32 %v1424, %v1434
        %v1444 = vadd.f32 %v1425, %v1435
        %v1445 = vadd.f32 %v1426, %v1436
        %v1446 = vadd.f32 %v1427, %v1437
        %v1447 = vadd.f32 %v1428, %v1438
        %v1448 = vadd.f32 %v1429, %v1439
        %v1449 = vadd.f32 %v1430, %v1440
        %vm1459 = vcmask 1042432
        %v1460 = vrot.slane %v1441, 5
        %v1461 = vrot.slane %v1442, 5
        %v1462 = vsel %vm1459, %v1460, %v1461
        %v1463 = vrot.slane %v1443, 5
        %v1464 = vsel %vm1459, %v1461, %v1463
        %v1465 = vrot.slane %v1444, 5
        %v1466 = vsel %vm1459, %v1463, %v1465
        %v1467 = vrot.slane %v1445, 5
        %v1468 = vsel %vm1459, %v1465, %v1467
        %v1469 = vrot.slane %v1446, 5
        %v1470 = vsel %vm1459, %v1467, %v1469
        %v1471 = vrot.slane %v1447, 5
        %v1472 = vsel %vm1459, %v1469, %v1471
        %v1473 = vrot.slane %v1448, 5
        %v1474 = vsel %vm1459, %v1471, %v1473
        %v1475 = vrot.slane %v1449, 5
        %v1476 = vsel %vm1459, %v1473, %v1475
        %v1485 = vadd.f32 %v1375, %v1462
        %v1486 = vadd.f32 %v1376, %v1464
        %v1487 = vadd.f32 %v1377, %v1466
        %v1488 = vadd.f32 %v1378, %v1468
        %v1489 = vadd.f32 %v1379, %v1470
        %v1490 = vadd.f32 %v1380, %v1472
        %v1491 = vadd.f32 %v1381, %v1474
        %v1492 = vadd.f32 %v1382, %v1476
        %v1493 = vperm.slane %v864, 5
        %v1494 = vmul.f32 %v942, %v1493
        %v1495 = vmul.f32 %v880, %v1493
        %v1496 = vmul.f32 %v881, %v1493
        %v1497 = vmul.f32 %v882, %v1493
        %v1498 = vmul.f32 %v883, %v1493
        %v1499 = vmul.f32 %v884, %v1493
        %v1500 = vmul.f32 %v885, %v1493
        %v1501 = vmul.f32 %v886, %v1493
        %v1502 = vmul.f32 %v887, %v1493
        %v1503 = vperm.slane %v865, 5
        %v1504 = vmul.f32 %v880, %v1503
        %v1505 = vmul.f32 %v881, %v1503
        %v1506 = vmul.f32 %v882, %v1503
        %v1507 = vmul.f32 %v883, %v1503
        %v1508 = vmul.f32 %v884, %v1503
        %v1509 = vmul.f32 %v885, %v1503
        %v1510 = vmul.f32 %v886, %v1503
        %v1511 = vmul.f32 %v887, %v1503
        %v1512 = vmul.f32 %v888, %v1503
        %v1513 = vadd.f32 %v1494, %v1504
        %v1514 = vadd.f32 %v1495, %v1505
        %v1515 = vadd.f32 %v1496, %v1506
        %v1516 = vadd.f32 %v1497, %v1507
        %v1517 = vadd.f32 %v1498, %v1508
        %v1518 = vadd.f32 %v1499, %v1509
        %v1519 = vadd.f32 %v1500, %v1510
        %v1520 = vadd.f32 %v1501, %v1511
        %v1521 = vadd.f32 %v1502, %v1512
        %v1522 = vperm.slane %v866, 5
        %v1523 = vmul.f32 %v881, %v1522
        %v1524 = vmul.f32 %v882, %v1522
        %v1525 = vmul.f32 %v883, %v1522
        %v1526 = vmul.f32 %v884, %v1522
        %v1527 = vmul.f32 %v885, %v1522
        %v1528 = vmul.f32 %v886, %v1522
        %v1529 = vmul.f32 %v887, %v1522
        %v1530 = vmul.f32 %v888, %v1522
        %v1531 = vmul.f32 %v898, %v1522
        %v1532 = vadd.f32 %v1513, %v1523
        %v1533 = vadd.f32 %v1514, %v1524
        %v1534 = vadd.f32 %v1515, %v1525
        %v1535 = vadd.f32 %v1516, %v1526
        %v1536 = vadd.f32 %v1517, %v1527
        %v1537 = vadd.f32 %v1518, %v1528
        %v1538 = vadd.f32 %v1519, %v1529
        %v1539 = vadd.f32 %v1520, %v1530
        %v1540 = vadd.f32 %v1521, %v1531
        %v1541 = vperm.slane %v867, 5
        %v1542 = vmul.f32 %v916, %v1541
        %v1543 = vmul.f32 %v917, %v1541
        %v1544 = vmul.f32 %v918, %v1541
        %v1545 = vmul.f32 %v919, %v1541
        %v1546 = vmul.f32 %v920, %v1541
        %v1547 = vmul.f32 %v921, %v1541
        %v1548 = vmul.f32 %v922, %v1541
        %v1549 = vmul.f32 %v923, %v1541
        %v1550 = vmul.f32 %v924, %v1541
        %v1551 = vadd.f32 %v1532, %v1542
        %v1552 = vadd.f32 %v1533, %v1543
        %v1553 = vadd.f32 %v1534, %v1544
        %v1554 = vadd.f32 %v1535, %v1545
        %v1555 = vadd.f32 %v1536, %v1546
        %v1556 = vadd.f32 %v1537, %v1547
        %v1557 = vadd.f32 %v1538, %v1548
        %v1558 = vadd.f32 %v1539, %v1549
        %v1559 = vadd.f32 %v1540, %v1550
        %vm1569 = vcmask 1041408
        %v1570 = vrot.slane %v1551, 6
        %v1571 = vrot.slane %v1552, 6
        %v1572 = vsel %vm1569, %v1570, %v1571
        %v1573 = vrot.slane %v1553, 6
        %v1574 = vsel %vm1569, %v1571, %v1573
        %v1575 = vrot.slane %v1554, 6
        %v1576 = vsel %vm1569, %v1573, %v1575
        %v1577 = vrot.slane %v1555, 6
        %v1578 = vsel %vm1569, %v1575, %v1577
        %v1579 = vrot.slane %v1556, 6
        %v1580 = vsel %vm1569, %v1577, %v1579
        %v1581 = vrot.slane %v1557, 6
        %v1582 = vsel %vm1569, %v1579, %v1581
        %v1583 = vrot.slane %v1558, 6
        %v1584 = vsel %vm1569, %v1581, %v1583
        %v1585 = vrot.slane %v1559, 6
        %v1586 = vsel %vm1569, %v1583, %v1585
        %v1595 = vadd.f32 %v1485, %v1572
        %v1596 = vadd.f32 %v1486, %v1574
        %v1597 = vadd.f32 %v1487, %v1576
        %v1598 = vadd.f32 %v1488, %v1578
        %v1599 = vadd.f32 %v1489, %v1580
        %v1600 = vadd.f32 %v1490, %v1582
        %v1601 = vadd.f32 %v1491, %v1584
        %v1602 = vadd.f32 %v1492, %v1586
        %v1603 = vperm.slane %v864, 6
        %v1604 = vmul.f32 %v942, %v1603
        %v1605 = vmul.f32 %v880, %v1603
        %v1606 = vmul.f32 %v881, %v1603
        %v1607 = vmul.f32 %v882, %v1603
        %v1608 = vmul.f32 %v883, %v1603
        %v1609 = vmul.f32 %v884, %v1603
        %v1610 = vmul.f32 %v885, %v1603
        %v1611 = vmul.f32 %v886, %v1603
        %v1612 = vmul.f32 %v887, %v1603
        %v1613 = vperm.slane %v865, 6
        %v1614 = vmul.f32 %v880, %v1613
        %v1615 = vmul.f32 %v881, %v1613
        %v1616 = vmul.f32 %v882, %v1613
        %v1617 = vmul.f32 %v883, %v1613
        %v1618 = vmul.f32 %v884, %v1613
        %v1619 = vmul.f32 %v885, %v1613
        %v1620 = vmul.f32 %v886, %v1613
        %v1621 = vmul.f32 %v887, %v1613
        %v1622 = vmul.f32 %v888, %v1613
        %v1623 = vadd.f32 %v1604, %v1614
        %v1624 = vadd.f32 %v1605, %v1615
        %v1625 = vadd.f32 %v1606, %v1616
        %v1626 = vadd.f32 %v1607, %v1617
        %v1627 = vadd.f32 %v1608, %v1618
        %v1628 = vadd.f32 %v1609, %v1619
        %v1629 = vadd.f32 %v1610, %v1620
        %v1630 = vadd.f32 %v1611, %v1621
        %v1631 = vadd.f32 %v1612, %v1622
        %v1632 = vperm.slane %v866, 6
        %v1633 = vmul.f32 %v881, %v1632
        %v1634 = vmul.f32 %v882, %v1632
        %v1635 = vmul.f32 %v883, %v1632
        %v1636 = vmul.f32 %v884, %v1632
        %v1637 = vmul.f32 %v885, %v1632
        %v1638 = vmul.f32 %v886, %v1632
        %v1639 = vmul.f32 %v887, %v1632
        %v1640 = vmul.f32 %v888, %v1632
        %v1641 = vmul.f32 %v898, %v1632
        %v1642 = vadd.f32 %v1623, %v1633
        %v1643 = vadd.f32 %v1624, %v1634
        %v1644 = vadd.f32 %v1625, %v1635
        %v1645 = vadd.f32 %v1626, %v1636
        %v1646 = vadd.f32 %v1627, %v1637
        %v1647 = vadd.f32 %v1628, %v1638
        %v1648 = vadd.f32 %v1629, %v1639
        %v1649 = vadd.f32 %v1630, %v1640
        %v1650 = vadd.f32 %v1631, %v1641
        %v1651 = vperm.slane %v867, 6
        %v1652 = vmul.f32 %v916, %v1651
        %v1653 = vmul.f32 %v917, %v1651
        %v1654 = vmul.f32 %v918, %v1651
        %v1655 = vmul.f32 %v919, %v1651
        %v1656 = vmul.f32 %v920, %v1651
        %v1657 = vmul.f32 %v921, %v1651
        %v1658 = vmul.f32 %v922, %v1651
        %v1659 = vmul.f32 %v923, %v1651
        %v1660 = vmul.f32 %v924, %v1651
        %v1661 = vadd.f32 %v1642, %v1652
        %v1662 = vadd.f32 %v1643, %v1653
        %v1663 = vadd.f32 %v1644, %v1654
        %v1664 = vadd.f32 %v1645, %v1655
        %v1665 = vadd.f32 %v1646, %v1656
        %v1666 = vadd.f32 %v1647, %v1657
        %v1667 = vadd.f32 %v1648, %v1658
        %v1668 = vadd.f32 %v1649, %v1659
        %v1669 = vadd.f32 %v1650, %v1660
        %vm1679 = vcmask 1040384
        %v1680 = vrot.slane %v1661, 7
        %v1681 = vrot.slane %v1662, 7
        %v1682 = vsel %vm1679, %v1680, %v1681
        %v1683 = vrot.slane %v1663, 7
        %v1684 = vsel %vm1679, %v1681, %v1683
        %v1685 = vrot.slane %v1664, 7
        %v1686 = vsel %vm1679, %v1683, %v1685
        %v1687 = vrot.slane %v1665, 7
        %v1688 = vsel %vm1679, %v1685, %v1687
        %v1689 = vrot.slane %v1666, 7
        %v1690 = vsel %vm1679, %v1687, %v1689
        %v1691 = vrot.slane %v1667, 7
        %v1692 = vsel %vm1679, %v1689, %v1691
        %v1693 = vrot.slane %v1668, 7
        %v1694 = vsel %vm1679, %v1691, %v1693
        %v1695 = vrot.slane %v1669, 7
        %v1696 = vsel %vm1679, %v1693, %v1695
        %v1705 = vadd.f32 %v1595, %v1682
        %v1706 = vadd.f32 %v1596, %v1684
        %v1707 = vadd.f32 %v1597, %v1686
        %v1708 = vadd.f32 %v1598, %v1688
        %v1709 = vadd.f32 %v1599, %v1690
        %v1710 = vadd.f32 %v1600, %v1692
        %v1711 = vadd.f32 %v1601, %v1694
        %v1712 = vadd.f32 %v1602, %v1696
        %v1713 = vld [vmem:[%s4] sm:$0x1]
        %v1715 = vperm.slane %v1713, 0
        %v1717 = vadd.f32 %v1705, %v1715
        %v1718 = vadd.f32 %v1706, %v1715
        %v1719 = vadd.f32 %v1707, %v1715
        %v1720 = vadd.f32 %v1708, %v1715
        %v1721 = vadd.f32 %v1709, %v1715
        %v1722 = vadd.f32 %v1710, %v1715
        %v1723 = vadd.f32 %v1711, %v1715
        %v1724 = vadd.f32 %v1712, %v1715
        %v1725 = vxor.u32 %v1717, 2147483648
        %v1726 = vxor.u32 %v1718, 2147483648
        %v1727 = vxor.u32 %v1719, 2147483648
        %v1728 = vxor.u32 %v1720, 2147483648
        %v1729 = vxor.u32 %v1721, 2147483648
        %v1730 = vxor.u32 %v1722, 2147483648
        %v1731 = vxor.u32 %v1723, 2147483648
        %v1732 = vxor.u32 %v1724, 2147483648
        %v1733 = vmul.f32 %v1725, 1.442695
        %v1734 = vpow.pop %v1733
        %v1735 = vmul.f32 %v1726, 1.442695
        %v1736 = vpow.pop %v1735
        %v1737 = vmul.f32 %v1727, 1.442695
        %v1738 = vpow.pop %v1737
        %v1739 = vmul.f32 %v1728, 1.442695
        %v1740 = vpow.pop %v1739
        %v1741 = vmul.f32 %v1729, 1.442695
        %v1742 = vpow.pop %v1741
        %v1743 = vmul.f32 %v1730, 1.442695
        %v1744 = vpow.pop %v1743
        %v1745 = vmul.f32 %v1731, 1.442695
        %v1746 = vpow.pop %v1745
        %v1747 = vmul.f32 %v1732, 1.442695
        %v1748 = vpow.pop %v1747
        %v1749 = vadd.f32 %v1734, 1.0
        %v1750 = vadd.f32 %v1736, 1.0
        %v1751 = vadd.f32 %v1738, 1.0
        %v1752 = vadd.f32 %v1740, 1.0
        %v1753 = vadd.f32 %v1742, 1.0
        %v1754 = vadd.f32 %v1744, 1.0
        %v1755 = vadd.f32 %v1746, 1.0
        %v1756 = vadd.f32 %v1748, 1.0
        %v1757 = vrcp.pop %v1749
        %v1758 = vmul.f32 %v1749, %v1757
        %v1759 = vsub.f32 1.0, %v1758
        %v1760 = vmul.f32 %v1757, %v1759
        %v1761 = vadd.f32 %v1757, %v1760
        %vm1762 = vweird.f32 %v1749
        %vm1763 = vweird.f32 %v1757
        %vm1764 = vmor %vm1762, %vm1763
        %v1765 = vsel %vm1764, %v1757, %v1761
        %v1766 = vand.u32 2147483647, %v1749
        %vm1767 = vcmp.eq.f32.partialorder %v1766, 8.507059e+37
        %v1768 = vand.u32 %v1749, 2147483648
        %v1769 = vor.u32 1.1754944e-38, %v1768
        %v1770 = vsel %vm1767, %v1769, %v1765
        %v1771 = vmul.f32 1.0, %v1770
        %v1772 = vrcp.pop %v1750
        %v1773 = vmul.f32 %v1750, %v1772
        %v1774 = vsub.f32 1.0, %v1773
        %v1775 = vmul.f32 %v1772, %v1774
        %v1776 = vadd.f32 %v1772, %v1775
        %vm1777 = vweird.f32 %v1750
        %vm1778 = vweird.f32 %v1772
        %vm1779 = vmor %vm1777, %vm1778
        %v1780 = vsel %vm1779, %v1772, %v1776
        %v1781 = vand.u32 2147483647, %v1750
        %vm1782 = vcmp.eq.f32.partialorder %v1781, 8.507059e+37
        %v1783 = vand.u32 %v1750, 2147483648
        %v1784 = vor.u32 1.1754944e-38, %v1783
        %v1785 = vsel %vm1782, %v1784, %v1780
        %v1786 = vmul.f32 1.0, %v1785
        %v1787 = vrcp.pop %v1751
        %v1788 = vmul.f32 %v1751, %v1787
        %v1789 = vsub.f32 1.0, %v1788
        %v1790 = vmul.f32 %v1787, %v1789
        %v1791 = vadd.f32 %v1787, %v1790
        %vm1792 = vweird.f32 %v1751
        %vm1793 = vweird.f32 %v1787
        %vm1794 = vmor %vm1792, %vm1793
        %v1795 = vsel %vm1794, %v1787, %v1791
        %v1796 = vand.u32 2147483647, %v1751
        %vm1797 = vcmp.eq.f32.partialorder %v1796, 8.507059e+37
        %v1798 = vand.u32 %v1751, 2147483648
        %v1799 = vor.u32 1.1754944e-38, %v1798
        %v1800 = vsel %vm1797, %v1799, %v1795
        %v1801 = vmul.f32 1.0, %v1800
        %v1802 = vrcp.pop %v1752
        %v1803 = vmul.f32 %v1752, %v1802
        %v1804 = vsub.f32 1.0, %v1803
        %v1805 = vmul.f32 %v1802, %v1804
        %v1806 = vadd.f32 %v1802, %v1805
        %vm1807 = vweird.f32 %v1752
        %vm1808 = vweird.f32 %v1802
        %vm1809 = vmor %vm1807, %vm1808
        %v1810 = vsel %vm1809, %v1802, %v1806
        %v1811 = vand.u32 2147483647, %v1752
        %vm1812 = vcmp.eq.f32.partialorder %v1811, 8.507059e+37
        %v1813 = vand.u32 %v1752, 2147483648
        %v1814 = vor.u32 1.1754944e-38, %v1813
        %v1815 = vsel %vm1812, %v1814, %v1810
        %v1816 = vmul.f32 1.0, %v1815
        %v1817 = vrcp.pop %v1753
        %v1818 = vmul.f32 %v1753, %v1817
        %v1819 = vsub.f32 1.0, %v1818
        %v1820 = vmul.f32 %v1817, %v1819
        %v1821 = vadd.f32 %v1817, %v1820
        %vm1822 = vweird.f32 %v1753
        %vm1823 = vweird.f32 %v1817
        %vm1824 = vmor %vm1822, %vm1823
        %v1825 = vsel %vm1824, %v1817, %v1821
        %v1826 = vand.u32 2147483647, %v1753
        %vm1827 = vcmp.eq.f32.partialorder %v1826, 8.507059e+37
        %v1828 = vand.u32 %v1753, 2147483648
        %v1829 = vor.u32 1.1754944e-38, %v1828
        %v1830 = vsel %vm1827, %v1829, %v1825
        %v1831 = vmul.f32 1.0, %v1830
        %v1832 = vrcp.pop %v1754
        %v1833 = vmul.f32 %v1754, %v1832
        %v1834 = vsub.f32 1.0, %v1833
        %v1835 = vmul.f32 %v1832, %v1834
        %v1836 = vadd.f32 %v1832, %v1835
        %vm1837 = vweird.f32 %v1754
        %vm1838 = vweird.f32 %v1832
        %vm1839 = vmor %vm1837, %vm1838
        %v1840 = vsel %vm1839, %v1832, %v1836
        %v1841 = vand.u32 2147483647, %v1754
        %vm1842 = vcmp.eq.f32.partialorder %v1841, 8.507059e+37
        %v1843 = vand.u32 %v1754, 2147483648
        %v1844 = vor.u32 1.1754944e-38, %v1843
        %v1845 = vsel %vm1842, %v1844, %v1840
        %v1846 = vmul.f32 1.0, %v1845
        %v1847 = vrcp.pop %v1755
        %v1848 = vmul.f32 %v1755, %v1847
        %v1849 = vsub.f32 1.0, %v1848
        %v1850 = vmul.f32 %v1847, %v1849
        %v1851 = vadd.f32 %v1847, %v1850
        %vm1852 = vweird.f32 %v1755
        %vm1853 = vweird.f32 %v1847
        %vm1854 = vmor %vm1852, %vm1853
        %v1855 = vsel %vm1854, %v1847, %v1851
        %v1856 = vand.u32 2147483647, %v1755
        %vm1857 = vcmp.eq.f32.partialorder %v1856, 8.507059e+37
        %v1858 = vand.u32 %v1755, 2147483648
        %v1859 = vor.u32 1.1754944e-38, %v1858
        %v1860 = vsel %vm1857, %v1859, %v1855
        %v1861 = vmul.f32 1.0, %v1860
        %v1862 = vrcp.pop %v1756
        %v1863 = vmul.f32 %v1756, %v1862
        %v1864 = vsub.f32 1.0, %v1863
        %v1865 = vmul.f32 %v1862, %v1864
        %v1866 = vadd.f32 %v1862, %v1865
        %vm1867 = vweird.f32 %v1756
        %vm1868 = vweird.f32 %v1862
        %vm1869 = vmor %vm1867, %vm1868
        %v1870 = vsel %vm1869, %v1862, %v1866
        %v1871 = vand.u32 2147483647, %v1756
        %vm1872 = vcmp.eq.f32.partialorder %v1871, 8.507059e+37
        %v1873 = vand.u32 %v1756, 2147483648
        %v1874 = vor.u32 1.1754944e-38, %v1873
        %v1875 = vsel %vm1872, %v1874, %v1870
        %v1876 = vmul.f32 1.0, %v1875
        %v1877 = vmul.f32 %v1717, %v1771
        %v1878 = vmul.f32 %v1718, %v1786
        %v1879 = vmul.f32 %v1719, %v1801
        %v1880 = vmul.f32 %v1720, %v1816
        %v1881 = vmul.f32 %v1721, %v1831
        %v1882 = vmul.f32 %v1722, %v1846
        %v1883 = vmul.f32 %v1723, %v1861
        %v1884 = vmul.f32 %v1724, %v1876
        %v1885 = vpack.c.bf16 %v1878, %v1877
        %v1886 = vpack.c.bf16 %v1880, %v1879
        %v1887 = vpack.c.bf16 %v1882, %v1881
        %v1888 = vpack.c.bf16 %v1884, %v1883
        %v1889 = vld [vmem:[#allocation11] sm:$0xf]
        %v1890 = vld [vmem:[#allocation11 + $0x4] sm:$0xf]
        %v1891 = vld [vmem:[#allocation11 + $0x8] sm:$0xf]
        %v1892 = vld [vmem:[#allocation11 + $0xc] sm:$0xf]
        %v1893 = vld [vmem:[#allocation11 + $0x10] sm:$0xf]
        %v1894 = vld [vmem:[#allocation11 + $0x14] sm:$0xf]
        %v1895 = vld [vmem:[#allocation11 + $0x18] sm:$0xf]
        %v1896 = vld [vmem:[#allocation11 + $0x1c] sm:$0xf]
        %v1897 = vld [vmem:[#allocation11 + $0x20] sm:$0xf]
        %v1898 = vld [vmem:[#allocation11 + $0x24] sm:$0xf]
        %v1899 = vld [vmem:[#allocation11 + $0x28] sm:$0xf]
        %v1900 = vld [vmem:[#allocation11 + $0x2c] sm:$0xf]
        %v1901 = vld [vmem:[#allocation11 + $0x30] sm:$0xf]
        %v1902 = vld [vmem:[#allocation11 + $0x34] sm:$0xf]
        %v1903 = vld [vmem:[#allocation11 + $0x38] sm:$0xf]
        %v1904 = vld [vmem:[#allocation11 + $0x3c] sm:$0xf]
        %v1905 = vld [vmem:[%s6] sm:$0x1]
        %v1907 = vperm.slane %v1905, 0
        %v1925 = vunpack.c.l.b16 %v1889
        %v1926 = vunpack.c.l.b16 %v1890
        %v1927 = vunpack.c.l.b16 %v1891
        %v1928 = vunpack.c.l.b16 %v1892
        %v1929 = vunpack.c.l.b16 %v1893
        %v1930 = vunpack.c.l.b16 %v1894
        %v1931 = vunpack.c.l.b16 %v1895
        %v1932 = vunpack.c.l.b16 %v1896
        %v1933 = vunpack.c.l.b16 %v1897
        %v1934 = vunpack.c.l.b16 %v1898
        %v1935 = vunpack.c.l.b16 %v1899
        %v1936 = vunpack.c.l.b16 %v1900
        %v1937 = vunpack.c.l.b16 %v1901
        %v1938 = vunpack.c.l.b16 %v1902
        %v1939 = vunpack.c.l.b16 %v1903
        %v1940 = vunpack.c.l.b16 %v1904
        %v1941 = vpack.c.b16 %v1926, %v1925
        %v1942 = vpack.c.b16 %v1928, %v1927
        %v1943 = vpack.c.b16 %v1930, %v1929
        %v1944 = vpack.c.b16 %v1932, %v1931
        %v1945 = vpack.c.b16 %v1934, %v1933
        %v1946 = vpack.c.b16 %v1936, %v1935
        %v1947 = vpack.c.b16 %v1938, %v1937
        %v1948 = vpack.c.b16 %v1940, %v1939
        %1957 = vmatpush.bf16.msra.mxu0 %v1948
        %1958 = vmatpush.bf16.msra.mxu0 %v1947
        %1959 = vmatpush.bf16.msra.mxu0 %v1946
        %1960 = vmatpush.bf16.msra.mxu0 %v1945
        %1961 = vmatpush.bf16.msra.mxu0 %v1944
        %1962 = vmatpush.bf16.msra.mxu0 %v1943
        %1963 = vmatpush.bf16.msra.mxu0 %v1942
        %1964 = vmatpush.bf16.msra.mxu0 %v1941
        %1965 = vmatmul.bf16.gmra.mxu0 %v1885
        %v1966 = vpop.f32.mrf.mxu0
        %v1967 = vadd.f32 %v1907, %v1966
        %v1968 = vpop.f32.mrf.mxu0
        %v1969 = vadd.f32 %v1907, %v1968
        %1970 = vmatmul.bf16.gmra.mxu0 %v1886
        %v1971 = vpop.f32.mrf.mxu0
        %v1972 = vadd.f32 %v1907, %v1971
        %v1973 = vpop.f32.mrf.mxu0
        %v1974 = vadd.f32 %v1907, %v1973
        %1975 = vmatmul.bf16.gmra.mxu0 %v1887
        %v1976 = vpop.f32.mrf.mxu0
        %v1977 = vadd.f32 %v1907, %v1976
        %v1978 = vpop.f32.mrf.mxu0
        %v1979 = vadd.f32 %v1907, %v1978
        %1980 = vmatmul.bf16.gmra.mxu0 %v1888
        %v1981 = vpop.f32.mrf.mxu0
        %v1982 = vadd.f32 %v1907, %v1981
        %v1983 = vpop.f32.mrf.mxu0
        %v1984 = vadd.f32 %v1907, %v1983
        %1985 = vdwg.mxu0
        %v1986 = vld [vmem:[%s311] sm:$0xff]
        %v1987 = vld [vmem:[%s311 + $0x8] sm:$0xff]
        %v1988 = vld [vmem:[%s311 + $0x10] sm:$0xff]
        %v1989 = vld [vmem:[%s311 + $0x18] sm:$0xff]
        %v1990 = vld [vmem:[%s311 + $0x20] sm:$0xff]
        %v1991 = vld [vmem:[%s311 + $0x28] sm:$0xff]
        %v1992 = vld [vmem:[%s311 + $0x30] sm:$0xff]
        %v1993 = vld [vmem:[%s311 + $0x38] sm:$0xff]
        %v1994 = vadd.f32 %v1967, %v1986
        %v1995 = vadd.f32 %v1969, %v1987
        %v1996 = vadd.f32 %v1972, %v1988
        %v1997 = vadd.f32 %v1974, %v1989
        %v1998 = vadd.f32 %v1977, %v1990
        %v1999 = vadd.f32 %v1979, %v1991
        %v2000 = vadd.f32 %v1982, %v1992
        %v2001 = vadd.f32 %v1984, %v1993
        %2002 = vst [vmem:[%s362] sm:$0xff] %v1994
        %2003 = vst [vmem:[%s362 + $0x8] sm:$0xff] %v1995
        %2004 = vst [vmem:[%s362 + $0x10] sm:$0xff] %v1996
        %2005 = vst [vmem:[%s362 + $0x18] sm:$0xff] %v1997
        %2006 = vst [vmem:[%s362 + $0x20] sm:$0xff] %v1998
        %2007 = vst [vmem:[%s362 + $0x28] sm:$0xff] %v1999
        %2008 = vst [vmem:[%s362 + $0x30] sm:$0xff] %v2000
        %2009 = vst [vmem:[%s362 + $0x38] sm:$0xff] %v2001
        %s2010 = sand.u32 %s186, 1
        %s2011 = scalar_lea.sflag [#allocation5], %s2010
        %s2012 = sand.u32 %s186, 1
        %s2013 = smul.addr %s2012, 64
        %s2014 = scalar_lea.vmem [#allocation12], %s2013
        // Predicated region
        $region69: #{tpu_custom_call.1} parent=47 // pred_check
          %p2015 = pneg %p196
        $region70: #{tpu_custom_call.1} parent=47 // pred_check_branch
          %2017 = sbr.rel (%p2015) target = $region72
        $region71: #{tpu_custom_call.1} parent=47 // pred_region
          %s2018 = smul.u32 8, %s26
          %2020 = vsyncadd %s2011, 0
          %s2021 = smul.addr %s2018, 8
          %s2022 = scalar_lea.hbm %s7, %s2021
          %s2023 = sshll.u32 %s2014, 4
          %s2024 = int_to_ptr.vmem [resolvable:$true] %s2023
          %s2025 = sshll.u32 %s2022, 4
          %s2026 = int_to_ptr.hbm [resolvable:$true] %s2025
          %2031 = dma.vmem_to_hbm [thread:$0]  %s2024, 1024, %s2026, %s2011, 128, 128, 8
        $region72: #{tpu_custom_call.1} parent=47 // pred_fallthru
          _
      $region48: #{tpu_custom_call.1} parent=5 // pred_fallthru
        _
      %p2032 = scmp.le.s32.totalorder 2, %s21
      // Predicated region
      $region73: #{tpu_custom_call.1} parent=5 // pred_check
        %p2033 = pneg %p2032
      $region74: #{tpu_custom_call.1} parent=5 // pred_check_branch
        %2035 = sbr.rel (%p2033) target = $region76
      $region75: #{tpu_custom_call.1} parent=5 // pred_region
        %s2036 = ssub.s32 %s21, 2
        // Predicated region
        $region77: #{tpu_custom_call.1} parent=75 // pred_check
          %p2037 = pneg %p202
        $region78: #{tpu_custom_call.1} parent=75 // pred_check_branch
          %2039 = sbr.rel (%p2037) target = $region80
        $region79: #{tpu_custom_call.1} parent=75 // pred_region
          %s2040 = sand.u32 %s187, 1
          %s2041 = scalar_lea.sflag [#allocation5], %s2040
          %s2042 = sand.u32 %s187, 1
          %s2043 = smul.addr %s2042, 64
          %s2044 = scalar_lea.vmem [#allocation12], %s2043
          %2046 = dma.done %s2041, 1024
        $region80: #{tpu_custom_call.1} parent=75 // pred_fallthru
          _
      $region76: #{tpu_custom_call.1} parent=5 // pred_fallthru
        _
    $region6: #{tpu_custom_call.1} parent=1 // loop_footer
      %s25 = sadd.s32 1, %s21
    $region7: #{tpu_custom_call.1} parent=1 // loop_footer_branch
      %20 = sbr.rel target = $region3
    $region8: #{tpu_custom_call.1} parent=1 // loop_exit
      _
    %2047 = vsyncpa [#allocation4], 1
    %s2048 = scalar_lea.sflag [#allocation4], 1
    %2049 = vsyncpa %s2048, 1
    %2050 = vsyncpa [#allocation7], 1
    %2051 = vsyncpa [#allocation10], 1
    %2052 = vsyncpa [#allocation5], 1
    %s2053 = scalar_lea.sflag [#allocation5], 1
    %2054 = vsyncpa %s2053, 1

</llo_original>
